<compile_context>
chip_gen: v7x
topology: tpu7x:2x2x1
jax: 0.10.0
libtpu: 0.0.40
codegen_flags: <defaults>
</compile_context>

<pallas_src>
import functools

import jax
import jax.numpy as jnp
from jax.experimental import pallas as pl
from jax.experimental.pallas import tpu as pltpu

IN_DIM = 784
H1_DIM = 512
H2_DIM = 128
NUM_CLASSES = 10
PADDED_CLASSES = 128          # lane-dense output width
NEG_INF = -1e30               # baked into padded b3 columns


def _round_up(v, m):
    return ((v + m - 1) // m) * m


def mlp_kernel(x_ref, w1_ref, b1_ref, w2_ref, b2_ref, w3_ref, b3_ref, out_ref):
    # x_ref: (TB, 784) f32 activation tile; w* bf16 (resident); b* f32.
    x = x_ref[...].astype(jnp.bfloat16)                        # in-kernel cast (VPU, hidden under fc1)

    # fc1 + ReLU  (bf16 MXU matmul, f32 accumulation, f32 elementwise)
    h1 = jnp.dot(x, w1_ref[...], preferred_element_type=jnp.float32) + b1_ref[...]
    h1 = jnp.maximum(h1, 0.0).astype(jnp.bfloat16)             # (TB, 512)

    # fc2 + ReLU
    h2 = jnp.dot(h1, w2_ref[...], preferred_element_type=jnp.float32) + b2_ref[...]
    h2 = jnp.maximum(h2, 0.0).astype(jnp.bfloat16)             # (TB, 128)

    # fc3: padded w3 columns are exactly zero, padded b3 columns are NEG_INF,
    # so padded logits are already ~-1e30 — no per-step iota/where mask needed.
    logits = jnp.dot(h2, w3_ref[...], preferred_element_type=jnp.float32) + b3_ref[...]

    # Numerically stable log_softmax over the last dim, all in f32.
    m = jnp.max(logits, axis=-1, keepdims=True)
    shifted = logits - m
    lse = jnp.log(jnp.sum(jnp.exp(shifted), axis=-1, keepdims=True))
    out_ref[...] = shifted - lse                               # (TB, 128) f32


@functools.partial(jax.jit, static_argnames=("tb",))
def mlp_forward(x_nchw, params, *, tb=1024):
    """x_nchw: (B, 1, 28, 28) float32 -> (B, 10) log-probabilities."""
    w1, b1, w2, b2, w3, b3 = params
    B = x_nchw.shape[0]

    # Adaptive batch tile: keep it a multiple of 256 (v6e/v7x MXU M-alignment)
    # but don't pad tiny batches up to the full default tile.
    tb = min(tb, max(256, _round_up(B, 256)))
    b_pad = _round_up(B, tb)

    # Single reshape + pad in f32 (no separate bf16 cast pass; the cast happens
    # inside the kernel).  Same semantics as torch .view(-1, 784).
    x = x_nchw.reshape(B, IN_DIM).astype(jnp.float32)
    if b_pad != B:
        x = jnp.pad(x, ((0, b_pad - B), (0, 0)))

    # bf16 matmul operands; biases stay f32 (added after f32 accumulation).
    w1_bf = w1.astype(jnp.bfloat16)
    w2_bf = w2.astype(jnp.bfloat16)
    # Padded w3 columns must be exactly zero; padded b3 columns carry the mask.
    w3_p = jnp.pad(w3, ((0, 0), (0, PADDED_CLASSES - NUM_CLASSES))).astype(jnp.bfloat16)
    b3_p = jnp.pad(b3, ((0, 0), (0, PADDED_CLASSES - NUM_CLASSES)),
                   constant_values=NEG_INF)

    grid = (b_pad // tb,)

    flops = 2 * b_pad * (IN_DIM * H1_DIM + H1_DIM * H2_DIM + H2_DIM * PADDED_CLASSES)
    bytes_accessed = (
        x.size * 4                                   # f32 x in
        + w1_bf.size * 2 + w2_bf.size * 2 + w3_p.size * 2
        + b1.size * 4 + b2.size * 4 + b3_p.size * 4
        + b_pad * PADDED_CLASSES * 4                 # f32 out
    )

    out = pl.pallas_call(
        mlp_kernel,
        out_shape=jax.ShapeDtypeStruct((b_pad, PADDED_CLASSES), jnp.float32),
        grid=grid,
        in_specs=[
            pl.BlockSpec((tb, IN_DIM), lambda i: (i, 0)),                # x tile (f32)
            pl.BlockSpec((IN_DIM, H1_DIM), lambda i: (0, 0)),            # w1 (resident)
            pl.BlockSpec((1, H1_DIM), lambda i: (0, 0)),                 # b1
            pl.BlockSpec((H1_DIM, H2_DIM), lambda i: (0, 0)),            # w2
            pl.BlockSpec((1, H2_DIM), lambda i: (0, 0)),                 # b2
            pl.BlockSpec((H2_DIM, PADDED_CLASSES), lambda i: (0, 0)),    # w3 (padded, zero cols)
            pl.BlockSpec((1, PADDED_CLASSES), lambda i: (0, 0)),         # b3 (padded, NEG_INF cols)
        ],
        out_specs=pl.BlockSpec((tb, PADDED_CLASSES), lambda i: (i, 0)),
        compiler_params=pltpu.CompilerParams(
            dimension_semantics=("parallel",),        # megacore sharding on v7x
            vmem_limit_bytes=32 * 1024 * 1024,        # ~10 MiB used at TB=1024
        ),
        cost_estimate=pl.CostEstimate(
            flops=flops,
            bytes_accessed=bytes_accessed,
            transcendentals=b_pad * (PADDED_CLASSES + 1),
        ),
    )(x, w1_bf, b1, w2_bf, b2, w3_p, b3_p)

    # Slice under the same jit so XLA can fuse it with neighbouring ops.
    return out[:B, :NUM_CLASSES]


def init_params(key):
    """Deterministic init mimicking PyTorch nn.Linear's U(-1/sqrt(in), 1/sqrt(in))."""
    dims = [(IN_DIM, H1_DIM), (H1_DIM, H2_DIM), (H2_DIM, NUM_CLASSES)]
    params = []
    for i, (fan_in, fan_out) in enumerate(dims):
        kw, kb = jax.random.split(jax.random.fold_in(key, i))
        bound = 1.0 / jnp.sqrt(fan_in)
        w = jax.random.uniform(kw, (fan_in, fan_out), jnp.float32, -bound, bound)
        b = jax.random.uniform(kb, (1, fan_out), jnp.float32, -bound, bound)
        params.extend([w, b])
    return tuple(params)


def mlp_reference(x_nchw, params):
    """Plain-JAX f32 reference for correctness checking."""
    w1, b1, w2, b2, w3, b3 = params
    x = x_nchw.reshape(x_nchw.shape[0], IN_DIM)
    h1 = jnp.maximum(x @ w1 + b1, 0.0)
    h2 = jnp.maximum(h1 @ w2 + b2, 0.0)
    logits = h2 @ w3 + b3
    return jax.nn.log_softmax(logits, axis=1)


if __name__ == "__main__":
    key = jax.random.PRNGKey(0)
    kx, kp = jax.random.split(key)

    # MNIST-shaped input: batch=2, NCHW (2, 1, 28, 28)
    x = jax.random.normal(kx, (2, 1, 28, 28), dtype=jnp.float32)
    params = init_params(kp)

    out = jax.block_until_ready(mlp_forward(x, params))
    ref = jax.block_until_ready(mlp_reference(x, params))

    assert out.shape == (2, 10)
    # bf16 matmul operands -> relaxed tolerance vs the f32 reference.
    assert jnp.allclose(out, ref, atol=5e-2, rtol=5e-2), "mismatch vs f32 reference"
    # Rows must still be valid log-probabilities.
    assert jnp.allclose(jnp.sum(jnp.exp(out), axis=1), 1.0, atol=1e-3)

    print("KERNEL_OK")
</pallas_src>

<mosaic_0001>
module attributes {stable_mosaic.version = 11 : i64} {
  func.func @mlp_kernel(%arg0: i32, %arg1: memref<256x784xf32, #tpu.memory_space<vmem>>, %arg2: memref<784x512xbf16, #tpu.memory_space<vmem>>, %arg3: memref<1x512xf32, #tpu.memory_space<vmem>>, %arg4: memref<512x128xbf16, #tpu.memory_space<vmem>>, %arg5: memref<1x128xf32, #tpu.memory_space<vmem>>, %arg6: memref<128x128xbf16, #tpu.memory_space<vmem>>, %arg7: memref<1x128xf32, #tpu.memory_space<vmem>>, %arg8: memref<256x128xf32, #tpu.memory_space<vmem>>) attributes {dimension_semantics = [#tpu.dimension_semantics<parallel>], iteration_bounds = array<i64: 1>, scalar_prefetch = 0 : i64, scratch_operands = 0 : i64, tpu.core_type = #tpu.core_type<tc>, window_params = [{transform_indices = @transform_0, window_bounds = array<i64: 256, 784>}, {pipeline_mode = #tpu.pipeline_mode<synchronous>, transform_indices = @transform_1, window_bounds = array<i64: 784, 512>}, {pipeline_mode = #tpu.pipeline_mode<synchronous>, transform_indices = @transform_2, window_bounds = array<i64: 1, 512>}, {pipeline_mode = #tpu.pipeline_mode<synchronous>, transform_indices = @transform_3, window_bounds = array<i64: 512, 128>}, {pipeline_mode = #tpu.pipeline_mode<synchronous>, transform_indices = @transform_4, window_bounds = array<i64: 1, 128>}, {pipeline_mode = #tpu.pipeline_mode<synchronous>, transform_indices = @transform_5, window_bounds = array<i64: 128, 128>}, {pipeline_mode = #tpu.pipeline_mode<synchronous>, transform_indices = @transform_6, window_bounds = array<i64: 1, 128>}, {transform_indices = @transform_7, window_bounds = array<i64: 256, 128>}]} {
    %c0 = arith.constant 0 : index
    %c0_0 = arith.constant 0 : index
    %0 = vector.load %arg1[%c0, %c0_0] : memref<256x784xf32, #tpu.memory_space<vmem>>, vector<256x784xf32>
    %1 = arith.truncf %0 : vector<256x784xf32> to vector<256x784xbf16>
    %c0_1 = arith.constant 0 : index
    %c0_2 = arith.constant 0 : index
    %2 = vector.load %arg2[%c0_1, %c0_2] : memref<784x512xbf16, #tpu.memory_space<vmem>>, vector<784x512xbf16>
    %cst = arith.constant dense<0.000000e+00> : vector<256x512xf32>
    %3 = tpu.matmul %1, %2, %cst {dimension_numbers = #tpu.dot_dimension_numbers<[1], [0], [0], [1], [0, 0, 1, 1], [], []>} : vector<256x784xbf16>, vector<784x512xbf16>, vector<256x512xf32> -> vector<256x512xf32>
    %c0_3 = arith.constant 0 : index
    %c0_4 = arith.constant 0 : index
    %4 = vector.load %arg3[%c0_3, %c0_4] : memref<1x512xf32, #tpu.memory_space<vmem>>, vector<1x512xf32>
    %5 = vector.broadcast %4 : vector<1x512xf32> to vector<256x512xf32>
    %6 = arith.addf %3, %5 : vector<256x512xf32>
    %cst_5 = arith.constant 0.000000e+00 : f32
    %7 = vector.broadcast %cst_5 : f32 to vector<256x512xf32>
    %8 = arith.maximumf %6, %7 : vector<256x512xf32>
    %9 = arith.truncf %8 : vector<256x512xf32> to vector<256x512xbf16>
    %c0_6 = arith.constant 0 : index
    %c0_7 = arith.constant 0 : index
    %10 = vector.load %arg4[%c0_6, %c0_7] : memref<512x128xbf16, #tpu.memory_space<vmem>>, vector<512x128xbf16>
    %cst_8 = arith.constant dense<0.000000e+00> : vector<256x128xf32>
    %11 = tpu.matmul %9, %10, %cst_8 {dimension_numbers = #tpu.dot_dimension_numbers<[1], [0], [0], [1], [0, 0, 1, 1], [], []>} : vector<256x512xbf16>, vector<512x128xbf16>, vector<256x128xf32> -> vector<256x128xf32>
    %c0_9 = arith.constant 0 : index
    %c0_10 = arith.constant 0 : index
    %12 = vector.load %arg5[%c0_9, %c0_10] : memref<1x128xf32, #tpu.memory_space<vmem>>, vector<1x128xf32>
    %13 = vector.broadcast %12 : vector<1x128xf32> to vector<256x128xf32>
    %14 = arith.addf %11, %13 : vector<256x128xf32>
    %cst_11 = arith.constant 0.000000e+00 : f32
    %15 = vector.broadcast %cst_11 : f32 to vector<256x128xf32>
    %16 = arith.maximumf %14, %15 : vector<256x128xf32>
    %17 = arith.truncf %16 : vector<256x128xf32> to vector<256x128xbf16>
    %c0_12 = arith.constant 0 : index
    %c0_13 = arith.constant 0 : index
    %18 = vector.load %arg6[%c0_12, %c0_13] : memref<128x128xbf16, #tpu.memory_space<vmem>>, vector<128x128xbf16>
    %cst_14 = arith.constant dense<0.000000e+00> : vector<256x128xf32>
    %19 = tpu.matmul %17, %18, %cst_14 {dimension_numbers = #tpu.dot_dimension_numbers<[1], [0], [0], [1], [0, 0, 1, 1], [], []>} : vector<256x128xbf16>, vector<128x128xbf16>, vector<256x128xf32> -> vector<256x128xf32>
    %c0_15 = arith.constant 0 : index
    %c0_16 = arith.constant 0 : index
    %20 = vector.load %arg7[%c0_15, %c0_16] : memref<1x128xf32, #tpu.memory_space<vmem>>, vector<1x128xf32>
    %21 = vector.broadcast %20 : vector<1x128xf32> to vector<256x128xf32>
    %22 = arith.addf %19, %21 : vector<256x128xf32>
    %cst_17 = arith.constant dense<0xFF800000> : vector<256xf32>
    %23 = vector.multi_reduction <maximumf>, %22, %cst_17 [1] : vector<256x128xf32> to vector<256xf32>
    %24 = vector.shape_cast %23 : vector<256xf32> to vector<256x1xf32>
    %25 = vector.broadcast %24 : vector<256x1xf32> to vector<256x128xf32>
    %26 = arith.subf %22, %25 : vector<256x128xf32>
    %27 = math.exp %26 : vector<256x128xf32>
    %cst_18 = arith.constant dense<0.000000e+00> : vector<256xf32>
    %28 = vector.multi_reduction <add>, %27, %cst_18 [1] : vector<256x128xf32> to vector<256xf32>
    %29 = vector.shape_cast %28 : vector<256xf32> to vector<256x1xf32>
    %30 = math.log %29 : vector<256x1xf32>
    %31 = vector.broadcast %30 : vector<256x1xf32> to vector<256x128xf32>
    %32 = arith.subf %26, %31 : vector<256x128xf32>
    %c0_19 = arith.constant 0 : index
    %c0_20 = arith.constant 0 : index
    %33 = vector.load %arg8[%c0_19, %c0_20] : memref<256x128xf32, #tpu.memory_space<vmem>>, vector<256x128xf32>
    tpu.vector_store %arg8[%c0_19, %c0_20], %32 {strides = array<i32>} : memref<256x128xf32, #tpu.memory_space<vmem>>, vector<256x128xf32>,
    return
  }
  func.func @transform_0(%arg0: i32) -> (i32, i32) {
    %c0_i32 = arith.constant 0 : i32
    %c0_i32_0 = arith.constant 0 : i32
    return %arg0, %c0_i32 : i32, i32
  }
  func.func @transform_1(%arg0: i32) -> (i32, i32) {
    %c0_i32 = arith.constant 0 : i32
    %c0_i32_0 = arith.constant 0 : i32
    %c0_i32_1 = arith.constant 0 : i32
    return %c0_i32, %c0_i32_0 : i32, i32
  }
  func.func @transform_2(%arg0: i32) -> (i32, i32) {
    %c0_i32 = arith.constant 0 : i32
    %c0_i32_0 = arith.constant 0 : i32
    %c0_i32_1 = arith.constant 0 : i32
    return %c0_i32, %c0_i32_0 : i32, i32
  }
  func.func @transform_3(%arg0: i32) -> (i32, i32) {
    %c0_i32 = arith.constant 0 : i32
    %c0_i32_0 = arith.constant 0 : i32
    %c0_i32_1 = arith.constant 0 : i32
    return %c0_i32, %c0_i32_0 : i32, i32
  }
  func.func @transform_4(%arg0: i32) -> (i32, i32) {
    %c0_i32 = arith.constant 0 : i32
    %c0_i32_0 = arith.constant 0 : i32
    %c0_i32_1 = arith.constant 0 : i32
    return %c0_i32, %c0_i32_0 : i32, i32
  }
  func.func @transform_5(%arg0: i32) -> (i32, i32) {
    %c0_i32 = arith.constant 0 : i32
    %c0_i32_0 = arith.constant 0 : i32
    %c0_i32_1 = arith.constant 0 : i32
    return %c0_i32, %c0_i32_0 : i32, i32
  }
  func.func @transform_6(%arg0: i32) -> (i32, i32) {
    %c0_i32 = arith.constant 0 : i32
    %c0_i32_0 = arith.constant 0 : i32
    %c0_i32_1 = arith.constant 0 : i32
    return %c0_i32, %c0_i32_0 : i32, i32
  }
  func.func @transform_7(%arg0: i32) -> (i32, i32) {
    %c0_i32 = arith.constant 0 : i32
    %c0_i32_0 = arith.constant 0 : i32
    return %arg0, %c0_i32 : i32, i32
  }
}

</mosaic_0001>

<llo_original>
// kernel: mlp_forward.1
$region0: #{mlp_forward.1}
  #allocation0 [shape = 'u32[]', space=smem, size = 0x4, offset = 0x4, fixed_abs, tag = 'smem constant byte address 0x4 - core index']
  #allocation1 [shape = 'u32[144,128]{1,0:T(1,128)}', space=vmem, size = 0x12000, scoped, tag = 'internal scratch']
  %s0 = inlined_call_operand.vmem [shape: f32[256,784], index: 0, kind: input, shape index: {}]
  %s1 = inlined_call_operand.vmem [shape: bf16[784,512], index: 1, kind: input, shape index: {}]
  %s2 = inlined_call_operand.vmem [shape: f32[1,512], index: 2, kind: input, shape index: {}]
  %s3 = inlined_call_operand.vmem [shape: bf16[512,128], index: 3, kind: input, shape index: {}]
  %s4 = inlined_call_operand.vmem [shape: f32[1,128], index: 4, kind: input, shape index: {}]
  %s5 = inlined_call_operand.vmem [shape: bf16[128,128], index: 5, kind: input, shape index: {}]
  %s6 = inlined_call_operand.vmem [shape: f32[1,128], index: 6, kind: input, shape index: {}]
  %s7 = inlined_call_operand.vmem [shape: f32[256,128], index: 7, kind: output, shape index: {}]
  %s8 = sld [smem:[#allocation0]]
  $region38: #{mlp_forward.1} parent=0
    _
  %s10 = ssub.s32 1, %s8
  %s11 = scalar_select 0, %s10, %s8
  // Predicated region
  $region2: #{mlp_forward.1} parent=0 // pred_check
    _
  $region3: #{mlp_forward.1} parent=0 // pred_check_branch
    %13 = sbr.rel (0) target = $region5
  $region4: #{mlp_forward.1} parent=0 // pred_region
    _
  $region5: #{mlp_forward.1} parent=0 // pred_fallthru
    _
  // Predicated region
  $region6: #{mlp_forward.1} parent=0 // pred_check
    _
  $region7: #{mlp_forward.1} parent=0 // pred_check_branch
    %15 = sbr.rel (0) target = $region9
  $region8: #{mlp_forward.1} parent=0 // pred_region
    _
  $region9: #{mlp_forward.1} parent=0 // pred_fallthru
    _
  // Predicated region
  $region10: #{mlp_forward.1} parent=0 // pred_check
    _
  $region11: #{mlp_forward.1} parent=0 // pred_check_branch
    %17 = sbr.rel (0) target = $region13
  $region12: #{mlp_forward.1} parent=0 // pred_region
    _
  $region13: #{mlp_forward.1} parent=0 // pred_fallthru
    _
  // Predicated region
  $region14: #{mlp_forward.1} parent=0 // pred_check
    _
  $region15: #{mlp_forward.1} parent=0 // pred_check_branch
    %19 = sbr.rel (0) target = $region17
  $region16: #{mlp_forward.1} parent=0 // pred_region
    _
  $region17: #{mlp_forward.1} parent=0 // pred_fallthru
    _
  // Predicated region
  $region18: #{mlp_forward.1} parent=0 // pred_check
    _
  $region19: #{mlp_forward.1} parent=0 // pred_check_branch
    %21 = sbr.rel (0) target = $region21
  $region20: #{mlp_forward.1} parent=0 // pred_region
    _
  $region21: #{mlp_forward.1} parent=0 // pred_fallthru
    _
  // Predicated region
  $region22: #{mlp_forward.1} parent=0 // pred_check
    _
  $region23: #{mlp_forward.1} parent=0 // pred_check_branch
    %23 = sbr.rel (0) target = $region25
  $region24: #{mlp_forward.1} parent=0 // pred_region
    _
  $region25: #{mlp_forward.1} parent=0 // pred_fallthru
    _
  // Predicated region
  $region26: #{mlp_forward.1} parent=0 // pred_check
    _
  $region27: #{mlp_forward.1} parent=0 // pred_check_branch
    %25 = sbr.rel (0) target = $region29
  $region28: #{mlp_forward.1} parent=0 // pred_region
    _
  $region29: #{mlp_forward.1} parent=0 // pred_fallthru
    _
  %v27 = vld [vmem:[%s0] sm:$0xff]
  %v28 = vld [vmem:[%s0 + $0x8] sm:$0xff]
  %v29 = vld [vmem:[%s0 + $0x10] sm:$0xff]
  %v30 = vld [vmem:[%s0 + $0x18] sm:$0xff]
  %v31 = vld [vmem:[%s0 + $0x20] sm:$0xff]
  %v32 = vld [vmem:[%s0 + $0x28] sm:$0xff]
  %v33 = vld [vmem:[%s0 + $0x30] sm:$0xff]
  %v34 = vld [vmem:[%s0 + $0x38] sm:$0xff]
  %v35 = vld [vmem:[%s0 + $0x40] sm:$0xff]
  %v36 = vld [vmem:[%s0 + $0x48] sm:$0xff]
  %v37 = vld [vmem:[%s0 + $0x50] sm:$0xff]
  %v38 = vld [vmem:[%s0 + $0x58] sm:$0xff]
  %v39 = vld [vmem:[%s0 + $0x60] sm:$0xff]
  %v40 = vld [vmem:[%s0 + $0x68] sm:$0xff]
  %v41 = vld [vmem:[%s0 + $0x70] sm:$0xff]
  %v42 = vld [vmem:[%s0 + $0x78] sm:$0xff]
  %v43 = vld [vmem:[%s0 + $0x80] sm:$0xff]
  %v44 = vld [vmem:[%s0 + $0x88] sm:$0xff]
  %v45 = vld [vmem:[%s0 + $0x90] sm:$0xff]
  %v46 = vld [vmem:[%s0 + $0x98] sm:$0xff]
  %v47 = vld [vmem:[%s0 + $0xa0] sm:$0xff]
  %v48 = vld [vmem:[%s0 + $0xa8] sm:$0xff]
  %v49 = vld [vmem:[%s0 + $0xb0] sm:$0xff]
  %v50 = vld [vmem:[%s0 + $0xb8] sm:$0xff]
  %v51 = vld [vmem:[%s0 + $0xc0] sm:$0xff]
  %v52 = vld [vmem:[%s0 + $0xc8] sm:$0xff]
  %v53 = vld [vmem:[%s0 + $0xd0] sm:$0xff]
  %v54 = vld [vmem:[%s0 + $0xd8] sm:$0xff]
  %v55 = vld [vmem:[%s0 + $0xe0] sm:$0xff]
  %v56 = vld [vmem:[%s0 + $0xe8] sm:$0xff]
  %v57 = vld [vmem:[%s0 + $0xf0] sm:$0xff]
  %v58 = vld [vmem:[%s0 + $0xf8] sm:$0xff]
  %v59 = vld [vmem:[%s0 + $0x100] sm:$0xff]
  %v60 = vld [vmem:[%s0 + $0x108] sm:$0xff]
  %v61 = vld [vmem:[%s0 + $0x110] sm:$0xff]
  %v62 = vld [vmem:[%s0 + $0x118] sm:$0xff]
  %v63 = vld [vmem:[%s0 + $0x120] sm:$0xff]
  %v64 = vld [vmem:[%s0 + $0x128] sm:$0xff]
  %v65 = vld [vmem:[%s0 + $0x130] sm:$0xff]
  %v66 = vld [vmem:[%s0 + $0x138] sm:$0xff]
  %v67 = vld [vmem:[%s0 + $0x140] sm:$0xff]
  %v68 = vld [vmem:[%s0 + $0x148] sm:$0xff]
  %v69 = vld [vmem:[%s0 + $0x150] sm:$0xff]
  %v70 = vld [vmem:[%s0 + $0x158] sm:$0xff]
  %v71 = vld [vmem:[%s0 + $0x160] sm:$0xff]
  %v72 = vld [vmem:[%s0 + $0x168] sm:$0xff]
  %v73 = vld [vmem:[%s0 + $0x170] sm:$0xff]
  %v74 = vld [vmem:[%s0 + $0x178] sm:$0xff]
  %v75 = vld [vmem:[%s0 + $0x180] sm:$0xff]
  %v76 = vld [vmem:[%s0 + $0x188] sm:$0xff]
  %v77 = vld [vmem:[%s0 + $0x190] sm:$0xff]
  %v78 = vld [vmem:[%s0 + $0x198] sm:$0xff]
  %v79 = vld [vmem:[%s0 + $0x1a0] sm:$0xff]
  %v80 = vld [vmem:[%s0 + $0x1a8] sm:$0xff]
  %v81 = vld [vmem:[%s0 + $0x1b0] sm:$0xff]
  %v82 = vld [vmem:[%s0 + $0x1b8] sm:$0xff]
  %v83 = vld [vmem:[%s0 + $0x1c0] sm:$0xff]
  %v84 = vld [vmem:[%s0 + $0x1c8] sm:$0xff]
  %v85 = vld [vmem:[%s0 + $0x1d0] sm:$0xff]
  %v86 = vld [vmem:[%s0 + $0x1d8] sm:$0xff]
  %v87 = vld [vmem:[%s0 + $0x1e0] sm:$0xff]
  %v88 = vld [vmem:[%s0 + $0x1e8] sm:$0xff]
  %v89 = vld [vmem:[%s0 + $0x1f0] sm:$0xff]
  %v90 = vld [vmem:[%s0 + $0x1f8] sm:$0xff]
  %v91 = vld [vmem:[%s0 + $0x200] sm:$0xff]
  %v92 = vld [vmem:[%s0 + $0x208] sm:$0xff]
  %v93 = vld [vmem:[%s0 + $0x210] sm:$0xff]
  %v94 = vld [vmem:[%s0 + $0x218] sm:$0xff]
  %v95 = vld [vmem:[%s0 + $0x220] sm:$0xff]
  %v96 = vld [vmem:[%s0 + $0x228] sm:$0xff]
  %v97 = vld [vmem:[%s0 + $0x230] sm:$0xff]
  %v98 = vld [vmem:[%s0 + $0x238] sm:$0xff]
  %v99 = vld [vmem:[%s0 + $0x240] sm:$0xff]
  %v100 = vld [vmem:[%s0 + $0x248] sm:$0xff]
  %v101 = vld [vmem:[%s0 + $0x250] sm:$0xff]
  %v102 = vld [vmem:[%s0 + $0x258] sm:$0xff]
  %v103 = vld [vmem:[%s0 + $0x260] sm:$0xff]
  %v104 = vld [vmem:[%s0 + $0x268] sm:$0xff]
  %v105 = vld [vmem:[%s0 + $0x270] sm:$0xff]
  %v106 = vld [vmem:[%s0 + $0x278] sm:$0xff]
  %v107 = vld [vmem:[%s0 + $0x280] sm:$0xff]
  %v108 = vld [vmem:[%s0 + $0x288] sm:$0xff]
  %v109 = vld [vmem:[%s0 + $0x290] sm:$0xff]
  %v110 = vld [vmem:[%s0 + $0x298] sm:$0xff]
  %v111 = vld [vmem:[%s0 + $0x2a0] sm:$0xff]
  %v112 = vld [vmem:[%s0 + $0x2a8] sm:$0xff]
  %v113 = vld [vmem:[%s0 + $0x2b0] sm:$0xff]
  %v114 = vld [vmem:[%s0 + $0x2b8] sm:$0xff]
  %v115 = vld [vmem:[%s0 + $0x2c0] sm:$0xff]
  %v116 = vld [vmem:[%s0 + $0x2c8] sm:$0xff]
  %v117 = vld [vmem:[%s0 + $0x2d0] sm:$0xff]
  %v118 = vld [vmem:[%s0 + $0x2d8] sm:$0xff]
  %v119 = vld [vmem:[%s0 + $0x2e0] sm:$0xff]
  %v120 = vld [vmem:[%s0 + $0x2e8] sm:$0xff]
  %v121 = vld [vmem:[%s0 + $0x2f0] sm:$0xff]
  %v122 = vld [vmem:[%s0 + $0x2f8] sm:$0xff]
  %v123 = vld [vmem:[%s0 + $0x300] sm:$0xff]
  %v124 = vld [vmem:[%s0 + $0x308] sm:$0xff]
  %v125 = vld [vmem:[%s0 + $0x310] sm:$0xff]
  %v126 = vld [vmem:[%s0 + $0x318] sm:$0xff]
  %v127 = vld [vmem:[%s0 + $0x320] sm:$0xff]
  %v128 = vld [vmem:[%s0 + $0x328] sm:$0xff]
  %v129 = vld [vmem:[%s0 + $0x330] sm:$0xff]
  %v130 = vld [vmem:[%s0 + $0x338] sm:$0xff]
  %v131 = vld [vmem:[%s0 + $0x340] sm:$0xff]
  %v132 = vld [vmem:[%s0 + $0x348] sm:$0xff]
  %v133 = vld [vmem:[%s0 + $0x350] sm:$0xff]
  %v134 = vld [vmem:[%s0 + $0x358] sm:$0xff]
  %v135 = vld [vmem:[%s0 + $0x360] sm:$0xff]
  %v136 = vld [vmem:[%s0 + $0x368] sm:$0xff]
  %v137 = vld [vmem:[%s0 + $0x370] sm:$0xff]
  %v138 = vld [vmem:[%s0 + $0x378] sm:$0xff]
  %v139 = vld [vmem:[%s0 + $0x380] sm:$0xff]
  %v140 = vld [vmem:[%s0 + $0x388] sm:$0xff]
  %v141 = vld [vmem:[%s0 + $0x390] sm:$0xff]
  %v142 = vld [vmem:[%s0 + $0x398] sm:$0xff]
  %v143 = vld [vmem:[%s0 + $0x3a0] sm:$0xff]
  %v144 = vld [vmem:[%s0 + $0x3a8] sm:$0xff]
  %v145 = vld [vmem:[%s0 + $0x3b0] sm:$0xff]
  %v146 = vld [vmem:[%s0 + $0x3b8] sm:$0xff]
  %v147 = vld [vmem:[%s0 + $0x3c0] sm:$0xff]
  %v148 = vld [vmem:[%s0 + $0x3c8] sm:$0xff]
  %v149 = vld [vmem:[%s0 + $0x3d0] sm:$0xff]
  %v150 = vld [vmem:[%s0 + $0x3d8] sm:$0xff]
  %v151 = vld [vmem:[%s0 + $0x3e0] sm:$0xff]
  %v152 = vld [vmem:[%s0 + $0x3e8] sm:$0xff]
  %v153 = vld [vmem:[%s0 + $0x3f0] sm:$0xff]
  %v154 = vld [vmem:[%s0 + $0x3f8] sm:$0xff]
  %v155 = vld [vmem:[%s0 + $0x400] sm:$0xff]
  %v156 = vld [vmem:[%s0 + $0x408] sm:$0xff]
  %v157 = vld [vmem:[%s0 + $0x410] sm:$0xff]
  %v158 = vld [vmem:[%s0 + $0x418] sm:$0xff]
  %v159 = vld [vmem:[%s0 + $0x420] sm:$0xff]
  %v160 = vld [vmem:[%s0 + $0x428] sm:$0xff]
  %v161 = vld [vmem:[%s0 + $0x430] sm:$0xff]
  %v162 = vld [vmem:[%s0 + $0x438] sm:$0xff]
  %v163 = vld [vmem:[%s0 + $0x440] sm:$0xff]
  %v164 = vld [vmem:[%s0 + $0x448] sm:$0xff]
  %v165 = vld [vmem:[%s0 + $0x450] sm:$0xff]
  %v166 = vld [vmem:[%s0 + $0x458] sm:$0xff]
  %v167 = vld [vmem:[%s0 + $0x460] sm:$0xff]
  %v168 = vld [vmem:[%s0 + $0x468] sm:$0xff]
  %v169 = vld [vmem:[%s0 + $0x470] sm:$0xff]
  %v170 = vld [vmem:[%s0 + $0x478] sm:$0xff]
  %v171 = vld [vmem:[%s0 + $0x480] sm:$0xff]
  %v172 = vld [vmem:[%s0 + $0x488] sm:$0xff]
  %v173 = vld [vmem:[%s0 + $0x490] sm:$0xff]
  %v174 = vld [vmem:[%s0 + $0x498] sm:$0xff]
  %v175 = vld [vmem:[%s0 + $0x4a0] sm:$0xff]
  %v176 = vld [vmem:[%s0 + $0x4a8] sm:$0xff]
  %v177 = vld [vmem:[%s0 + $0x4b0] sm:$0xff]
  %v178 = vld [vmem:[%s0 + $0x4b8] sm:$0xff]
  %v179 = vld [vmem:[%s0 + $0x4c0] sm:$0xff]
  %v180 = vld [vmem:[%s0 + $0x4c8] sm:$0xff]
  %v181 = vld [vmem:[%s0 + $0x4d0] sm:$0xff]
  %v182 = vld [vmem:[%s0 + $0x4d8] sm:$0xff]
  %v183 = vld [vmem:[%s0 + $0x4e0] sm:$0xff]
  %v184 = vld [vmem:[%s0 + $0x4e8] sm:$0xff]
  %v185 = vld [vmem:[%s0 + $0x4f0] sm:$0xff]
  %v186 = vld [vmem:[%s0 + $0x4f8] sm:$0xff]
  %v187 = vld [vmem:[%s0 + $0x500] sm:$0xff]
  %v188 = vld [vmem:[%s0 + $0x508] sm:$0xff]
  %v189 = vld [vmem:[%s0 + $0x510] sm:$0xff]
  %v190 = vld [vmem:[%s0 + $0x518] sm:$0xff]
  %v191 = vld [vmem:[%s0 + $0x520] sm:$0xff]
  %v192 = vld [vmem:[%s0 + $0x528] sm:$0xff]
  %v193 = vld [vmem:[%s0 + $0x530] sm:$0xff]
  %v194 = vld [vmem:[%s0 + $0x538] sm:$0xff]
  %v195 = vld [vmem:[%s0 + $0x540] sm:$0xff]
  %v196 = vld [vmem:[%s0 + $0x548] sm:$0xff]
  %v197 = vld [vmem:[%s0 + $0x550] sm:$0xff]
  %v198 = vld [vmem:[%s0 + $0x558] sm:$0xff]
  %v199 = vld [vmem:[%s0 + $0x560] sm:$0xff]
  %v200 = vld [vmem:[%s0 + $0x568] sm:$0xff]
  %v201 = vld [vmem:[%s0 + $0x570] sm:$0xff]
  %v202 = vld [vmem:[%s0 + $0x578] sm:$0xff]
  %v203 = vld [vmem:[%s0 + $0x580] sm:$0xff]
  %v204 = vld [vmem:[%s0 + $0x588] sm:$0xff]
  %v205 = vld [vmem:[%s0 + $0x590] sm:$0xff]
  %v206 = vld [vmem:[%s0 + $0x598] sm:$0xff]
  %v207 = vld [vmem:[%s0 + $0x5a0] sm:$0xff]
  %v208 = vld [vmem:[%s0 + $0x5a8] sm:$0xff]
  %v209 = vld [vmem:[%s0 + $0x5b0] sm:$0xff]
  %v210 = vld [vmem:[%s0 + $0x5b8] sm:$0xff]
  %v211 = vld [vmem:[%s0 + $0x5c0] sm:$0xff]
  %v212 = vld [vmem:[%s0 + $0x5c8] sm:$0xff]
  %v213 = vld [vmem:[%s0 + $0x5d0] sm:$0xff]
  %v214 = vld [vmem:[%s0 + $0x5d8] sm:$0xff]
  %v215 = vld [vmem:[%s0 + $0x5e0] sm:$0xff]
  %v216 = vld [vmem:[%s0 + $0x5e8] sm:$0xff]
  %v217 = vld [vmem:[%s0 + $0x5f0] sm:$0xff]
  %v218 = vld [vmem:[%s0 + $0x5f8] sm:$0xff]
  %v219 = vld [vmem:[%s0 + $0x600] sm:$0xff]
  %v220 = vld [vmem:[%s0 + $0x608] sm:$0xff]
  %v221 = vld [vmem:[%s0 + $0x610] sm:$0xff]
  %v222 = vld [vmem:[%s0 + $0x618] sm:$0xff]
  %v223 = vld [vmem:[%s0 + $0x620] sm:$0xff]
  %v224 = vld [vmem:[%s0 + $0x628] sm:$0xff]
  %v225 = vld [vmem:[%s0 + $0x630] sm:$0xff]
  %v226 = vld [vmem:[%s0 + $0x638] sm:$0xff]
  %v227 = vld [vmem:[%s0 + $0x640] sm:$0xff]
  %v228 = vld [vmem:[%s0 + $0x648] sm:$0xff]
  %v229 = vld [vmem:[%s0 + $0x650] sm:$0xff]
  %v230 = vld [vmem:[%s0 + $0x658] sm:$0xff]
  %v231 = vld [vmem:[%s0 + $0x660] sm:$0xff]
  %v232 = vld [vmem:[%s0 + $0x668] sm:$0xff]
  %v233 = vld [vmem:[%s0 + $0x670] sm:$0xff]
  %v234 = vld [vmem:[%s0 + $0x678] sm:$0xff]
  %v235 = vld [vmem:[%s0 + $0x680] sm:$0xff]
  %v236 = vld [vmem:[%s0 + $0x688] sm:$0xff]
  %v237 = vld [vmem:[%s0 + $0x690] sm:$0xff]
  %v238 = vld [vmem:[%s0 + $0x698] sm:$0xff]
  %v239 = vld [vmem:[%s0 + $0x6a0] sm:$0xff]
  %v240 = vld [vmem:[%s0 + $0x6a8] sm:$0xff]
  %v241 = vld [vmem:[%s0 + $0x6b0] sm:$0xff]
  %v242 = vld [vmem:[%s0 + $0x6b8] sm:$0xff]
  %v243 = vld [vmem:[%s0 + $0x6c0] sm:$0xff]
  %v244 = vld [vmem:[%s0 + $0x6c8] sm:$0xff]
  %v245 = vld [vmem:[%s0 + $0x6d0] sm:$0xff]
  %v246 = vld [vmem:[%s0 + $0x6d8] sm:$0xff]
  %v247 = vld [vmem:[%s0 + $0x6e0] sm:$0xff]
  %v248 = vld [vmem:[%s0 + $0x6e8] sm:$0xff]
  %v249 = vld [vmem:[%s0 + $0x6f0] sm:$0xff]
  %v250 = vld [vmem:[%s0 + $0x6f8] sm:$0xff]
  %v251 = vpack.c.bf16 %v34, %v27
  %v252 = vpack.c.bf16 %v35, %v28
  %v253 = vpack.c.bf16 %v36, %v29
  %v254 = vpack.c.bf16 %v37, %v30
  %v255 = vpack.c.bf16 %v38, %v31
  %v256 = vpack.c.bf16 %v39, %v32
  %v257 = vpack.c.bf16 %v40, %v33
  %v258 = vpack.c.bf16 %v48, %v41
  %v259 = vpack.c.bf16 %v49, %v42
  %v260 = vpack.c.bf16 %v50, %v43
  %v261 = vpack.c.bf16 %v51, %v44
  %v262 = vpack.c.bf16 %v52, %v45
  %v263 = vpack.c.bf16 %v53, %v46
  %v264 = vpack.c.bf16 %v54, %v47
  %v265 = vpack.c.bf16 %v62, %v55
  %v266 = vpack.c.bf16 %v63, %v56
  %v267 = vpack.c.bf16 %v64, %v57
  %v268 = vpack.c.bf16 %v65, %v58
  %v269 = vpack.c.bf16 %v66, %v59
  %v270 = vpack.c.bf16 %v67, %v60
  %v271 = vpack.c.bf16 %v68, %v61
  %v272 = vpack.c.bf16 %v76, %v69
  %v273 = vpack.c.bf16 %v77, %v70
  %v274 = vpack.c.bf16 %v78, %v71
  %v275 = vpack.c.bf16 %v79, %v72
  %v276 = vpack.c.bf16 %v80, %v73
  %v277 = vpack.c.bf16 %v81, %v74
  %v278 = vpack.c.bf16 %v82, %v75
  %v279 = vpack.c.bf16 %v90, %v83
  %v280 = vpack.c.bf16 %v91, %v84
  %v281 = vpack.c.bf16 %v92, %v85
  %v282 = vpack.c.bf16 %v93, %v86
  %v283 = vpack.c.bf16 %v94, %v87
  %v284 = vpack.c.bf16 %v95, %v88
  %v285 = vpack.c.bf16 %v96, %v89
  %v286 = vpack.c.bf16 %v104, %v97
  %v287 = vpack.c.bf16 %v105, %v98
  %v288 = vpack.c.bf16 %v106, %v99
  %v289 = vpack.c.bf16 %v107, %v100
  %v290 = vpack.c.bf16 %v108, %v101
  %v291 = vpack.c.bf16 %v109, %v102
  %v292 = vpack.c.bf16 %v110, %v103
  %v293 = vpack.c.bf16 %v118, %v111
  %v294 = vpack.c.bf16 %v119, %v112
  %v295 = vpack.c.bf16 %v120, %v113
  %v296 = vpack.c.bf16 %v121, %v114
  %v297 = vpack.c.bf16 %v122, %v115
  %v298 = vpack.c.bf16 %v123, %v116
  %v299 = vpack.c.bf16 %v124, %v117
  %v300 = vpack.c.bf16 %v132, %v125
  %v301 = vpack.c.bf16 %v133, %v126
  %v302 = vpack.c.bf16 %v134, %v127
  %v303 = vpack.c.bf16 %v135, %v128
  %v304 = vpack.c.bf16 %v136, %v129
  %v305 = vpack.c.bf16 %v137, %v130
  %v306 = vpack.c.bf16 %v138, %v131
  %v307 = vpack.c.bf16 %v146, %v139
  %v308 = vpack.c.bf16 %v147, %v140
  %v309 = vpack.c.bf16 %v148, %v141
  %v310 = vpack.c.bf16 %v149, %v142
  %v311 = vpack.c.bf16 %v150, %v143
  %v312 = vpack.c.bf16 %v151, %v144
  %v313 = vpack.c.bf16 %v152, %v145
  %v314 = vpack.c.bf16 %v160, %v153
  %v315 = vpack.c.bf16 %v161, %v154
  %v316 = vpack.c.bf16 %v162, %v155
  %v317 = vpack.c.bf16 %v163, %v156
  %v318 = vpack.c.bf16 %v164, %v157
  %v319 = vpack.c.bf16 %v165, %v158
  %v320 = vpack.c.bf16 %v166, %v159
  %v321 = vpack.c.bf16 %v174, %v167
  %v322 = vpack.c.bf16 %v175, %v168
  %v323 = vpack.c.bf16 %v176, %v169
  %v324 = vpack.c.bf16 %v177, %v170
  %v325 = vpack.c.bf16 %v178, %v171
  %v326 = vpack.c.bf16 %v179, %v172
  %v327 = vpack.c.bf16 %v180, %v173
  %v328 = vpack.c.bf16 %v188, %v181
  %v329 = vpack.c.bf16 %v189, %v182
  %v330 = vpack.c.bf16 %v190, %v183
  %v331 = vpack.c.bf16 %v191, %v184
  %v332 = vpack.c.bf16 %v192, %v185
  %v333 = vpack.c.bf16 %v193, %v186
  %v334 = vpack.c.bf16 %v194, %v187
  %v335 = vpack.c.bf16 %v202, %v195
  %v336 = vpack.c.bf16 %v203, %v196
  %v337 = vpack.c.bf16 %v204, %v197
  %v338 = vpack.c.bf16 %v205, %v198
  %v339 = vpack.c.bf16 %v206, %v199
  %v340 = vpack.c.bf16 %v207, %v200
  %v341 = vpack.c.bf16 %v208, %v201
  %v342 = vpack.c.bf16 %v216, %v209
  %v343 = vpack.c.bf16 %v217, %v210
  %v344 = vpack.c.bf16 %v218, %v211
  %v345 = vpack.c.bf16 %v219, %v212
  %v346 = vpack.c.bf16 %v220, %v213
  %v347 = vpack.c.bf16 %v221, %v214
  %v348 = vpack.c.bf16 %v222, %v215
  %v349 = vpack.c.bf16 %v230, %v223
  %v350 = vpack.c.bf16 %v231, %v224
  %v351 = vpack.c.bf16 %v232, %v225
  %v352 = vpack.c.bf16 %v233, %v226
  %v353 = vpack.c.bf16 %v234, %v227
  %v354 = vpack.c.bf16 %v235, %v228
  %v355 = vpack.c.bf16 %v236, %v229
  %v356 = vpack.c.bf16 %v244, %v237
  %v357 = vpack.c.bf16 %v245, %v238
  %v358 = vpack.c.bf16 %v246, %v239
  %v359 = vpack.c.bf16 %v247, %v240
  %v360 = vpack.c.bf16 %v248, %v241
  %v361 = vpack.c.bf16 %v249, %v242
  %v362 = vpack.c.bf16 %v250, %v243
  %v363 = vld [vmem:[%s1] sm:$0xff]
  %v364 = vld [vmem:[%s1 + $0x8] sm:$0xff]
  %v365 = vld [vmem:[%s1 + $0x10] sm:$0xff]
  %v366 = vld [vmem:[%s1 + $0x18] sm:$0xff]
  %v367 = vld [vmem:[%s1 + $0x20] sm:$0xff]
  %v368 = vld [vmem:[%s1 + $0x28] sm:$0xff]
  %v369 = vld [vmem:[%s1 + $0x30] sm:$0xff]
  %v370 = vld [vmem:[%s1 + $0x38] sm:$0xff]
  %v371 = vld [vmem:[%s1 + $0x40] sm:$0xff]
  %v372 = vld [vmem:[%s1 + $0x48] sm:$0xff]
  %v373 = vld [vmem:[%s1 + $0x50] sm:$0xff]
  %v374 = vld [vmem:[%s1 + $0x58] sm:$0xff]
  %v375 = vld [vmem:[%s1 + $0x60] sm:$0xff]
  %v376 = vld [vmem:[%s1 + $0x68] sm:$0xff]
  %v377 = vld [vmem:[%s1 + $0x70] sm:$0xff]
  %v378 = vld [vmem:[%s1 + $0x78] sm:$0xff]
  %v379 = vld [vmem:[%s1 + $0x80] sm:$0xff]
  %v380 = vld [vmem:[%s1 + $0x88] sm:$0xff]
  %v381 = vld [vmem:[%s1 + $0x90] sm:$0xff]
  %v382 = vld [vmem:[%s1 + $0x98] sm:$0xff]
  %v383 = vld [vmem:[%s1 + $0xa0] sm:$0xff]
  %v384 = vld [vmem:[%s1 + $0xa8] sm:$0xff]
  %v385 = vld [vmem:[%s1 + $0xb0] sm:$0xff]
  %v386 = vld [vmem:[%s1 + $0xb8] sm:$0xff]
  %v387 = vld [vmem:[%s1 + $0xc0] sm:$0xff]
  %v388 = vld [vmem:[%s1 + $0xc8] sm:$0xff]
  %v389 = vld [vmem:[%s1 + $0xd0] sm:$0xff]
  %v390 = vld [vmem:[%s1 + $0xd8] sm:$0xff]
  %v391 = vld [vmem:[%s1 + $0xe0] sm:$0xff]
  %v392 = vld [vmem:[%s1 + $0xe8] sm:$0xff]
  %v393 = vld [vmem:[%s1 + $0xf0] sm:$0xff]
  %v394 = vld [vmem:[%s1 + $0xf8] sm:$0xff]
  %v395 = vld [vmem:[%s1 + $0x100] sm:$0xff]
  %v396 = vld [vmem:[%s1 + $0x108] sm:$0xff]
  %v397 = vld [vmem:[%s1 + $0x110] sm:$0xff]
  %v398 = vld [vmem:[%s1 + $0x118] sm:$0xff]
  %v399 = vld [vmem:[%s1 + $0x120] sm:$0xff]
  %v400 = vld [vmem:[%s1 + $0x128] sm:$0xff]
  %v401 = vld [vmem:[%s1 + $0x130] sm:$0xff]
  %v402 = vld [vmem:[%s1 + $0x138] sm:$0xff]
  %v403 = vld [vmem:[%s1 + $0x140] sm:$0xff]
  %v404 = vld [vmem:[%s1 + $0x148] sm:$0xff]
  %v405 = vld [vmem:[%s1 + $0x150] sm:$0xff]
  %v406 = vld [vmem:[%s1 + $0x158] sm:$0xff]
  %v407 = vld [vmem:[%s1 + $0x160] sm:$0xff]
  %v408 = vld [vmem:[%s1 + $0x168] sm:$0xff]
  %v409 = vld [vmem:[%s1 + $0x170] sm:$0xff]
  %v410 = vld [vmem:[%s1 + $0x178] sm:$0xff]
  %v411 = vld [vmem:[%s1 + $0x180] sm:$0xff]
  %v412 = vld [vmem:[%s1 + $0x188] sm:$0xff]
  %v413 = vld [vmem:[%s1 + $0x190] sm:$0xff]
  %v414 = vld [vmem:[%s1 + $0x198] sm:$0xff]
  %v415 = vld [vmem:[%s1 + $0x1a0] sm:$0xff]
  %v416 = vld [vmem:[%s1 + $0x1a8] sm:$0xff]
  %v417 = vld [vmem:[%s1 + $0x1b0] sm:$0xff]
  %v418 = vld [vmem:[%s1 + $0x1b8] sm:$0xff]
  %v419 = vld [vmem:[%s1 + $0x1c0] sm:$0xff]
  %v420 = vld [vmem:[%s1 + $0x1c8] sm:$0xff]
  %v421 = vld [vmem:[%s1 + $0x1d0] sm:$0xff]
  %v422 = vld [vmem:[%s1 + $0x1d8] sm:$0xff]
  %v423 = vld [vmem:[%s1 + $0x1e0] sm:$0xff]
  %v424 = vld [vmem:[%s1 + $0x1e8] sm:$0xff]
  %v425 = vld [vmem:[%s1 + $0x1f0] sm:$0xff]
  %v426 = vld [vmem:[%s1 + $0x1f8] sm:$0xff]
  %v427 = vld [vmem:[%s1 + $0x200] sm:$0xff]
  %v428 = vld [vmem:[%s1 + $0x208] sm:$0xff]
  %v429 = vld [vmem:[%s1 + $0x210] sm:$0xff]
  %v430 = vld [vmem:[%s1 + $0x218] sm:$0xff]
  %v431 = vld [vmem:[%s1 + $0x220] sm:$0xff]
  %v432 = vld [vmem:[%s1 + $0x228] sm:$0xff]
  %v433 = vld [vmem:[%s1 + $0x230] sm:$0xff]
  %v434 = vld [vmem:[%s1 + $0x238] sm:$0xff]
  %v435 = vld [vmem:[%s1 + $0x240] sm:$0xff]
  %v436 = vld [vmem:[%s1 + $0x248] sm:$0xff]
  %v437 = vld [vmem:[%s1 + $0x250] sm:$0xff]
  %v438 = vld [vmem:[%s1 + $0x258] sm:$0xff]
  %v439 = vld [vmem:[%s1 + $0x260] sm:$0xff]
  %v440 = vld [vmem:[%s1 + $0x268] sm:$0xff]
  %v441 = vld [vmem:[%s1 + $0x270] sm:$0xff]
  %v442 = vld [vmem:[%s1 + $0x278] sm:$0xff]
  %v443 = vld [vmem:[%s1 + $0x280] sm:$0xff]
  %v444 = vld [vmem:[%s1 + $0x288] sm:$0xff]
  %v445 = vld [vmem:[%s1 + $0x290] sm:$0xff]
  %v446 = vld [vmem:[%s1 + $0x298] sm:$0xff]
  %v447 = vld [vmem:[%s1 + $0x2a0] sm:$0xff]
  %v448 = vld [vmem:[%s1 + $0x2a8] sm:$0xff]
  %v449 = vld [vmem:[%s1 + $0x2b0] sm:$0xff]
  %v450 = vld [vmem:[%s1 + $0x2b8] sm:$0xff]
  %v451 = vld [vmem:[%s1 + $0x2c0] sm:$0xff]
  %v452 = vld [vmem:[%s1 + $0x2c8] sm:$0xff]
  %v453 = vld [vmem:[%s1 + $0x2d0] sm:$0xff]
  %v454 = vld [vmem:[%s1 + $0x2d8] sm:$0xff]
  %v455 = vld [vmem:[%s1 + $0x2e0] sm:$0xff]
  %v456 = vld [vmem:[%s1 + $0x2e8] sm:$0xff]
  %v457 = vld [vmem:[%s1 + $0x2f0] sm:$0xff]
  %v458 = vld [vmem:[%s1 + $0x2f8] sm:$0xff]
  %v459 = vld [vmem:[%s1 + $0x300] sm:$0xff]
  %v460 = vld [vmem:[%s1 + $0x308] sm:$0xff]
  %v461 = vld [vmem:[%s1 + $0x310] sm:$0xff]
  %v462 = vld [vmem:[%s1 + $0x318] sm:$0xff]
  %v463 = vld [vmem:[%s1 + $0x320] sm:$0xff]
  %v464 = vld [vmem:[%s1 + $0x328] sm:$0xff]
  %v465 = vld [vmem:[%s1 + $0x330] sm:$0xff]
  %v466 = vld [vmem:[%s1 + $0x338] sm:$0xff]
  %v467 = vld [vmem:[%s1 + $0x340] sm:$0xff]
  %v468 = vld [vmem:[%s1 + $0x348] sm:$0xff]
  %v469 = vld [vmem:[%s1 + $0x350] sm:$0xff]
  %v470 = vld [vmem:[%s1 + $0x358] sm:$0xff]
  %v471 = vld [vmem:[%s1 + $0x360] sm:$0xff]
  %v472 = vld [vmem:[%s1 + $0x368] sm:$0xff]
  %v473 = vld [vmem:[%s1 + $0x370] sm:$0xff]
  %v474 = vld [vmem:[%s1 + $0x378] sm:$0xff]
  %v475 = vld [vmem:[%s1 + $0x380] sm:$0xff]
  %v476 = vld [vmem:[%s1 + $0x388] sm:$0xff]
  %v477 = vld [vmem:[%s1 + $0x390] sm:$0xff]
  %v478 = vld [vmem:[%s1 + $0x398] sm:$0xff]
  %v479 = vld [vmem:[%s1 + $0x3a0] sm:$0xff]
  %v480 = vld [vmem:[%s1 + $0x3a8] sm:$0xff]
  %v481 = vld [vmem:[%s1 + $0x3b0] sm:$0xff]
  %v482 = vld [vmem:[%s1 + $0x3b8] sm:$0xff]
  %v483 = vld [vmem:[%s1 + $0x3c0] sm:$0xff]
  %v484 = vld [vmem:[%s1 + $0x3c8] sm:$0xff]
  %v485 = vld [vmem:[%s1 + $0x3d0] sm:$0xff]
  %v486 = vld [vmem:[%s1 + $0x3d8] sm:$0xff]
  %v487 = vld [vmem:[%s1 + $0x3e0] sm:$0xff]
  %v488 = vld [vmem:[%s1 + $0x3e8] sm:$0xff]
  %v489 = vld [vmem:[%s1 + $0x3f0] sm:$0xff]
  %v490 = vld [vmem:[%s1 + $0x3f8] sm:$0xff]
  %v491 = vld [vmem:[%s1 + $0x400] sm:$0xff]
  %v492 = vld [vmem:[%s1 + $0x408] sm:$0xff]
  %v493 = vld [vmem:[%s1 + $0x410] sm:$0xff]
  %v494 = vld [vmem:[%s1 + $0x418] sm:$0xff]
  %v495 = vld [vmem:[%s1 + $0x420] sm:$0xff]
  %v496 = vld [vmem:[%s1 + $0x428] sm:$0xff]
  %v497 = vld [vmem:[%s1 + $0x430] sm:$0xff]
  %v498 = vld [vmem:[%s1 + $0x438] sm:$0xff]
  %v499 = vld [vmem:[%s1 + $0x440] sm:$0xff]
  %v500 = vld [vmem:[%s1 + $0x448] sm:$0xff]
  %v501 = vld [vmem:[%s1 + $0x450] sm:$0xff]
  %v502 = vld [vmem:[%s1 + $0x458] sm:$0xff]
  %v503 = vld [vmem:[%s1 + $0x460] sm:$0xff]
  %v504 = vld [vmem:[%s1 + $0x468] sm:$0xff]
  %v505 = vld [vmem:[%s1 + $0x470] sm:$0xff]
  %v506 = vld [vmem:[%s1 + $0x478] sm:$0xff]
  %v507 = vld [vmem:[%s1 + $0x480] sm:$0xff]
  %v508 = vld [vmem:[%s1 + $0x488] sm:$0xff]
  %v509 = vld [vmem:[%s1 + $0x490] sm:$0xff]
  %v510 = vld [vmem:[%s1 + $0x498] sm:$0xff]
  %v511 = vld [vmem:[%s1 + $0x4a0] sm:$0xff]
  %v512 = vld [vmem:[%s1 + $0x4a8] sm:$0xff]
  %v513 = vld [vmem:[%s1 + $0x4b0] sm:$0xff]
  %v514 = vld [vmem:[%s1 + $0x4b8] sm:$0xff]
  %v515 = vld [vmem:[%s1 + $0x4c0] sm:$0xff]
  %v516 = vld [vmem:[%s1 + $0x4c8] sm:$0xff]
  %v517 = vld [vmem:[%s1 + $0x4d0] sm:$0xff]
  %v518 = vld [vmem:[%s1 + $0x4d8] sm:$0xff]
  %v519 = vld [vmem:[%s1 + $0x4e0] sm:$0xff]
  %v520 = vld [vmem:[%s1 + $0x4e8] sm:$0xff]
  %v521 = vld [vmem:[%s1 + $0x4f0] sm:$0xff]
  %v522 = vld [vmem:[%s1 + $0x4f8] sm:$0xff]
  %v523 = vld [vmem:[%s1 + $0x500] sm:$0xff]
  %v524 = vld [vmem:[%s1 + $0x508] sm:$0xff]
  %v525 = vld [vmem:[%s1 + $0x510] sm:$0xff]
  %v526 = vld [vmem:[%s1 + $0x518] sm:$0xff]
  %v527 = vld [vmem:[%s1 + $0x520] sm:$0xff]
  %v528 = vld [vmem:[%s1 + $0x528] sm:$0xff]
  %v529 = vld [vmem:[%s1 + $0x530] sm:$0xff]
  %v530 = vld [vmem:[%s1 + $0x538] sm:$0xff]
  %v531 = vld [vmem:[%s1 + $0x540] sm:$0xff]
  %v532 = vld [vmem:[%s1 + $0x548] sm:$0xff]
  %v533 = vld [vmem:[%s1 + $0x550] sm:$0xff]
  %v534 = vld [vmem:[%s1 + $0x558] sm:$0xff]
  %v535 = vld [vmem:[%s1 + $0x560] sm:$0xff]
  %v536 = vld [vmem:[%s1 + $0x568] sm:$0xff]
  %v537 = vld [vmem:[%s1 + $0x570] sm:$0xff]
  %v538 = vld [vmem:[%s1 + $0x578] sm:$0xff]
  %v539 = vld [vmem:[%s1 + $0x580] sm:$0xff]
  %v540 = vld [vmem:[%s1 + $0x588] sm:$0xff]
  %v541 = vld [vmem:[%s1 + $0x590] sm:$0xff]
  %v542 = vld [vmem:[%s1 + $0x598] sm:$0xff]
  %v543 = vld [vmem:[%s1 + $0x5a0] sm:$0xff]
  %v544 = vld [vmem:[%s1 + $0x5a8] sm:$0xff]
  %v545 = vld [vmem:[%s1 + $0x5b0] sm:$0xff]
  %v546 = vld [vmem:[%s1 + $0x5b8] sm:$0xff]
  %v547 = vld [vmem:[%s1 + $0x5c0] sm:$0xff]
  %v548 = vld [vmem:[%s1 + $0x5c8] sm:$0xff]
  %v549 = vld [vmem:[%s1 + $0x5d0] sm:$0xff]
  %v550 = vld [vmem:[%s1 + $0x5d8] sm:$0xff]
  %v551 = vld [vmem:[%s1 + $0x5e0] sm:$0xff]
  %v552 = vld [vmem:[%s1 + $0x5e8] sm:$0xff]
  %v553 = vld [vmem:[%s1 + $0x5f0] sm:$0xff]
  %v554 = vld [vmem:[%s1 + $0x5f8] sm:$0xff]
  %v555 = vld [vmem:[%s1 + $0x600] sm:$0xff]
  %v556 = vld [vmem:[%s1 + $0x608] sm:$0xff]
  %v557 = vld [vmem:[%s1 + $0x610] sm:$0xff]
  %v558 = vld [vmem:[%s1 + $0x618] sm:$0xff]
  %v559 = vld [vmem:[%s2] sm:$0xf]
  %v561 = vlaneseq
  %v562 = vshrl.u32 %v561, 7
  %v563 = vsub.s32 0, %v562
  %v564 = vrot.slane %v559, %v563
  %v565 = vlaneseq
  %v566 = vshrl.u32 %v565, 7
  %v567 = vsub.s32 1, %v566
  %v568 = vrot.slane %v559, %v567
  %v569 = vlaneseq
  %v570 = vshrl.u32 %v569, 7
  %v571 = vsub.s32 2, %v570
  %v572 = vrot.slane %v559, %v571
  %v573 = vlaneseq
  %v574 = vshrl.u32 %v573, 7
  %v575 = vsub.s32 3, %v574
  %v576 = vrot.slane %v559, %v575
  %v777 = vunpack.c.l.b16 %v363
  %v778 = vunpack.c.h.b16 %v363
  %v779 = vunpack.c.l.b16 %v364
  %v780 = vunpack.c.h.b16 %v364
  %v781 = vunpack.c.l.b16 %v365
  %v782 = vunpack.c.h.b16 %v365
  %v783 = vunpack.c.l.b16 %v366
  %v784 = vunpack.c.h.b16 %v366
  %v785 = vunpack.c.l.b16 %v367
  %v786 = vunpack.c.h.b16 %v367
  %v787 = vunpack.c.l.b16 %v368
  %v788 = vunpack.c.h.b16 %v368
  %v789 = vunpack.c.l.b16 %v369
  %v790 = vunpack.c.h.b16 %v369
  %v791 = vunpack.c.l.b16 %v370
  %v792 = vunpack.c.h.b16 %v370
  %v793 = vunpack.c.l.b16 %v371
  %v794 = vunpack.c.h.b16 %v371
  %v795 = vunpack.c.l.b16 %v372
  %v796 = vunpack.c.h.b16 %v372
  %v797 = vunpack.c.l.b16 %v373
  %v798 = vunpack.c.h.b16 %v373
  %v799 = vunpack.c.l.b16 %v374
  %v800 = vunpack.c.h.b16 %v374
  %v801 = vunpack.c.l.b16 %v375
  %v802 = vunpack.c.h.b16 %v375
  %v803 = vunpack.c.l.b16 %v376
  %v804 = vunpack.c.h.b16 %v376
  %v805 = vunpack.c.l.b16 %v377
  %v806 = vunpack.c.h.b16 %v377
  %v807 = vunpack.c.l.b16 %v378
  %v808 = vunpack.c.h.b16 %v378
  %v809 = vunpack.c.l.b16 %v379
  %v810 = vunpack.c.h.b16 %v379
  %v811 = vunpack.c.l.b16 %v380
  %v812 = vunpack.c.h.b16 %v380
  %v813 = vunpack.c.l.b16 %v381
  %v814 = vunpack.c.h.b16 %v381
  %v815 = vunpack.c.l.b16 %v382
  %v816 = vunpack.c.h.b16 %v382
  %v817 = vunpack.c.l.b16 %v383
  %v818 = vunpack.c.h.b16 %v383
  %v819 = vunpack.c.l.b16 %v384
  %v820 = vunpack.c.h.b16 %v384
  %v821 = vunpack.c.l.b16 %v385
  %v822 = vunpack.c.h.b16 %v385
  %v823 = vunpack.c.l.b16 %v386
  %v824 = vunpack.c.h.b16 %v386
  %v825 = vunpack.c.l.b16 %v387
  %v826 = vunpack.c.h.b16 %v387
  %v827 = vunpack.c.l.b16 %v388
  %v828 = vunpack.c.h.b16 %v388
  %v829 = vunpack.c.l.b16 %v389
  %v830 = vunpack.c.h.b16 %v389
  %v831 = vunpack.c.l.b16 %v390
  %v832 = vunpack.c.h.b16 %v390
  %v833 = vunpack.c.l.b16 %v391
  %v834 = vunpack.c.h.b16 %v391
  %v835 = vunpack.c.l.b16 %v392
  %v836 = vunpack.c.h.b16 %v392
  %v837 = vunpack.c.l.b16 %v393
  %v838 = vunpack.c.h.b16 %v393
  %v839 = vunpack.c.l.b16 %v394
  %v840 = vunpack.c.h.b16 %v394
  %v841 = vunpack.c.l.b16 %v395
  %v842 = vunpack.c.h.b16 %v395
  %v843 = vunpack.c.l.b16 %v396
  %v844 = vunpack.c.h.b16 %v396
  %v845 = vunpack.c.l.b16 %v397
  %v846 = vunpack.c.h.b16 %v397
  %v847 = vunpack.c.l.b16 %v398
  %v848 = vunpack.c.h.b16 %v398
  %v849 = vunpack.c.l.b16 %v399
  %v850 = vunpack.c.h.b16 %v399
  %v851 = vunpack.c.l.b16 %v400
  %v852 = vunpack.c.h.b16 %v400
  %v853 = vunpack.c.l.b16 %v401
  %v854 = vunpack.c.h.b16 %v401
  %v855 = vunpack.c.l.b16 %v402
  %v856 = vunpack.c.h.b16 %v402
  %v857 = vunpack.c.l.b16 %v403
  %v858 = vunpack.c.h.b16 %v403
  %v859 = vunpack.c.l.b16 %v404
  %v860 = vunpack.c.h.b16 %v404
  %v861 = vunpack.c.l.b16 %v405
  %v862 = vunpack.c.h.b16 %v405
  %v863 = vunpack.c.l.b16 %v406
  %v864 = vunpack.c.h.b16 %v406
  %v865 = vunpack.c.l.b16 %v407
  %v866 = vunpack.c.h.b16 %v407
  %v867 = vunpack.c.l.b16 %v408
  %v868 = vunpack.c.h.b16 %v408
  %v869 = vunpack.c.l.b16 %v409
  %v870 = vunpack.c.h.b16 %v409
  %v871 = vunpack.c.l.b16 %v410
  %v872 = vunpack.c.h.b16 %v410
  %v873 = vunpack.c.l.b16 %v411
  %v874 = vunpack.c.h.b16 %v411
  %v875 = vunpack.c.l.b16 %v412
  %v876 = vunpack.c.h.b16 %v412
  %v877 = vunpack.c.l.b16 %v413
  %v878 = vunpack.c.h.b16 %v413
  %v879 = vunpack.c.l.b16 %v414
  %v880 = vunpack.c.h.b16 %v414
  %v881 = vunpack.c.l.b16 %v415
  %v882 = vunpack.c.h.b16 %v415
  %v883 = vunpack.c.l.b16 %v416
  %v884 = vunpack.c.h.b16 %v416
  %v885 = vunpack.c.l.b16 %v417
  %v886 = vunpack.c.h.b16 %v417
  %v887 = vunpack.c.l.b16 %v418
  %v888 = vunpack.c.h.b16 %v418
  %v889 = vunpack.c.l.b16 %v419
  %v890 = vunpack.c.h.b16 %v419
  %v891 = vunpack.c.l.b16 %v420
  %v892 = vunpack.c.h.b16 %v420
  %v893 = vunpack.c.l.b16 %v421
  %v894 = vunpack.c.h.b16 %v421
  %v895 = vunpack.c.l.b16 %v422
  %v896 = vunpack.c.h.b16 %v422
  %v897 = vunpack.c.l.b16 %v423
  %v898 = vunpack.c.h.b16 %v423
  %v899 = vunpack.c.l.b16 %v424
  %v900 = vunpack.c.h.b16 %v424
  %v901 = vunpack.c.l.b16 %v425
  %v902 = vunpack.c.h.b16 %v425
  %v903 = vunpack.c.l.b16 %v426
  %v904 = vunpack.c.h.b16 %v426
  %v905 = vunpack.c.l.b16 %v427
  %v906 = vunpack.c.h.b16 %v427
  %v907 = vunpack.c.l.b16 %v428
  %v908 = vunpack.c.h.b16 %v428
  %v909 = vunpack.c.l.b16 %v429
  %v910 = vunpack.c.h.b16 %v429
  %v911 = vunpack.c.l.b16 %v430
  %v912 = vunpack.c.h.b16 %v430
  %v913 = vunpack.c.l.b16 %v431
  %v914 = vunpack.c.h.b16 %v431
  %v915 = vunpack.c.l.b16 %v432
  %v916 = vunpack.c.h.b16 %v432
  %v917 = vunpack.c.l.b16 %v433
  %v918 = vunpack.c.h.b16 %v433
  %v919 = vunpack.c.l.b16 %v434
  %v920 = vunpack.c.h.b16 %v434
  %v921 = vunpack.c.l.b16 %v435
  %v922 = vunpack.c.h.b16 %v435
  %v923 = vunpack.c.l.b16 %v436
  %v924 = vunpack.c.h.b16 %v436
  %v925 = vunpack.c.l.b16 %v437
  %v926 = vunpack.c.h.b16 %v437
  %v927 = vunpack.c.l.b16 %v438
  %v928 = vunpack.c.h.b16 %v438
  %v929 = vunpack.c.l.b16 %v439
  %v930 = vunpack.c.h.b16 %v439
  %v931 = vunpack.c.l.b16 %v440
  %v932 = vunpack.c.h.b16 %v440
  %v933 = vunpack.c.l.b16 %v441
  %v934 = vunpack.c.h.b16 %v441
  %v935 = vunpack.c.l.b16 %v442
  %v936 = vunpack.c.h.b16 %v442
  %v937 = vunpack.c.l.b16 %v443
  %v938 = vunpack.c.h.b16 %v443
  %v939 = vunpack.c.l.b16 %v444
  %v940 = vunpack.c.h.b16 %v444
  %v941 = vunpack.c.l.b16 %v445
  %v942 = vunpack.c.h.b16 %v445
  %v943 = vunpack.c.l.b16 %v446
  %v944 = vunpack.c.h.b16 %v446
  %v945 = vunpack.c.l.b16 %v447
  %v946 = vunpack.c.h.b16 %v447
  %v947 = vunpack.c.l.b16 %v448
  %v948 = vunpack.c.h.b16 %v448
  %v949 = vunpack.c.l.b16 %v449
  %v950 = vunpack.c.h.b16 %v449
  %v951 = vunpack.c.l.b16 %v450
  %v952 = vunpack.c.h.b16 %v450
  %v953 = vunpack.c.l.b16 %v451
  %v954 = vunpack.c.h.b16 %v451
  %v955 = vunpack.c.l.b16 %v452
  %v956 = vunpack.c.h.b16 %v452
  %v957 = vunpack.c.l.b16 %v453
  %v958 = vunpack.c.h.b16 %v453
  %v959 = vunpack.c.l.b16 %v454
  %v960 = vunpack.c.h.b16 %v454
  %v961 = vunpack.c.l.b16 %v455
  %v962 = vunpack.c.h.b16 %v455
  %v963 = vunpack.c.l.b16 %v456
  %v964 = vunpack.c.h.b16 %v456
  %v965 = vunpack.c.l.b16 %v457
  %v966 = vunpack.c.h.b16 %v457
  %v967 = vunpack.c.l.b16 %v458
  %v968 = vunpack.c.h.b16 %v458
  %v969 = vunpack.c.l.b16 %v459
  %v970 = vunpack.c.h.b16 %v459
  %v971 = vunpack.c.l.b16 %v460
  %v972 = vunpack.c.h.b16 %v460
  %v973 = vunpack.c.l.b16 %v461
  %v974 = vunpack.c.h.b16 %v461
  %v975 = vunpack.c.l.b16 %v462
  %v976 = vunpack.c.h.b16 %v462
  %v977 = vunpack.c.l.b16 %v463
  %v978 = vunpack.c.h.b16 %v463
  %v979 = vunpack.c.l.b16 %v464
  %v980 = vunpack.c.h.b16 %v464
  %v981 = vunpack.c.l.b16 %v465
  %v982 = vunpack.c.h.b16 %v465
  %v983 = vunpack.c.l.b16 %v466
  %v984 = vunpack.c.h.b16 %v466
  %v985 = vunpack.c.l.b16 %v467
  %v986 = vunpack.c.h.b16 %v467
  %v987 = vunpack.c.l.b16 %v468
  %v988 = vunpack.c.h.b16 %v468
  %v989 = vunpack.c.l.b16 %v469
  %v990 = vunpack.c.h.b16 %v469
  %v991 = vunpack.c.l.b16 %v470
  %v992 = vunpack.c.h.b16 %v470
  %v993 = vunpack.c.l.b16 %v471
  %v994 = vunpack.c.h.b16 %v471
  %v995 = vunpack.c.l.b16 %v472
  %v996 = vunpack.c.h.b16 %v472
  %v997 = vunpack.c.l.b16 %v473
  %v998 = vunpack.c.h.b16 %v473
  %v999 = vunpack.c.l.b16 %v474
  %v1000 = vunpack.c.h.b16 %v474
  %v1001 = vunpack.c.l.b16 %v475
  %v1002 = vunpack.c.h.b16 %v475
  %v1003 = vunpack.c.l.b16 %v476
  %v1004 = vunpack.c.h.b16 %v476
  %v1005 = vunpack.c.l.b16 %v477
  %v1006 = vunpack.c.h.b16 %v477
  %v1007 = vunpack.c.l.b16 %v478
  %v1008 = vunpack.c.h.b16 %v478
  %v1009 = vunpack.c.l.b16 %v479
  %v1010 = vunpack.c.h.b16 %v479
  %v1011 = vunpack.c.l.b16 %v480
  %v1012 = vunpack.c.h.b16 %v480
  %v1013 = vunpack.c.l.b16 %v481
  %v1014 = vunpack.c.h.b16 %v481
  %v1015 = vunpack.c.l.b16 %v482
  %v1016 = vunpack.c.h.b16 %v482
  %v1017 = vunpack.c.l.b16 %v483
  %v1018 = vunpack.c.h.b16 %v483
  %v1019 = vunpack.c.l.b16 %v484
  %v1020 = vunpack.c.h.b16 %v484
  %v1021 = vunpack.c.l.b16 %v485
  %v1022 = vunpack.c.h.b16 %v485
  %v1023 = vunpack.c.l.b16 %v486
  %v1024 = vunpack.c.h.b16 %v486
  %v1025 = vunpack.c.l.b16 %v487
  %v1026 = vunpack.c.h.b16 %v487
  %v1027 = vunpack.c.l.b16 %v488
  %v1028 = vunpack.c.h.b16 %v488
  %v1029 = vunpack.c.l.b16 %v489
  %v1030 = vunpack.c.h.b16 %v489
  %v1031 = vunpack.c.l.b16 %v490
  %v1032 = vunpack.c.h.b16 %v490
  %v1033 = vunpack.c.l.b16 %v491
  %v1034 = vunpack.c.h.b16 %v491
  %v1035 = vunpack.c.l.b16 %v492
  %v1036 = vunpack.c.h.b16 %v492
  %v1037 = vunpack.c.l.b16 %v493
  %v1038 = vunpack.c.h.b16 %v493
  %v1039 = vunpack.c.l.b16 %v494
  %v1040 = vunpack.c.h.b16 %v494
  %v1041 = vunpack.c.l.b16 %v495
  %v1042 = vunpack.c.h.b16 %v495
  %v1043 = vunpack.c.l.b16 %v496
  %v1044 = vunpack.c.h.b16 %v496
  %v1045 = vunpack.c.l.b16 %v497
  %v1046 = vunpack.c.h.b16 %v497
  %v1047 = vunpack.c.l.b16 %v498
  %v1048 = vunpack.c.h.b16 %v498
  %v1049 = vunpack.c.l.b16 %v499
  %v1050 = vunpack.c.h.b16 %v499
  %v1051 = vunpack.c.l.b16 %v500
  %v1052 = vunpack.c.h.b16 %v500
  %v1053 = vunpack.c.l.b16 %v501
  %v1054 = vunpack.c.h.b16 %v501
  %v1055 = vunpack.c.l.b16 %v502
  %v1056 = vunpack.c.h.b16 %v502
  %v1057 = vunpack.c.l.b16 %v503
  %v1058 = vunpack.c.h.b16 %v503
  %v1059 = vunpack.c.l.b16 %v504
  %v1060 = vunpack.c.h.b16 %v504
  %v1061 = vunpack.c.l.b16 %v505
  %v1062 = vunpack.c.h.b16 %v505
  %v1063 = vunpack.c.l.b16 %v506
  %v1064 = vunpack.c.h.b16 %v506
  %v1065 = vunpack.c.l.b16 %v507
  %v1066 = vunpack.c.h.b16 %v507
  %v1067 = vunpack.c.l.b16 %v508
  %v1068 = vunpack.c.h.b16 %v508
  %v1069 = vunpack.c.l.b16 %v509
  %v1070 = vunpack.c.h.b16 %v509
  %v1071 = vunpack.c.l.b16 %v510
  %v1072 = vunpack.c.h.b16 %v510
  %v1073 = vunpack.c.l.b16 %v511
  %v1074 = vunpack.c.h.b16 %v511
  %v1075 = vunpack.c.l.b16 %v512
  %v1076 = vunpack.c.h.b16 %v512
  %v1077 = vunpack.c.l.b16 %v513
  %v1078 = vunpack.c.h.b16 %v513
  %v1079 = vunpack.c.l.b16 %v514
  %v1080 = vunpack.c.h.b16 %v514
  %v1081 = vunpack.c.l.b16 %v515
  %v1082 = vunpack.c.h.b16 %v515
  %v1083 = vunpack.c.l.b16 %v516
  %v1084 = vunpack.c.h.b16 %v516
  %v1085 = vunpack.c.l.b16 %v517
  %v1086 = vunpack.c.h.b16 %v517
  %v1087 = vunpack.c.l.b16 %v518
  %v1088 = vunpack.c.h.b16 %v518
  %v1089 = vunpack.c.l.b16 %v519
  %v1090 = vunpack.c.h.b16 %v519
  %v1091 = vunpack.c.l.b16 %v520
  %v1092 = vunpack.c.h.b16 %v520
  %v1093 = vunpack.c.l.b16 %v521
  %v1094 = vunpack.c.h.b16 %v521
  %v1095 = vunpack.c.l.b16 %v522
  %v1096 = vunpack.c.h.b16 %v522
  %v1097 = vunpack.c.l.b16 %v523
  %v1098 = vunpack.c.h.b16 %v523
  %v1099 = vunpack.c.l.b16 %v524
  %v1100 = vunpack.c.h.b16 %v524
  %v1101 = vunpack.c.l.b16 %v525
  %v1102 = vunpack.c.h.b16 %v525
  %v1103 = vunpack.c.l.b16 %v526
  %v1104 = vunpack.c.h.b16 %v526
  %v1105 = vunpack.c.l.b16 %v527
  %v1106 = vunpack.c.h.b16 %v527
  %v1107 = vunpack.c.l.b16 %v528
  %v1108 = vunpack.c.h.b16 %v528
  %v1109 = vunpack.c.l.b16 %v529
  %v1110 = vunpack.c.h.b16 %v529
  %v1111 = vunpack.c.l.b16 %v530
  %v1112 = vunpack.c.h.b16 %v530
  %v1113 = vunpack.c.l.b16 %v531
  %v1114 = vunpack.c.h.b16 %v531
  %v1115 = vunpack.c.l.b16 %v532
  %v1116 = vunpack.c.h.b16 %v532
  %v1117 = vunpack.c.l.b16 %v533
  %v1118 = vunpack.c.h.b16 %v533
  %v1119 = vunpack.c.l.b16 %v534
  %v1120 = vunpack.c.h.b16 %v534
  %v1121 = vunpack.c.l.b16 %v535
  %v1122 = vunpack.c.h.b16 %v535
  %v1123 = vunpack.c.l.b16 %v536
  %v1124 = vunpack.c.h.b16 %v536
  %v1125 = vunpack.c.l.b16 %v537
  %v1126 = vunpack.c.h.b16 %v537
  %v1127 = vunpack.c.l.b16 %v538
  %v1128 = vunpack.c.h.b16 %v538
  %v1129 = vunpack.c.l.b16 %v539
  %v1130 = vunpack.c.h.b16 %v539
  %v1131 = vunpack.c.l.b16 %v540
  %v1132 = vunpack.c.h.b16 %v540
  %v1133 = vunpack.c.l.b16 %v541
  %v1134 = vunpack.c.h.b16 %v541
  %v1135 = vunpack.c.l.b16 %v542
  %v1136 = vunpack.c.h.b16 %v542
  %v1137 = vunpack.c.l.b16 %v543
  %v1138 = vunpack.c.h.b16 %v543
  %v1139 = vunpack.c.l.b16 %v544
  %v1140 = vunpack.c.h.b16 %v544
  %v1141 = vunpack.c.l.b16 %v545
  %v1142 = vunpack.c.h.b16 %v545
  %v1143 = vunpack.c.l.b16 %v546
  %v1144 = vunpack.c.h.b16 %v546
  %v1145 = vunpack.c.l.b16 %v547
  %v1146 = vunpack.c.h.b16 %v547
  %v1147 = vunpack.c.l.b16 %v548
  %v1148 = vunpack.c.h.b16 %v548
  %v1149 = vunpack.c.l.b16 %v549
  %v1150 = vunpack.c.h.b16 %v549
  %v1151 = vunpack.c.l.b16 %v550
  %v1152 = vunpack.c.h.b16 %v550
  %v1153 = vunpack.c.l.b16 %v551
  %v1154 = vunpack.c.h.b16 %v551
  %v1155 = vunpack.c.l.b16 %v552
  %v1156 = vunpack.c.h.b16 %v552
  %v1157 = vunpack.c.l.b16 %v553
  %v1158 = vunpack.c.h.b16 %v553
  %v1159 = vunpack.c.l.b16 %v554
  %v1160 = vunpack.c.h.b16 %v554
  %v1161 = vunpack.c.l.b16 %v555
  %v1162 = vunpack.c.h.b16 %v555
  %v1163 = vunpack.c.l.b16 %v556
  %v1164 = vunpack.c.h.b16 %v556
  %v1165 = vunpack.c.l.b16 %v557
  %v1166 = vunpack.c.h.b16 %v557
  %v1167 = vunpack.c.l.b16 %v558
  %v1168 = vunpack.c.h.b16 %v558
  %v1169 = vpack.c.b16 %v781, %v777
  %v1170 = vpack.c.b16 %v782, %v778
  %v1171 = vpack.c.b16 %v783, %v779
  %v1172 = vpack.c.b16 %v784, %v780
  %v1173 = vpack.c.b16 %v789, %v785
  %v1174 = vpack.c.b16 %v790, %v786
  %v1175 = vpack.c.b16 %v791, %v787
  %v1176 = vpack.c.b16 %v792, %v788
  %v1177 = vpack.c.b16 %v797, %v793
  %v1178 = vpack.c.b16 %v798, %v794
  %v1179 = vpack.c.b16 %v799, %v795
  %v1180 = vpack.c.b16 %v800, %v796
  %v1181 = vpack.c.b16 %v805, %v801
  %v1182 = vpack.c.b16 %v806, %v802
  %v1183 = vpack.c.b16 %v807, %v803
  %v1184 = vpack.c.b16 %v808, %v804
  %v1185 = vpack.c.b16 %v813, %v809
  %v1186 = vpack.c.b16 %v814, %v810
  %v1187 = vpack.c.b16 %v815, %v811
  %v1188 = vpack.c.b16 %v816, %v812
  %v1189 = vpack.c.b16 %v821, %v817
  %v1190 = vpack.c.b16 %v822, %v818
  %v1191 = vpack.c.b16 %v823, %v819
  %v1192 = vpack.c.b16 %v824, %v820
  %v1193 = vpack.c.b16 %v829, %v825
  %v1194 = vpack.c.b16 %v830, %v826
  %v1195 = vpack.c.b16 %v831, %v827
  %v1196 = vpack.c.b16 %v832, %v828
  %v1197 = vpack.c.b16 %v837, %v833
  %v1198 = vpack.c.b16 %v838, %v834
  %v1199 = vpack.c.b16 %v839, %v835
  %v1200 = vpack.c.b16 %v840, %v836
  %v1201 = vpack.c.b16 %v845, %v841
  %v1202 = vpack.c.b16 %v846, %v842
  %v1203 = vpack.c.b16 %v847, %v843
  %v1204 = vpack.c.b16 %v848, %v844
  %v1205 = vpack.c.b16 %v853, %v849
  %v1206 = vpack.c.b16 %v854, %v850
  %v1207 = vpack.c.b16 %v855, %v851
  %v1208 = vpack.c.b16 %v856, %v852
  %v1209 = vpack.c.b16 %v861, %v857
  %v1210 = vpack.c.b16 %v862, %v858
  %v1211 = vpack.c.b16 %v863, %v859
  %v1212 = vpack.c.b16 %v864, %v860
  %v1213 = vpack.c.b16 %v869, %v865
  %v1214 = vpack.c.b16 %v870, %v866
  %v1215 = vpack.c.b16 %v871, %v867
  %v1216 = vpack.c.b16 %v872, %v868
  %v1217 = vpack.c.b16 %v877, %v873
  %v1218 = vpack.c.b16 %v878, %v874
  %v1219 = vpack.c.b16 %v879, %v875
  %v1220 = vpack.c.b16 %v880, %v876
  %v1221 = vpack.c.b16 %v885, %v881
  %v1222 = vpack.c.b16 %v886, %v882
  %v1223 = vpack.c.b16 %v887, %v883
  %v1224 = vpack.c.b16 %v888, %v884
  %v1225 = vpack.c.b16 %v893, %v889
  %v1226 = vpack.c.b16 %v894, %v890
  %v1227 = vpack.c.b16 %v895, %v891
  %v1228 = vpack.c.b16 %v896, %v892
  %v1229 = vpack.c.b16 %v901, %v897
  %v1230 = vpack.c.b16 %v902, %v898
  %v1231 = vpack.c.b16 %v903, %v899
  %v1232 = vpack.c.b16 %v904, %v900
  %v1233 = vpack.c.b16 %v909, %v905
  %v1234 = vpack.c.b16 %v910, %v906
  %v1235 = vpack.c.b16 %v911, %v907
  %v1236 = vpack.c.b16 %v912, %v908
  %v1237 = vpack.c.b16 %v917, %v913
  %v1238 = vpack.c.b16 %v918, %v914
  %v1239 = vpack.c.b16 %v919, %v915
  %v1240 = vpack.c.b16 %v920, %v916
  %v1241 = vpack.c.b16 %v925, %v921
  %v1242 = vpack.c.b16 %v926, %v922
  %v1243 = vpack.c.b16 %v927, %v923
  %v1244 = vpack.c.b16 %v928, %v924
  %v1245 = vpack.c.b16 %v933, %v929
  %v1246 = vpack.c.b16 %v934, %v930
  %v1247 = vpack.c.b16 %v935, %v931
  %v1248 = vpack.c.b16 %v936, %v932
  %v1249 = vpack.c.b16 %v941, %v937
  %v1250 = vpack.c.b16 %v942, %v938
  %v1251 = vpack.c.b16 %v943, %v939
  %v1252 = vpack.c.b16 %v944, %v940
  %v1253 = vpack.c.b16 %v949, %v945
  %v1254 = vpack.c.b16 %v950, %v946
  %v1255 = vpack.c.b16 %v951, %v947
  %v1256 = vpack.c.b16 %v952, %v948
  %v1257 = vpack.c.b16 %v957, %v953
  %v1258 = vpack.c.b16 %v958, %v954
  %v1259 = vpack.c.b16 %v959, %v955
  %v1260 = vpack.c.b16 %v960, %v956
  %v1261 = vpack.c.b16 %v965, %v961
  %v1262 = vpack.c.b16 %v966, %v962
  %v1263 = vpack.c.b16 %v967, %v963
  %v1264 = vpack.c.b16 %v968, %v964
  %v1265 = vpack.c.b16 %v973, %v969
  %v1266 = vpack.c.b16 %v974, %v970
  %v1267 = vpack.c.b16 %v975, %v971
  %v1268 = vpack.c.b16 %v976, %v972
  %v1269 = vpack.c.b16 %v981, %v977
  %v1270 = vpack.c.b16 %v982, %v978
  %v1271 = vpack.c.b16 %v983, %v979
  %v1272 = vpack.c.b16 %v984, %v980
  %v1273 = vpack.c.b16 %v989, %v985
  %v1274 = vpack.c.b16 %v990, %v986
  %v1275 = vpack.c.b16 %v991, %v987
  %v1276 = vpack.c.b16 %v992, %v988
  %v1277 = vpack.c.b16 %v997, %v993
  %v1278 = vpack.c.b16 %v998, %v994
  %v1279 = vpack.c.b16 %v999, %v995
  %v1280 = vpack.c.b16 %v1000, %v996
  %v1281 = vpack.c.b16 %v1005, %v1001
  %v1282 = vpack.c.b16 %v1006, %v1002
  %v1283 = vpack.c.b16 %v1007, %v1003
  %v1284 = vpack.c.b16 %v1008, %v1004
  %v1285 = vpack.c.b16 %v1013, %v1009
  %v1286 = vpack.c.b16 %v1014, %v1010
  %v1287 = vpack.c.b16 %v1015, %v1011
  %v1288 = vpack.c.b16 %v1016, %v1012
  %v1289 = vpack.c.b16 %v1021, %v1017
  %v1290 = vpack.c.b16 %v1022, %v1018
  %v1291 = vpack.c.b16 %v1023, %v1019
  %v1292 = vpack.c.b16 %v1024, %v1020
  %v1293 = vpack.c.b16 %v1029, %v1025
  %v1294 = vpack.c.b16 %v1030, %v1026
  %v1295 = vpack.c.b16 %v1031, %v1027
  %v1296 = vpack.c.b16 %v1032, %v1028
  %v1297 = vpack.c.b16 %v1037, %v1033
  %v1298 = vpack.c.b16 %v1038, %v1034
  %v1299 = vpack.c.b16 %v1039, %v1035
  %v1300 = vpack.c.b16 %v1040, %v1036
  %v1301 = vpack.c.b16 %v1045, %v1041
  %v1302 = vpack.c.b16 %v1046, %v1042
  %v1303 = vpack.c.b16 %v1047, %v1043
  %v1304 = vpack.c.b16 %v1048, %v1044
  %v1305 = vpack.c.b16 %v1053, %v1049
  %v1306 = vpack.c.b16 %v1054, %v1050
  %v1307 = vpack.c.b16 %v1055, %v1051
  %v1308 = vpack.c.b16 %v1056, %v1052
  %v1309 = vpack.c.b16 %v1061, %v1057
  %v1310 = vpack.c.b16 %v1062, %v1058
  %v1311 = vpack.c.b16 %v1063, %v1059
  %v1312 = vpack.c.b16 %v1064, %v1060
  %v1313 = vpack.c.b16 %v1069, %v1065
  %v1314 = vpack.c.b16 %v1070, %v1066
  %v1315 = vpack.c.b16 %v1071, %v1067
  %v1316 = vpack.c.b16 %v1072, %v1068
  %v1317 = vpack.c.b16 %v1077, %v1073
  %v1318 = vpack.c.b16 %v1078, %v1074
  %v1319 = vpack.c.b16 %v1079, %v1075
  %v1320 = vpack.c.b16 %v1080, %v1076
  %v1321 = vpack.c.b16 %v1085, %v1081
  %v1322 = vpack.c.b16 %v1086, %v1082
  %v1323 = vpack.c.b16 %v1087, %v1083
  %v1324 = vpack.c.b16 %v1088, %v1084
  %v1325 = vpack.c.b16 %v1093, %v1089
  %v1326 = vpack.c.b16 %v1094, %v1090
  %v1327 = vpack.c.b16 %v1095, %v1091
  %v1328 = vpack.c.b16 %v1096, %v1092
  %v1329 = vpack.c.b16 %v1101, %v1097
  %v1330 = vpack.c.b16 %v1102, %v1098
  %v1331 = vpack.c.b16 %v1103, %v1099
  %v1332 = vpack.c.b16 %v1104, %v1100
  %v1333 = vpack.c.b16 %v1109, %v1105
  %v1334 = vpack.c.b16 %v1110, %v1106
  %v1335 = vpack.c.b16 %v1111, %v1107
  %v1336 = vpack.c.b16 %v1112, %v1108
  %v1337 = vpack.c.b16 %v1117, %v1113
  %v1338 = vpack.c.b16 %v1118, %v1114
  %v1339 = vpack.c.b16 %v1119, %v1115
  %v1340 = vpack.c.b16 %v1120, %v1116
  %v1341 = vpack.c.b16 %v1125, %v1121
  %v1342 = vpack.c.b16 %v1126, %v1122
  %v1343 = vpack.c.b16 %v1127, %v1123
  %v1344 = vpack.c.b16 %v1128, %v1124
  %v1345 = vpack.c.b16 %v1133, %v1129
  %v1346 = vpack.c.b16 %v1134, %v1130
  %v1347 = vpack.c.b16 %v1135, %v1131
  %v1348 = vpack.c.b16 %v1136, %v1132
  %v1349 = vpack.c.b16 %v1141, %v1137
  %v1350 = vpack.c.b16 %v1142, %v1138
  %v1351 = vpack.c.b16 %v1143, %v1139
  %v1352 = vpack.c.b16 %v1144, %v1140
  %v1353 = vpack.c.b16 %v1149, %v1145
  %v1354 = vpack.c.b16 %v1150, %v1146
  %v1355 = vpack.c.b16 %v1151, %v1147
  %v1356 = vpack.c.b16 %v1152, %v1148
  %v1357 = vpack.c.b16 %v1157, %v1153
  %v1358 = vpack.c.b16 %v1158, %v1154
  %v1359 = vpack.c.b16 %v1159, %v1155
  %v1360 = vpack.c.b16 %v1160, %v1156
  %v1361 = vpack.c.b16 %v1165, %v1161
  %v1362 = vpack.c.b16 %v1166, %v1162
  %v1363 = vpack.c.b16 %v1167, %v1163
  %v1364 = vpack.c.b16 %v1168, %v1164
  %vm1561 = vcmask 130048
  %v1563 = vsel %vm1561, %v257, 0
  %v1566 = vsel %vm1561, %v264, 0
  %v1569 = vsel %vm1561, %v271, 0
  %v1572 = vsel %vm1561, %v278, 0
  %v1575 = vsel %vm1561, %v285, 0
  %v1578 = vsel %vm1561, %v292, 0
  %v1581 = vsel %vm1561, %v299, 0
  %v1584 = vsel %vm1561, %v306, 0
  %v1587 = vsel %vm1561, %v313, 0
  %v1590 = vsel %vm1561, %v320, 0
  %v1593 = vsel %vm1561, %v327, 0
  %v1596 = vsel %vm1561, %v334, 0
  %v1599 = vsel %vm1561, %v341, 0
  %v1602 = vsel %vm1561, %v348, 0
  %v1605 = vsel %vm1561, %v355, 0
  %v1608 = vsel %vm1561, %v362, 0
  %1610 = vmatprep.subr.bf16.mxu0 %v1170
  %1611 = vmatpush1.bf16.msra.mxu0 %v1169
  %1612 = vmatprep.subr.bf16.mxu0 %v1174
  %1613 = vmatpush1.bf16.msra.mxu0 %v1173
  %1614 = vmatprep.subr.bf16.mxu0 %v1178
  %1615 = vmatpush1.bf16.msra.mxu0 %v1177
  %1616 = vmatprep.subr.bf16.mxu0 %v1182
  %1617 = vmatpush1.bf16.msra.mxu0 %v1181
  %1618 = vmatprep.subr.bf16.mxu0 %v1186
  %1619 = vmatpush1.bf16.msra.mxu0 %v1185
  %1620 = vmatprep.subr.bf16.mxu0 %v1190
  %1621 = vmatpush1.bf16.msra.mxu0 %v1189
  %1622 = vmatprep.subr.bf16.mxu0 %v1194
  %1623 = vmatpush1.bf16.msra.mxu0 %v1193
  %1624 = vmatprep.subr.bf16.mxu0 %v1198
  %1625 = vmatpush1.bf16.msra.mxu0 %v1197
  %1626 = vmatprep.subr.bf16.mxu0 %v1202
  %1627 = vmatpush1.bf16.msra.mxu0 %v1201
  %1628 = vmatprep.subr.bf16.mxu0 %v1206
  %1629 = vmatpush1.bf16.msra.mxu0 %v1205
  %1630 = vmatprep.subr.bf16.mxu0 %v1210
  %1631 = vmatpush1.bf16.msra.mxu0 %v1209
  %1632 = vmatprep.subr.bf16.mxu0 %v1214
  %1633 = vmatpush1.bf16.msra.mxu0 %v1213
  %1634 = vmatprep.subr.bf16.mxu0 %v1218
  %1635 = vmatpush1.bf16.msra.mxu0 %v1217
  %1636 = vmatprep.subr.bf16.mxu0 %v1222
  %1637 = vmatpush1.bf16.msra.mxu0 %v1221
  %1638 = vmatprep.subr.bf16.mxu0 %v1226
  %1639 = vmatpush1.bf16.msra.mxu0 %v1225
  %1640 = vmatprep.subr.bf16.mxu0 %v1230
  %1641 = vmatpush1.bf16.msra.mxu0 %v1229
  %1642 = vmatprep.mubr.bf16.mxu0 %v252
  %1643 = vmatmul.mubr.bf16.gmra.mrb[0].mxu0 %v251
  %v1644 = vpop.f32.mrb[0].mxu0
  %v1645 = vadd.f32 %v564, %v1644
  %v1646 = vpop.f32.mrb[0].mxu0
  %v1647 = vadd.f32 %v568, %v1646
  %v1648 = vpop.f32.mrb[0].mxu0
  %v1649 = vadd.f32 %v564, %v1648
  %v1650 = vpop.f32.mrb[0].mxu0
  %v1651 = vadd.f32 %v568, %v1650
  %1652 = vmatprep.mubr.bf16.mxu0 %v259
  %1653 = vmatmul.mubr.bf16.gmra.mrb[0].mxu0 %v258
  %v1654 = vpop.f32.mrb[0].mxu0
  %v1655 = vadd.f32 %v564, %v1654
  %v1656 = vpop.f32.mrb[0].mxu0
  %v1657 = vadd.f32 %v568, %v1656
  %v1658 = vpop.f32.mrb[0].mxu0
  %v1659 = vadd.f32 %v564, %v1658
  %v1660 = vpop.f32.mrb[0].mxu0
  %v1661 = vadd.f32 %v568, %v1660
  %1662 = vmatprep.mubr.bf16.mxu0 %v266
  %1663 = vmatmul.mubr.bf16.gmra.mrb[0].mxu0 %v265
  %v1664 = vpop.f32.mrb[0].mxu0
  %v1665 = vadd.f32 %v564, %v1664
  %v1666 = vpop.f32.mrb[0].mxu0
  %v1667 = vadd.f32 %v568, %v1666
  %v1668 = vpop.f32.mrb[0].mxu0
  %v1669 = vadd.f32 %v564, %v1668
  %v1670 = vpop.f32.mrb[0].mxu0
  %v1671 = vadd.f32 %v568, %v1670
  %1672 = vmatprep.mubr.bf16.mxu0 %v273
  %1673 = vmatmul.mubr.bf16.gmra.mrb[0].mxu0 %v272
  %v1674 = vpop.f32.mrb[0].mxu0
  %v1675 = vadd.f32 %v564, %v1674
  %v1676 = vpop.f32.mrb[0].mxu0
  %v1677 = vadd.f32 %v568, %v1676
  %v1678 = vpop.f32.mrb[0].mxu0
  %v1679 = vadd.f32 %v564, %v1678
  %v1680 = vpop.f32.mrb[0].mxu0
  %v1681 = vadd.f32 %v568, %v1680
  %1682 = vmatprep.mubr.bf16.mxu0 %v280
  %1683 = vmatmul.mubr.bf16.gmra.mrb[0].mxu0 %v279
  %v1684 = vpop.f32.mrb[0].mxu0
  %v1685 = vadd.f32 %v564, %v1684
  %v1686 = vpop.f32.mrb[0].mxu0
  %v1687 = vadd.f32 %v568, %v1686
  %v1688 = vpop.f32.mrb[0].mxu0
  %v1689 = vadd.f32 %v564, %v1688
  %v1690 = vpop.f32.mrb[0].mxu0
  %v1691 = vadd.f32 %v568, %v1690
  %1692 = vmatprep.mubr.bf16.mxu0 %v287
  %1693 = vmatmul.mubr.bf16.gmra.mrb[0].mxu0 %v286
  %v1694 = vpop.f32.mrb[0].mxu0
  %v1695 = vadd.f32 %v564, %v1694
  %v1696 = vpop.f32.mrb[0].mxu0
  %v1697 = vadd.f32 %v568, %v1696
  %v1698 = vpop.f32.mrb[0].mxu0
  %v1699 = vadd.f32 %v564, %v1698
  %v1700 = vpop.f32.mrb[0].mxu0
  %v1701 = vadd.f32 %v568, %v1700
  %1702 = vmatprep.mubr.bf16.mxu0 %v294
  %1703 = vmatmul.mubr.bf16.gmra.mrb[0].mxu0 %v293
  %v1704 = vpop.f32.mrb[0].mxu0
  %v1705 = vadd.f32 %v564, %v1704
  %v1706 = vpop.f32.mrb[0].mxu0
  %v1707 = vadd.f32 %v568, %v1706
  %v1708 = vpop.f32.mrb[0].mxu0
  %v1709 = vadd.f32 %v564, %v1708
  %v1710 = vpop.f32.mrb[0].mxu0
  %v1711 = vadd.f32 %v568, %v1710
  %1712 = vmatprep.mubr.bf16.mxu0 %v301
  %1713 = vmatmul.mubr.bf16.gmra.mrb[0].mxu0 %v300
  %v1714 = vpop.f32.mrb[0].mxu0
  %v1715 = vadd.f32 %v564, %v1714
  %v1716 = vpop.f32.mrb[0].mxu0
  %v1717 = vadd.f32 %v568, %v1716
  %v1718 = vpop.f32.mrb[0].mxu0
  %v1719 = vadd.f32 %v564, %v1718
  %v1720 = vpop.f32.mrb[0].mxu0
  %v1721 = vadd.f32 %v568, %v1720
  %1722 = vmatprep.mubr.bf16.mxu0 %v308
  %1723 = vmatmul.mubr.bf16.gmra.mrb[0].mxu0 %v307
  %v1724 = vpop.f32.mrb[0].mxu0
  %v1725 = vadd.f32 %v564, %v1724
  %v1726 = vpop.f32.mrb[0].mxu0
  %v1727 = vadd.f32 %v568, %v1726
  %v1728 = vpop.f32.mrb[0].mxu0
  %v1729 = vadd.f32 %v564, %v1728
  %v1730 = vpop.f32.mrb[0].mxu0
  %v1731 = vadd.f32 %v568, %v1730
  %1732 = vmatprep.mubr.bf16.mxu0 %v315
  %1733 = vmatmul.mubr.bf16.gmra.mrb[0].mxu0 %v314
  %v1734 = vpop.f32.mrb[0].mxu0
  %v1735 = vadd.f32 %v564, %v1734
  %v1736 = vpop.f32.mrb[0].mxu0
  %v1737 = vadd.f32 %v568, %v1736
  %v1738 = vpop.f32.mrb[0].mxu0
  %v1739 = vadd.f32 %v564, %v1738
  %v1740 = vpop.f32.mrb[0].mxu0
  %v1741 = vadd.f32 %v568, %v1740
  %1742 = vmatprep.mubr.bf16.mxu0 %v322
  %1743 = vmatmul.mubr.bf16.gmra.mrb[0].mxu0 %v321
  %v1744 = vpop.f32.mrb[0].mxu0
  %v1745 = vadd.f32 %v564, %v1744
  %v1746 = vpop.f32.mrb[0].mxu0
  %v1747 = vadd.f32 %v568, %v1746
  %v1748 = vpop.f32.mrb[0].mxu0
  %v1749 = vadd.f32 %v564, %v1748
  %v1750 = vpop.f32.mrb[0].mxu0
  %v1751 = vadd.f32 %v568, %v1750
  %1752 = vmatprep.mubr.bf16.mxu0 %v329
  %1753 = vmatmul.mubr.bf16.gmra.mrb[0].mxu0 %v328
  %v1754 = vpop.f32.mrb[0].mxu0
  %v1755 = vadd.f32 %v564, %v1754
  %v1756 = vpop.f32.mrb[0].mxu0
  %v1757 = vadd.f32 %v568, %v1756
  %v1758 = vpop.f32.mrb[0].mxu0
  %v1759 = vadd.f32 %v564, %v1758
  %v1760 = vpop.f32.mrb[0].mxu0
  %v1761 = vadd.f32 %v568, %v1760
  %1762 = vmatprep.mubr.bf16.mxu0 %v336
  %1763 = vmatmul.mubr.bf16.gmra.mrb[0].mxu0 %v335
  %v1764 = vpop.f32.mrb[0].mxu0
  %v1765 = vadd.f32 %v564, %v1764
  %v1766 = vpop.f32.mrb[0].mxu0
  %v1767 = vadd.f32 %v568, %v1766
  %v1768 = vpop.f32.mrb[0].mxu0
  %v1769 = vadd.f32 %v564, %v1768
  %v1770 = vpop.f32.mrb[0].mxu0
  %v1771 = vadd.f32 %v568, %v1770
  %1772 = vmatprep.mubr.bf16.mxu0 %v343
  %1773 = vmatmul.mubr.bf16.gmra.mrb[0].mxu0 %v342
  %v1774 = vpop.f32.mrb[0].mxu0
  %v1775 = vadd.f32 %v564, %v1774
  %v1776 = vpop.f32.mrb[0].mxu0
  %v1777 = vadd.f32 %v568, %v1776
  %v1778 = vpop.f32.mrb[0].mxu0
  %v1779 = vadd.f32 %v564, %v1778
  %v1780 = vpop.f32.mrb[0].mxu0
  %v1781 = vadd.f32 %v568, %v1780
  %1782 = vmatprep.mubr.bf16.mxu0 %v350
  %1783 = vmatmul.mubr.bf16.gmra.mrb[0].mxu0 %v349
  %v1784 = vpop.f32.mrb[0].mxu0
  %v1785 = vadd.f32 %v564, %v1784
  %v1786 = vpop.f32.mrb[0].mxu0
  %v1787 = vadd.f32 %v568, %v1786
  %v1788 = vpop.f32.mrb[0].mxu0
  %v1789 = vadd.f32 %v564, %v1788
  %v1790 = vpop.f32.mrb[0].mxu0
  %v1791 = vadd.f32 %v568, %v1790
  %1792 = vmatprep.mubr.bf16.mxu0 %v357
  %1793 = vmatmul.mubr.bf16.gmra.mrb[0].mxu0 %v356
  %v1794 = vpop.f32.mrb[0].mxu0
  %v1795 = vadd.f32 %v564, %v1794
  %v1796 = vpop.f32.mrb[0].mxu0
  %v1797 = vadd.f32 %v568, %v1796
  %v1798 = vpop.f32.mrb[0].mxu0
  %v1799 = vadd.f32 %v564, %v1798
  %v1800 = vpop.f32.mrb[0].mxu0
  %v1801 = vadd.f32 %v568, %v1800
  %1802 = vdwg.mxu0
  %1803 = vmatprep.subr.bf16.mxu0 %v1234
  %1804 = vmatpush1.bf16.msra.mxu0 %v1233
  %1805 = vmatprep.subr.bf16.mxu0 %v1238
  %1806 = vmatpush1.bf16.msra.mxu0 %v1237
  %1807 = vmatprep.subr.bf16.mxu0 %v1242
  %1808 = vmatpush1.bf16.msra.mxu0 %v1241
  %1809 = vmatprep.subr.bf16.mxu0 %v1246
  %1810 = vmatpush1.bf16.msra.mxu0 %v1245
  %1811 = vmatprep.subr.bf16.mxu0 %v1250
  %1812 = vmatpush1.bf16.msra.mxu0 %v1249
  %1813 = vmatprep.subr.bf16.mxu0 %v1254
  %1814 = vmatpush1.bf16.msra.mxu0 %v1253
  %1815 = vmatprep.subr.bf16.mxu0 %v1258
  %1816 = vmatpush1.bf16.msra.mxu0 %v1257
  %1817 = vmatprep.subr.bf16.mxu0 %v1262
  %1818 = vmatpush1.bf16.msra.mxu0 %v1261
  %1819 = vmatprep.subr.bf16.mxu0 %v1266
  %1820 = vmatpush1.bf16.msra.mxu0 %v1265
  %1821 = vmatprep.subr.bf16.mxu0 %v1270
  %1822 = vmatpush1.bf16.msra.mxu0 %v1269
  %1823 = vmatprep.subr.bf16.mxu0 %v1274
  %1824 = vmatpush1.bf16.msra.mxu0 %v1273
  %1825 = vmatprep.subr.bf16.mxu0 %v1278
  %1826 = vmatpush1.bf16.msra.mxu0 %v1277
  %1827 = vmatprep.subr.bf16.mxu0 %v1282
  %1828 = vmatpush1.bf16.msra.mxu0 %v1281
  %1829 = vmatprep.subr.bf16.mxu0 %v1286
  %1830 = vmatpush1.bf16.msra.mxu0 %v1285
  %1831 = vmatprep.subr.bf16.mxu0 %v1290
  %1832 = vmatpush1.bf16.msra.mxu0 %v1289
  %1833 = vmatprep.subr.bf16.mxu0 %v1294
  %1834 = vmatpush1.bf16.msra.mxu0 %v1293
  %1835 = vmatprep.mubr.bf16.mxu0 %v254
  %1836 = vmatmul.mubr.bf16.gmra.mrb[0].mxu0 %v253
  %v1837 = vpop.f32.mrb[0].mxu0
  %v1838 = vadd.f32 %v1645, %v1837
  %v1839 = vpop.f32.mrb[0].mxu0
  %v1840 = vadd.f32 %v1647, %v1839
  %v1841 = vpop.f32.mrb[0].mxu0
  %v1842 = vadd.f32 %v1649, %v1841
  %v1843 = vpop.f32.mrb[0].mxu0
  %v1844 = vadd.f32 %v1651, %v1843
  %1845 = vmatprep.mubr.bf16.mxu0 %v261
  %1846 = vmatmul.mubr.bf16.gmra.mrb[0].mxu0 %v260
  %v1847 = vpop.f32.mrb[0].mxu0
  %v1848 = vadd.f32 %v1655, %v1847
  %v1849 = vpop.f32.mrb[0].mxu0
  %v1850 = vadd.f32 %v1657, %v1849
  %v1851 = vpop.f32.mrb[0].mxu0
  %v1852 = vadd.f32 %v1659, %v1851
  %v1853 = vpop.f32.mrb[0].mxu0
  %v1854 = vadd.f32 %v1661, %v1853
  %1855 = vmatprep.mubr.bf16.mxu0 %v268
  %1856 = vmatmul.mubr.bf16.gmra.mrb[0].mxu0 %v267
  %v1857 = vpop.f32.mrb[0].mxu0
  %v1858 = vadd.f32 %v1665, %v1857
  %v1859 = vpop.f32.mrb[0].mxu0
  %v1860 = vadd.f32 %v1667, %v1859
  %v1861 = vpop.f32.mrb[0].mxu0
  %v1862 = vadd.f32 %v1669, %v1861
  %v1863 = vpop.f32.mrb[0].mxu0
  %v1864 = vadd.f32 %v1671, %v1863
  %1865 = vmatprep.mubr.bf16.mxu0 %v275
  %1866 = vmatmul.mubr.bf16.gmra.mrb[0].mxu0 %v274
  %v1867 = vpop.f32.mrb[0].mxu0
  %v1868 = vadd.f32 %v1675, %v1867
  %v1869 = vpop.f32.mrb[0].mxu0
  %v1870 = vadd.f32 %v1677, %v1869
  %v1871 = vpop.f32.mrb[0].mxu0
  %v1872 = vadd.f32 %v1679, %v1871
  %v1873 = vpop.f32.mrb[0].mxu0
  %v1874 = vadd.f32 %v1681, %v1873
  %1875 = vmatprep.mubr.bf16.mxu0 %v282
  %1876 = vmatmul.mubr.bf16.gmra.mrb[0].mxu0 %v281
  %v1877 = vpop.f32.mrb[0].mxu0
  %v1878 = vadd.f32 %v1685, %v1877
  %v1879 = vpop.f32.mrb[0].mxu0
  %v1880 = vadd.f32 %v1687, %v1879
  %v1881 = vpop.f32.mrb[0].mxu0
  %v1882 = vadd.f32 %v1689, %v1881
  %v1883 = vpop.f32.mrb[0].mxu0
  %v1884 = vadd.f32 %v1691, %v1883
  %1885 = vmatprep.mubr.bf16.mxu0 %v289
  %1886 = vmatmul.mubr.bf16.gmra.mrb[0].mxu0 %v288
  %v1887 = vpop.f32.mrb[0].mxu0
  %v1888 = vadd.f32 %v1695, %v1887
  %v1889 = vpop.f32.mrb[0].mxu0
  %v1890 = vadd.f32 %v1697, %v1889
  %v1891 = vpop.f32.mrb[0].mxu0
  %v1892 = vadd.f32 %v1699, %v1891
  %v1893 = vpop.f32.mrb[0].mxu0
  %v1894 = vadd.f32 %v1701, %v1893
  %1895 = vmatprep.mubr.bf16.mxu0 %v296
  %1896 = vmatmul.mubr.bf16.gmra.mrb[0].mxu0 %v295
  %v1897 = vpop.f32.mrb[0].mxu0
  %v1898 = vadd.f32 %v1705, %v1897
  %v1899 = vpop.f32.mrb[0].mxu0
  %v1900 = vadd.f32 %v1707, %v1899
  %v1901 = vpop.f32.mrb[0].mxu0
  %v1902 = vadd.f32 %v1709, %v1901
  %v1903 = vpop.f32.mrb[0].mxu0
  %v1904 = vadd.f32 %v1711, %v1903
  %1905 = vmatprep.mubr.bf16.mxu0 %v303
  %1906 = vmatmul.mubr.bf16.gmra.mrb[0].mxu0 %v302
  %v1907 = vpop.f32.mrb[0].mxu0
  %v1908 = vadd.f32 %v1715, %v1907
  %v1909 = vpop.f32.mrb[0].mxu0
  %v1910 = vadd.f32 %v1717, %v1909
  %v1911 = vpop.f32.mrb[0].mxu0
  %v1912 = vadd.f32 %v1719, %v1911
  %v1913 = vpop.f32.mrb[0].mxu0
  %v1914 = vadd.f32 %v1721, %v1913
  %1915 = vmatprep.mubr.bf16.mxu0 %v310
  %1916 = vmatmul.mubr.bf16.gmra.mrb[0].mxu0 %v309
  %v1917 = vpop.f32.mrb[0].mxu0
  %v1918 = vadd.f32 %v1725, %v1917
  %v1919 = vpop.f32.mrb[0].mxu0
  %v1920 = vadd.f32 %v1727, %v1919
  %v1921 = vpop.f32.mrb[0].mxu0
  %v1922 = vadd.f32 %v1729, %v1921
  %v1923 = vpop.f32.mrb[0].mxu0
  %v1924 = vadd.f32 %v1731, %v1923
  %1925 = vmatprep.mubr.bf16.mxu0 %v317
  %1926 = vmatmul.mubr.bf16.gmra.mrb[0].mxu0 %v316
  %v1927 = vpop.f32.mrb[0].mxu0
  %v1928 = vadd.f32 %v1735, %v1927
  %v1929 = vpop.f32.mrb[0].mxu0
  %v1930 = vadd.f32 %v1737, %v1929
  %v1931 = vpop.f32.mrb[0].mxu0
  %v1932 = vadd.f32 %v1739, %v1931
  %v1933 = vpop.f32.mrb[0].mxu0
  %v1934 = vadd.f32 %v1741, %v1933
  %1935 = vmatprep.mubr.bf16.mxu0 %v324
  %1936 = vmatmul.mubr.bf16.gmra.mrb[0].mxu0 %v323
  %v1937 = vpop.f32.mrb[0].mxu0
  %v1938 = vadd.f32 %v1745, %v1937
  %v1939 = vpop.f32.mrb[0].mxu0
  %v1940 = vadd.f32 %v1747, %v1939
  %v1941 = vpop.f32.mrb[0].mxu0
  %v1942 = vadd.f32 %v1749, %v1941
  %v1943 = vpop.f32.mrb[0].mxu0
  %v1944 = vadd.f32 %v1751, %v1943
  %1945 = vmatprep.mubr.bf16.mxu0 %v331
  %1946 = vmatmul.mubr.bf16.gmra.mrb[0].mxu0 %v330
  %v1947 = vpop.f32.mrb[0].mxu0
  %v1948 = vadd.f32 %v1755, %v1947
  %v1949 = vpop.f32.mrb[0].mxu0
  %v1950 = vadd.f32 %v1757, %v1949
  %v1951 = vpop.f32.mrb[0].mxu0
  %v1952 = vadd.f32 %v1759, %v1951
  %v1953 = vpop.f32.mrb[0].mxu0
  %v1954 = vadd.f32 %v1761, %v1953
  %1955 = vmatprep.mubr.bf16.mxu0 %v338
  %1956 = vmatmul.mubr.bf16.gmra.mrb[0].mxu0 %v337
  %v1957 = vpop.f32.mrb[0].mxu0
  %v1958 = vadd.f32 %v1765, %v1957
  %v1959 = vpop.f32.mrb[0].mxu0
  %v1960 = vadd.f32 %v1767, %v1959
  %v1961 = vpop.f32.mrb[0].mxu0
  %v1962 = vadd.f32 %v1769, %v1961
  %v1963 = vpop.f32.mrb[0].mxu0
  %v1964 = vadd.f32 %v1771, %v1963
  %1965 = vmatprep.mubr.bf16.mxu0 %v345
  %1966 = vmatmul.mubr.bf16.gmra.mrb[0].mxu0 %v344
  %v1967 = vpop.f32.mrb[0].mxu0
  %v1968 = vadd.f32 %v1775, %v1967
  %v1969 = vpop.f32.mrb[0].mxu0
  %v1970 = vadd.f32 %v1777, %v1969
  %v1971 = vpop.f32.mrb[0].mxu0
  %v1972 = vadd.f32 %v1779, %v1971
  %v1973 = vpop.f32.mrb[0].mxu0
  %v1974 = vadd.f32 %v1781, %v1973
  %1975 = vmatprep.mubr.bf16.mxu0 %v352
  %1976 = vmatmul.mubr.bf16.gmra.mrb[0].mxu0 %v351
  %v1977 = vpop.f32.mrb[0].mxu0
  %v1978 = vadd.f32 %v1785, %v1977
  %v1979 = vpop.f32.mrb[0].mxu0
  %v1980 = vadd.f32 %v1787, %v1979
  %v1981 = vpop.f32.mrb[0].mxu0
  %v1982 = vadd.f32 %v1789, %v1981
  %v1983 = vpop.f32.mrb[0].mxu0
  %v1984 = vadd.f32 %v1791, %v1983
  %1985 = vmatprep.mubr.bf16.mxu0 %v359
  %1986 = vmatmul.mubr.bf16.gmra.mrb[0].mxu0 %v358
  %v1987 = vpop.f32.mrb[0].mxu0
  %v1988 = vadd.f32 %v1795, %v1987
  %v1989 = vpop.f32.mrb[0].mxu0
  %v1990 = vadd.f32 %v1797, %v1989
  %v1991 = vpop.f32.mrb[0].mxu0
  %v1992 = vadd.f32 %v1799, %v1991
  %v1993 = vpop.f32.mrb[0].mxu0
  %v1994 = vadd.f32 %v1801, %v1993
  %1995 = vdwg.mxu0
  %1996 = vmatprep.subr.bf16.mxu0 %v1298
  %1997 = vmatpush1.bf16.msra.mxu0 %v1297
  %1998 = vmatprep.subr.bf16.mxu0 %v1302
  %1999 = vmatpush1.bf16.msra.mxu0 %v1301
  %2000 = vmatprep.subr.bf16.mxu0 %v1306
  %2001 = vmatpush1.bf16.msra.mxu0 %v1305
  %2002 = vmatprep.subr.bf16.mxu0 %v1310
  %2003 = vmatpush1.bf16.msra.mxu0 %v1309
  %2004 = vmatprep.subr.bf16.mxu0 %v1314
  %2005 = vmatpush1.bf16.msra.mxu0 %v1313
  %2006 = vmatprep.subr.bf16.mxu0 %v1318
  %2007 = vmatpush1.bf16.msra.mxu0 %v1317
  %2008 = vmatprep.subr.bf16.mxu0 %v1322
  %2009 = vmatpush1.bf16.msra.mxu0 %v1321
  %2010 = vmatprep.subr.bf16.mxu0 %v1326
  %2011 = vmatpush1.bf16.msra.mxu0 %v1325
  %2012 = vmatprep.subr.bf16.mxu0 %v1330
  %2013 = vmatpush1.bf16.msra.mxu0 %v1329
  %2014 = vmatprep.subr.bf16.mxu0 %v1334
  %2015 = vmatpush1.bf16.msra.mxu0 %v1333
  %2016 = vmatprep.subr.bf16.mxu0 %v1338
  %2017 = vmatpush1.bf16.msra.mxu0 %v1337
  %2018 = vmatprep.subr.bf16.mxu0 %v1342
  %2019 = vmatpush1.bf16.msra.mxu0 %v1341
  %2020 = vmatprep.subr.bf16.mxu0 %v1346
  %2021 = vmatpush1.bf16.msra.mxu0 %v1345
  %2022 = vmatprep.subr.bf16.mxu0 %v1350
  %2023 = vmatpush1.bf16.msra.mxu0 %v1349
  %2024 = vmatprep.subr.bf16.mxu0 %v1354
  %2025 = vmatpush1.bf16.msra.mxu0 %v1353
  %2026 = vmatprep.subr.bf16.mxu0 %v1358
  %2027 = vmatpush1.bf16.msra.mxu0 %v1357
  %2028 = vmatprep.mubr.bf16.mxu0 %v256
  %2029 = vmatmul.mubr.bf16.gmra.mrb[0].mxu0 %v255
  %v2030 = vpop.f32.mrb[0].mxu0
  %v2031 = vadd.f32 %v1838, %v2030
  %v2032 = vpop.f32.mrb[0].mxu0
  %v2033 = vadd.f32 %v1840, %v2032
  %v2034 = vpop.f32.mrb[0].mxu0
  %v2035 = vadd.f32 %v1842, %v2034
  %v2036 = vpop.f32.mrb[0].mxu0
  %v2037 = vadd.f32 %v1844, %v2036
  %2038 = vmatprep.mubr.bf16.mxu0 %v263
  %2039 = vmatmul.mubr.bf16.gmra.mrb[0].mxu0 %v262
  %v2040 = vpop.f32.mrb[0].mxu0
  %v2041 = vadd.f32 %v1848, %v2040
  %v2042 = vpop.f32.mrb[0].mxu0
  %v2043 = vadd.f32 %v1850, %v2042
  %v2044 = vpop.f32.mrb[0].mxu0
  %v2045 = vadd.f32 %v1852, %v2044
  %v2046 = vpop.f32.mrb[0].mxu0
  %v2047 = vadd.f32 %v1854, %v2046
  %2048 = vmatprep.mubr.bf16.mxu0 %v270
  %2049 = vmatmul.mubr.bf16.gmra.mrb[0].mxu0 %v269
  %v2050 = vpop.f32.mrb[0].mxu0
  %v2051 = vadd.f32 %v1858, %v2050
  %v2052 = vpop.f32.mrb[0].mxu0
  %v2053 = vadd.f32 %v1860, %v2052
  %v2054 = vpop.f32.mrb[0].mxu0
  %v2055 = vadd.f32 %v1862, %v2054
  %v2056 = vpop.f32.mrb[0].mxu0
  %v2057 = vadd.f32 %v1864, %v2056
  %2058 = vmatprep.mubr.bf16.mxu0 %v277
  %2059 = vmatmul.mubr.bf16.gmra.mrb[0].mxu0 %v276
  %v2060 = vpop.f32.mrb[0].mxu0
  %v2061 = vadd.f32 %v1868, %v2060
  %v2062 = vpop.f32.mrb[0].mxu0
  %v2063 = vadd.f32 %v1870, %v2062
  %v2064 = vpop.f32.mrb[0].mxu0
  %v2065 = vadd.f32 %v1872, %v2064
  %v2066 = vpop.f32.mrb[0].mxu0
  %v2067 = vadd.f32 %v1874, %v2066
  %2068 = vmatprep.mubr.bf16.mxu0 %v284
  %2069 = vmatmul.mubr.bf16.gmra.mrb[0].mxu0 %v283
  %v2070 = vpop.f32.mrb[0].mxu0
  %v2071 = vadd.f32 %v1878, %v2070
  %v2072 = vpop.f32.mrb[0].mxu0
  %v2073 = vadd.f32 %v1880, %v2072
  %v2074 = vpop.f32.mrb[0].mxu0
  %v2075 = vadd.f32 %v1882, %v2074
  %v2076 = vpop.f32.mrb[0].mxu0
  %v2077 = vadd.f32 %v1884, %v2076
  %2078 = vmatprep.mubr.bf16.mxu0 %v291
  %2079 = vmatmul.mubr.bf16.gmra.mrb[0].mxu0 %v290
  %v2080 = vpop.f32.mrb[0].mxu0
  %v2081 = vadd.f32 %v1888, %v2080
  %v2082 = vpop.f32.mrb[0].mxu0
  %v2083 = vadd.f32 %v1890, %v2082
  %v2084 = vpop.f32.mrb[0].mxu0
  %v2085 = vadd.f32 %v1892, %v2084
  %v2086 = vpop.f32.mrb[0].mxu0
  %v2087 = vadd.f32 %v1894, %v2086
  %2088 = vmatprep.mubr.bf16.mxu0 %v298
  %2089 = vmatmul.mubr.bf16.gmra.mrb[0].mxu0 %v297
  %v2090 = vpop.f32.mrb[0].mxu0
  %v2091 = vadd.f32 %v1898, %v2090
  %v2092 = vpop.f32.mrb[0].mxu0
  %v2093 = vadd.f32 %v1900, %v2092
  %v2094 = vpop.f32.mrb[0].mxu0
  %v2095 = vadd.f32 %v1902, %v2094
  %v2096 = vpop.f32.mrb[0].mxu0
  %v2097 = vadd.f32 %v1904, %v2096
  %2098 = vmatprep.mubr.bf16.mxu0 %v305
  %2099 = vmatmul.mubr.bf16.gmra.mrb[0].mxu0 %v304
  %v2100 = vpop.f32.mrb[0].mxu0
  %v2101 = vadd.f32 %v1908, %v2100
  %v2102 = vpop.f32.mrb[0].mxu0
  %v2103 = vadd.f32 %v1910, %v2102
  %v2104 = vpop.f32.mrb[0].mxu0
  %v2105 = vadd.f32 %v1912, %v2104
  %v2106 = vpop.f32.mrb[0].mxu0
  %v2107 = vadd.f32 %v1914, %v2106
  %2108 = vmatprep.mubr.bf16.mxu0 %v312
  %2109 = vmatmul.mubr.bf16.gmra.mrb[0].mxu0 %v311
  %v2110 = vpop.f32.mrb[0].mxu0
  %v2111 = vadd.f32 %v1918, %v2110
  %v2112 = vpop.f32.mrb[0].mxu0
  %v2113 = vadd.f32 %v1920, %v2112
  %v2114 = vpop.f32.mrb[0].mxu0
  %v2115 = vadd.f32 %v1922, %v2114
  %v2116 = vpop.f32.mrb[0].mxu0
  %v2117 = vadd.f32 %v1924, %v2116
  %2118 = vmatprep.mubr.bf16.mxu0 %v319
  %2119 = vmatmul.mubr.bf16.gmra.mrb[0].mxu0 %v318
  %v2120 = vpop.f32.mrb[0].mxu0
  %v2121 = vadd.f32 %v1928, %v2120
  %v2122 = vpop.f32.mrb[0].mxu0
  %v2123 = vadd.f32 %v1930, %v2122
  %v2124 = vpop.f32.mrb[0].mxu0
  %v2125 = vadd.f32 %v1932, %v2124
  %v2126 = vpop.f32.mrb[0].mxu0
  %v2127 = vadd.f32 %v1934, %v2126
  %2128 = vmatprep.mubr.bf16.mxu0 %v326
  %2129 = vmatmul.mubr.bf16.gmra.mrb[0].mxu0 %v325
  %v2130 = vpop.f32.mrb[0].mxu0
  %v2131 = vadd.f32 %v1938, %v2130
  %v2132 = vpop.f32.mrb[0].mxu0
  %v2133 = vadd.f32 %v1940, %v2132
  %v2134 = vpop.f32.mrb[0].mxu0
  %v2135 = vadd.f32 %v1942, %v2134
  %v2136 = vpop.f32.mrb[0].mxu0
  %v2137 = vadd.f32 %v1944, %v2136
  %2138 = vmatprep.mubr.bf16.mxu0 %v333
  %2139 = vmatmul.mubr.bf16.gmra.mrb[0].mxu0 %v332
  %v2140 = vpop.f32.mrb[0].mxu0
  %v2141 = vadd.f32 %v1948, %v2140
  %v2142 = vpop.f32.mrb[0].mxu0
  %v2143 = vadd.f32 %v1950, %v2142
  %v2144 = vpop.f32.mrb[0].mxu0
  %v2145 = vadd.f32 %v1952, %v2144
  %v2146 = vpop.f32.mrb[0].mxu0
  %v2147 = vadd.f32 %v1954, %v2146
  %2148 = vmatprep.mubr.bf16.mxu0 %v340
  %2149 = vmatmul.mubr.bf16.gmra.mrb[0].mxu0 %v339
  %v2150 = vpop.f32.mrb[0].mxu0
  %v2151 = vadd.f32 %v1958, %v2150
  %v2152 = vpop.f32.mrb[0].mxu0
  %v2153 = vadd.f32 %v1960, %v2152
  %v2154 = vpop.f32.mrb[0].mxu0
  %v2155 = vadd.f32 %v1962, %v2154
  %v2156 = vpop.f32.mrb[0].mxu0
  %v2157 = vadd.f32 %v1964, %v2156
  %2158 = vmatprep.mubr.bf16.mxu0 %v347
  %2159 = vmatmul.mubr.bf16.gmra.mrb[0].mxu0 %v346
  %v2160 = vpop.f32.mrb[0].mxu0
  %v2161 = vadd.f32 %v1968, %v2160
  %v2162 = vpop.f32.mrb[0].mxu0
  %v2163 = vadd.f32 %v1970, %v2162
  %v2164 = vpop.f32.mrb[0].mxu0
  %v2165 = vadd.f32 %v1972, %v2164
  %v2166 = vpop.f32.mrb[0].mxu0
  %v2167 = vadd.f32 %v1974, %v2166
  %2168 = vmatprep.mubr.bf16.mxu0 %v354
  %2169 = vmatmul.mubr.bf16.gmra.mrb[0].mxu0 %v353
  %v2170 = vpop.f32.mrb[0].mxu0
  %v2171 = vadd.f32 %v1978, %v2170
  %v2172 = vpop.f32.mrb[0].mxu0
  %v2173 = vadd.f32 %v1980, %v2172
  %v2174 = vpop.f32.mrb[0].mxu0
  %v2175 = vadd.f32 %v1982, %v2174
  %v2176 = vpop.f32.mrb[0].mxu0
  %v2177 = vadd.f32 %v1984, %v2176
  %2178 = vmatprep.mubr.bf16.mxu0 %v361
  %2179 = vmatmul.mubr.bf16.gmra.mrb[0].mxu0 %v360
  %v2180 = vpop.f32.mrb[0].mxu0
  %v2181 = vadd.f32 %v1988, %v2180
  %v2182 = vpop.f32.mrb[0].mxu0
  %v2183 = vadd.f32 %v1990, %v2182
  %v2184 = vpop.f32.mrb[0].mxu0
  %v2185 = vadd.f32 %v1992, %v2184
  %v2186 = vpop.f32.mrb[0].mxu0
  %v2187 = vadd.f32 %v1994, %v2186
  %2188 = vdwg.mxu0
  %2189 = vmatprep.subr.bf16.mxu0 %v1362
  %2190 = vmatpush1.bf16.msra.mxu0 %v1361
  %2191 = vmatprep.subr.bf16.mxu0 0
  %2192 = vmatpush1.bf16.msra.mxu0 0
  %2193 = vmatprep.subr.bf16.mxu0 0
  %2194 = vmatpush1.bf16.msra.mxu0 0
  %2195 = vmatprep.subr.bf16.mxu0 0
  %2196 = vmatpush1.bf16.msra.mxu0 0
  %2197 = vmatprep.subr.bf16.mxu0 0
  %2198 = vmatpush1.bf16.msra.mxu0 0
  %2199 = vmatprep.subr.bf16.mxu0 0
  %2200 = vmatpush1.bf16.msra.mxu0 0
  %2201 = vmatprep.subr.bf16.mxu0 0
  %2202 = vmatpush1.bf16.msra.mxu0 0
  %2203 = vmatprep.subr.bf16.mxu0 0
  %2204 = vmatpush1.bf16.msra.mxu0 0
  %2205 = vmatprep.subr.bf16.mxu0 0
  %2206 = vmatpush1.bf16.msra.mxu0 0
  %2207 = vmatprep.subr.bf16.mxu0 0
  %2208 = vmatpush1.bf16.msra.mxu0 0
  %2209 = vmatprep.subr.bf16.mxu0 0
  %2210 = vmatpush1.bf16.msra.mxu0 0
  %2211 = vmatprep.subr.bf16.mxu0 0
  %2212 = vmatpush1.bf16.msra.mxu0 0
  %2213 = vmatprep.subr.bf16.mxu0 0
  %2214 = vmatpush1.bf16.msra.mxu0 0
  %2215 = vmatprep.subr.bf16.mxu0 0
  %2216 = vmatpush1.bf16.msra.mxu0 0
  %2217 = vmatprep.subr.bf16.mxu0 0
  %2218 = vmatpush1.bf16.msra.mxu0 0
  %2219 = vmatprep.subr.bf16.mxu0 0
  %2220 = vmatpush1.bf16.msra.mxu0 0
  %2221 = vmatprep.mubr.bf16.mxu0 0
  %2222 = vmatmul.mubr.bf16.gmra.mrb[0].mxu0 %v1563
  %v2223 = vpop.f32.mrb[0].mxu0
  %v2224 = vadd.f32 %v2031, %v2223
  %v2225 = vpop.f32.mrb[0].mxu0
  %v2226 = vadd.f32 %v2033, %v2225
  %v2227 = vpop.f32.mrb[0].mxu0
  %v2228 = vadd.f32 %v2035, %v2227
  %v2229 = vpop.f32.mrb[0].mxu0
  %v2230 = vadd.f32 %v2037, %v2229
  %2231 = vmatprep.mubr.bf16.mxu0 0
  %2232 = vmatmul.mubr.bf16.gmra.mrb[0].mxu0 %v1566
  %v2233 = vpop.f32.mrb[0].mxu0
  %v2234 = vadd.f32 %v2041, %v2233
  %v2235 = vpop.f32.mrb[0].mxu0
  %v2236 = vadd.f32 %v2043, %v2235
  %v2237 = vpop.f32.mrb[0].mxu0
  %v2238 = vadd.f32 %v2045, %v2237
  %v2239 = vpop.f32.mrb[0].mxu0
  %v2240 = vadd.f32 %v2047, %v2239
  %2241 = vmatprep.mubr.bf16.mxu0 0
  %2242 = vmatmul.mubr.bf16.gmra.mrb[0].mxu0 %v1569
  %v2243 = vpop.f32.mrb[0].mxu0
  %v2244 = vadd.f32 %v2051, %v2243
  %v2245 = vpop.f32.mrb[0].mxu0
  %v2246 = vadd.f32 %v2053, %v2245
  %v2247 = vpop.f32.mrb[0].mxu0
  %v2248 = vadd.f32 %v2055, %v2247
  %v2249 = vpop.f32.mrb[0].mxu0
  %v2250 = vadd.f32 %v2057, %v2249
  %2251 = vmatprep.mubr.bf16.mxu0 0
  %2252 = vmatmul.mubr.bf16.gmra.mrb[0].mxu0 %v1572
  %v2253 = vpop.f32.mrb[0].mxu0
  %v2254 = vadd.f32 %v2061, %v2253
  %v2255 = vpop.f32.mrb[0].mxu0
  %v2256 = vadd.f32 %v2063, %v2255
  %v2257 = vpop.f32.mrb[0].mxu0
  %v2258 = vadd.f32 %v2065, %v2257
  %v2259 = vpop.f32.mrb[0].mxu0
  %v2260 = vadd.f32 %v2067, %v2259
  %2261 = vmatprep.mubr.bf16.mxu0 0
  %2262 = vmatmul.mubr.bf16.gmra.mrb[0].mxu0 %v1575
  %v2263 = vpop.f32.mrb[0].mxu0
  %v2264 = vadd.f32 %v2071, %v2263
  %v2265 = vpop.f32.mrb[0].mxu0
  %v2266 = vadd.f32 %v2073, %v2265
  %v2267 = vpop.f32.mrb[0].mxu0
  %v2268 = vadd.f32 %v2075, %v2267
  %v2269 = vpop.f32.mrb[0].mxu0
  %v2270 = vadd.f32 %v2077, %v2269
  %2271 = vmatprep.mubr.bf16.mxu0 0
  %2272 = vmatmul.mubr.bf16.gmra.mrb[0].mxu0 %v1578
  %v2273 = vpop.f32.mrb[0].mxu0
  %v2274 = vadd.f32 %v2081, %v2273
  %v2275 = vpop.f32.mrb[0].mxu0
  %v2276 = vadd.f32 %v2083, %v2275
  %v2277 = vpop.f32.mrb[0].mxu0
  %v2278 = vadd.f32 %v2085, %v2277
  %v2279 = vpop.f32.mrb[0].mxu0
  %v2280 = vadd.f32 %v2087, %v2279
  %2281 = vmatprep.mubr.bf16.mxu0 0
  %2282 = vmatmul.mubr.bf16.gmra.mrb[0].mxu0 %v1581
  %v2283 = vpop.f32.mrb[0].mxu0
  %v2284 = vadd.f32 %v2091, %v2283
  %v2285 = vpop.f32.mrb[0].mxu0
  %v2286 = vadd.f32 %v2093, %v2285
  %v2287 = vpop.f32.mrb[0].mxu0
  %v2288 = vadd.f32 %v2095, %v2287
  %v2289 = vpop.f32.mrb[0].mxu0
  %v2290 = vadd.f32 %v2097, %v2289
  %2291 = vmatprep.mubr.bf16.mxu0 0
  %2292 = vmatmul.mubr.bf16.gmra.mrb[0].mxu0 %v1584
  %v2293 = vpop.f32.mrb[0].mxu0
  %v2294 = vadd.f32 %v2101, %v2293
  %v2295 = vpop.f32.mrb[0].mxu0
  %v2296 = vadd.f32 %v2103, %v2295
  %v2297 = vpop.f32.mrb[0].mxu0
  %v2298 = vadd.f32 %v2105, %v2297
  %v2299 = vpop.f32.mrb[0].mxu0
  %v2300 = vadd.f32 %v2107, %v2299
  %2301 = vmatprep.mubr.bf16.mxu0 0
  %2302 = vmatmul.mubr.bf16.gmra.mrb[0].mxu0 %v1587
  %v2303 = vpop.f32.mrb[0].mxu0
  %v2304 = vadd.f32 %v2111, %v2303
  %v2305 = vpop.f32.mrb[0].mxu0
  %v2306 = vadd.f32 %v2113, %v2305
  %v2307 = vpop.f32.mrb[0].mxu0
  %v2308 = vadd.f32 %v2115, %v2307
  %v2309 = vpop.f32.mrb[0].mxu0
  %v2310 = vadd.f32 %v2117, %v2309
  %2311 = vmatprep.mubr.bf16.mxu0 0
  %2312 = vmatmul.mubr.bf16.gmra.mrb[0].mxu0 %v1590
  %v2313 = vpop.f32.mrb[0].mxu0
  %v2314 = vadd.f32 %v2121, %v2313
  %v2315 = vpop.f32.mrb[0].mxu0
  %v2316 = vadd.f32 %v2123, %v2315
  %v2317 = vpop.f32.mrb[0].mxu0
  %v2318 = vadd.f32 %v2125, %v2317
  %v2319 = vpop.f32.mrb[0].mxu0
  %v2320 = vadd.f32 %v2127, %v2319
  %2321 = vmatprep.mubr.bf16.mxu0 0
  %2322 = vmatmul.mubr.bf16.gmra.mrb[0].mxu0 %v1593
  %v2323 = vpop.f32.mrb[0].mxu0
  %v2324 = vadd.f32 %v2131, %v2323
  %v2325 = vpop.f32.mrb[0].mxu0
  %v2326 = vadd.f32 %v2133, %v2325
  %v2327 = vpop.f32.mrb[0].mxu0
  %v2328 = vadd.f32 %v2135, %v2327
  %v2329 = vpop.f32.mrb[0].mxu0
  %v2330 = vadd.f32 %v2137, %v2329
  %2331 = vmatprep.mubr.bf16.mxu0 0
  %2332 = vmatmul.mubr.bf16.gmra.mrb[0].mxu0 %v1596
  %v2333 = vpop.f32.mrb[0].mxu0
  %v2334 = vadd.f32 %v2141, %v2333
  %v2335 = vpop.f32.mrb[0].mxu0
  %v2336 = vadd.f32 %v2143, %v2335
  %v2337 = vpop.f32.mrb[0].mxu0
  %v2338 = vadd.f32 %v2145, %v2337
  %v2339 = vpop.f32.mrb[0].mxu0
  %v2340 = vadd.f32 %v2147, %v2339
  %2341 = vmatprep.mubr.bf16.mxu0 0
  %2342 = vmatmul.mubr.bf16.gmra.mrb[0].mxu0 %v1599
  %v2343 = vpop.f32.mrb[0].mxu0
  %v2344 = vadd.f32 %v2151, %v2343
  %v2345 = vpop.f32.mrb[0].mxu0
  %v2346 = vadd.f32 %v2153, %v2345
  %v2347 = vpop.f32.mrb[0].mxu0
  %v2348 = vadd.f32 %v2155, %v2347
  %v2349 = vpop.f32.mrb[0].mxu0
  %v2350 = vadd.f32 %v2157, %v2349
  %2351 = vmatprep.mubr.bf16.mxu0 0
  %2352 = vmatmul.mubr.bf16.gmra.mrb[0].mxu0 %v1602
  %v2353 = vpop.f32.mrb[0].mxu0
  %v2354 = vadd.f32 %v2161, %v2353
  %v2355 = vpop.f32.mrb[0].mxu0
  %v2356 = vadd.f32 %v2163, %v2355
  %v2357 = vpop.f32.mrb[0].mxu0
  %v2358 = vadd.f32 %v2165, %v2357
  %v2359 = vpop.f32.mrb[0].mxu0
  %v2360 = vadd.f32 %v2167, %v2359
  %2361 = vmatprep.mubr.bf16.mxu0 0
  %2362 = vmatmul.mubr.bf16.gmra.mrb[0].mxu0 %v1605
  %v2363 = vpop.f32.mrb[0].mxu0
  %v2364 = vadd.f32 %v2171, %v2363
  %v2365 = vpop.f32.mrb[0].mxu0
  %v2366 = vadd.f32 %v2173, %v2365
  %v2367 = vpop.f32.mrb[0].mxu0
  %v2368 = vadd.f32 %v2175, %v2367
  %v2369 = vpop.f32.mrb[0].mxu0
  %v2370 = vadd.f32 %v2177, %v2369
  %2371 = vmatprep.mubr.bf16.mxu0 0
  %2372 = vmatmul.mubr.bf16.gmra.mrb[0].mxu0 %v1608
  %v2373 = vpop.f32.mrb[0].mxu0
  %v2374 = vadd.f32 %v2181, %v2373
  %v2375 = vpop.f32.mrb[0].mxu0
  %v2376 = vadd.f32 %v2183, %v2375
  %v2377 = vpop.f32.mrb[0].mxu0
  %v2378 = vadd.f32 %v2185, %v2377
  %v2379 = vpop.f32.mrb[0].mxu0
  %v2380 = vadd.f32 %v2187, %v2379
  %2381 = vdwg.mxu0
  %2382 = vmatprep.subr.bf16.mxu0 %v1172
  %2383 = vmatpush1.bf16.msra.mxu0 %v1171
  %2384 = vmatprep.subr.bf16.mxu0 %v1176
  %2385 = vmatpush1.bf16.msra.mxu0 %v1175
  %2386 = vmatprep.subr.bf16.mxu0 %v1180
  %2387 = vmatpush1.bf16.msra.mxu0 %v1179
  %2388 = vmatprep.subr.bf16.mxu0 %v1184
  %2389 = vmatpush1.bf16.msra.mxu0 %v1183
  %2390 = vmatprep.subr.bf16.mxu0 %v1188
  %2391 = vmatpush1.bf16.msra.mxu0 %v1187
  %2392 = vmatprep.subr.bf16.mxu0 %v1192
  %2393 = vmatpush1.bf16.msra.mxu0 %v1191
  %2394 = vmatprep.subr.bf16.mxu0 %v1196
  %2395 = vmatpush1.bf16.msra.mxu0 %v1195
  %2396 = vmatprep.subr.bf16.mxu0 %v1200
  %2397 = vmatpush1.bf16.msra.mxu0 %v1199
  %2398 = vmatprep.subr.bf16.mxu0 %v1204
  %2399 = vmatpush1.bf16.msra.mxu0 %v1203
  %2400 = vmatprep.subr.bf16.mxu0 %v1208
  %2401 = vmatpush1.bf16.msra.mxu0 %v1207
  %2402 = vmatprep.subr.bf16.mxu0 %v1212
  %2403 = vmatpush1.bf16.msra.mxu0 %v1211
  %2404 = vmatprep.subr.bf16.mxu0 %v1216
  %2405 = vmatpush1.bf16.msra.mxu0 %v1215
  %2406 = vmatprep.subr.bf16.mxu0 %v1220
  %2407 = vmatpush1.bf16.msra.mxu0 %v1219
  %2408 = vmatprep.subr.bf16.mxu0 %v1224
  %2409 = vmatpush1.bf16.msra.mxu0 %v1223
  %2410 = vmatprep.subr.bf16.mxu0 %v1228
  %2411 = vmatpush1.bf16.msra.mxu0 %v1227
  %2412 = vmatprep.subr.bf16.mxu0 %v1232
  %2413 = vmatpush1.bf16.msra.mxu0 %v1231
  %2414 = vmatprep.mubr.bf16.mxu0 %v252
  %2415 = vmatmul.mubr.bf16.gmra.mrb[0].mxu0 %v251
  %v2416 = vpop.f32.mrb[0].mxu0
  %v2417 = vadd.f32 %v572, %v2416
  %v2418 = vpop.f32.mrb[0].mxu0
  %v2419 = vadd.f32 %v576, %v2418
  %v2420 = vpop.f32.mrb[0].mxu0
  %v2421 = vadd.f32 %v572, %v2420
  %v2422 = vpop.f32.mrb[0].mxu0
  %v2423 = vadd.f32 %v576, %v2422
  %2424 = vmatprep.mubr.bf16.mxu0 %v259
  %2425 = vmatmul.mubr.bf16.gmra.mrb[0].mxu0 %v258
  %v2426 = vpop.f32.mrb[0].mxu0
  %v2427 = vadd.f32 %v572, %v2426
  %v2428 = vpop.f32.mrb[0].mxu0
  %v2429 = vadd.f32 %v576, %v2428
  %v2430 = vpop.f32.mrb[0].mxu0
  %v2431 = vadd.f32 %v572, %v2430
  %v2432 = vpop.f32.mrb[0].mxu0
  %v2433 = vadd.f32 %v576, %v2432
  %2434 = vmatprep.mubr.bf16.mxu0 %v266
  %2435 = vmatmul.mubr.bf16.gmra.mrb[0].mxu0 %v265
  %v2436 = vpop.f32.mrb[0].mxu0
  %v2437 = vadd.f32 %v572, %v2436
  %v2438 = vpop.f32.mrb[0].mxu0
  %v2439 = vadd.f32 %v576, %v2438
  %v2440 = vpop.f32.mrb[0].mxu0
  %v2441 = vadd.f32 %v572, %v2440
  %v2442 = vpop.f32.mrb[0].mxu0
  %v2443 = vadd.f32 %v576, %v2442
  %2444 = vmatprep.mubr.bf16.mxu0 %v273
  %2445 = vmatmul.mubr.bf16.gmra.mrb[0].mxu0 %v272
  %v2446 = vpop.f32.mrb[0].mxu0
  %v2447 = vadd.f32 %v572, %v2446
  %v2448 = vpop.f32.mrb[0].mxu0
  %v2449 = vadd.f32 %v576, %v2448
  %v2450 = vpop.f32.mrb[0].mxu0
  %v2451 = vadd.f32 %v572, %v2450
  %v2452 = vpop.f32.mrb[0].mxu0
  %v2453 = vadd.f32 %v576, %v2452
  %2454 = vmatprep.mubr.bf16.mxu0 %v280
  %2455 = vmatmul.mubr.bf16.gmra.mrb[0].mxu0 %v279
  %v2456 = vpop.f32.mrb[0].mxu0
  %v2457 = vadd.f32 %v572, %v2456
  %v2458 = vpop.f32.mrb[0].mxu0
  %v2459 = vadd.f32 %v576, %v2458
  %v2460 = vpop.f32.mrb[0].mxu0
  %v2461 = vadd.f32 %v572, %v2460
  %v2462 = vpop.f32.mrb[0].mxu0
  %v2463 = vadd.f32 %v576, %v2462
  %2464 = vmatprep.mubr.bf16.mxu0 %v287
  %2465 = vmatmul.mubr.bf16.gmra.mrb[0].mxu0 %v286
  %v2466 = vpop.f32.mrb[0].mxu0
  %v2467 = vadd.f32 %v572, %v2466
  %v2468 = vpop.f32.mrb[0].mxu0
  %v2469 = vadd.f32 %v576, %v2468
  %v2470 = vpop.f32.mrb[0].mxu0
  %v2471 = vadd.f32 %v572, %v2470
  %v2472 = vpop.f32.mrb[0].mxu0
  %v2473 = vadd.f32 %v576, %v2472
  %2474 = vmatprep.mubr.bf16.mxu0 %v294
  %2475 = vmatmul.mubr.bf16.gmra.mrb[0].mxu0 %v293
  %v2476 = vpop.f32.mrb[0].mxu0
  %v2477 = vadd.f32 %v572, %v2476
  %v2478 = vpop.f32.mrb[0].mxu0
  %v2479 = vadd.f32 %v576, %v2478
  %v2480 = vpop.f32.mrb[0].mxu0
  %v2481 = vadd.f32 %v572, %v2480
  %v2482 = vpop.f32.mrb[0].mxu0
  %v2483 = vadd.f32 %v576, %v2482
  %2484 = vmatprep.mubr.bf16.mxu0 %v301
  %2485 = vmatmul.mubr.bf16.gmra.mrb[0].mxu0 %v300
  %v2486 = vpop.f32.mrb[0].mxu0
  %v2487 = vadd.f32 %v572, %v2486
  %v2488 = vpop.f32.mrb[0].mxu0
  %v2489 = vadd.f32 %v576, %v2488
  %v2490 = vpop.f32.mrb[0].mxu0
  %v2491 = vadd.f32 %v572, %v2490
  %v2492 = vpop.f32.mrb[0].mxu0
  %v2493 = vadd.f32 %v576, %v2492
  %2494 = vmatprep.mubr.bf16.mxu0 %v308
  %2495 = vmatmul.mubr.bf16.gmra.mrb[0].mxu0 %v307
  %v2496 = vpop.f32.mrb[0].mxu0
  %v2497 = vadd.f32 %v572, %v2496
  %v2498 = vpop.f32.mrb[0].mxu0
  %v2499 = vadd.f32 %v576, %v2498
  %v2500 = vpop.f32.mrb[0].mxu0
  %v2501 = vadd.f32 %v572, %v2500
  %v2502 = vpop.f32.mrb[0].mxu0
  %v2503 = vadd.f32 %v576, %v2502
  %2504 = vmatprep.mubr.bf16.mxu0 %v315
  %2505 = vmatmul.mubr.bf16.gmra.mrb[0].mxu0 %v314
  %v2506 = vpop.f32.mrb[0].mxu0
  %v2507 = vadd.f32 %v572, %v2506
  %v2508 = vpop.f32.mrb[0].mxu0
  %v2509 = vadd.f32 %v576, %v2508
  %v2510 = vpop.f32.mrb[0].mxu0
  %v2511 = vadd.f32 %v572, %v2510
  %v2512 = vpop.f32.mrb[0].mxu0
  %v2513 = vadd.f32 %v576, %v2512
  %2514 = vmatprep.mubr.bf16.mxu0 %v322
  %2515 = vmatmul.mubr.bf16.gmra.mrb[0].mxu0 %v321
  %v2516 = vpop.f32.mrb[0].mxu0
  %v2517 = vadd.f32 %v572, %v2516
  %v2518 = vpop.f32.mrb[0].mxu0
  %v2519 = vadd.f32 %v576, %v2518
  %v2520 = vpop.f32.mrb[0].mxu0
  %v2521 = vadd.f32 %v572, %v2520
  %v2522 = vpop.f32.mrb[0].mxu0
  %v2523 = vadd.f32 %v576, %v2522
  %2524 = vmatprep.mubr.bf16.mxu0 %v329
  %2525 = vmatmul.mubr.bf16.gmra.mrb[0].mxu0 %v328
  %v2526 = vpop.f32.mrb[0].mxu0
  %v2527 = vadd.f32 %v572, %v2526
  %v2528 = vpop.f32.mrb[0].mxu0
  %v2529 = vadd.f32 %v576, %v2528
  %v2530 = vpop.f32.mrb[0].mxu0
  %v2531 = vadd.f32 %v572, %v2530
  %v2532 = vpop.f32.mrb[0].mxu0
  %v2533 = vadd.f32 %v576, %v2532
  %2534 = vmatprep.mubr.bf16.mxu0 %v336
  %2535 = vmatmul.mubr.bf16.gmra.mrb[0].mxu0 %v335
  %v2536 = vpop.f32.mrb[0].mxu0
  %v2537 = vadd.f32 %v572, %v2536
  %v2538 = vpop.f32.mrb[0].mxu0
  %v2539 = vadd.f32 %v576, %v2538
  %v2540 = vpop.f32.mrb[0].mxu0
  %v2541 = vadd.f32 %v572, %v2540
  %v2542 = vpop.f32.mrb[0].mxu0
  %v2543 = vadd.f32 %v576, %v2542
  %2544 = vmatprep.mubr.bf16.mxu0 %v343
  %2545 = vmatmul.mubr.bf16.gmra.mrb[0].mxu0 %v342
  %v2546 = vpop.f32.mrb[0].mxu0
  %v2547 = vadd.f32 %v572, %v2546
  %v2548 = vpop.f32.mrb[0].mxu0
  %v2549 = vadd.f32 %v576, %v2548
  %v2550 = vpop.f32.mrb[0].mxu0
  %v2551 = vadd.f32 %v572, %v2550
  %v2552 = vpop.f32.mrb[0].mxu0
  %v2553 = vadd.f32 %v576, %v2552
  %2554 = vmatprep.mubr.bf16.mxu0 %v350
  %2555 = vmatmul.mubr.bf16.gmra.mrb[0].mxu0 %v349
  %v2556 = vpop.f32.mrb[0].mxu0
  %v2557 = vadd.f32 %v572, %v2556
  %v2558 = vpop.f32.mrb[0].mxu0
  %v2559 = vadd.f32 %v576, %v2558
  %v2560 = vpop.f32.mrb[0].mxu0
  %v2561 = vadd.f32 %v572, %v2560
  %v2562 = vpop.f32.mrb[0].mxu0
  %v2563 = vadd.f32 %v576, %v2562
  %2564 = vmatprep.mubr.bf16.mxu0 %v357
  %2565 = vmatmul.mubr.bf16.gmra.mrb[0].mxu0 %v356
  %v2566 = vpop.f32.mrb[0].mxu0
  %v2567 = vadd.f32 %v572, %v2566
  %v2568 = vpop.f32.mrb[0].mxu0
  %v2569 = vadd.f32 %v576, %v2568
  %v2570 = vpop.f32.mrb[0].mxu0
  %v2571 = vadd.f32 %v572, %v2570
  %v2572 = vpop.f32.mrb[0].mxu0
  %v2573 = vadd.f32 %v576, %v2572
  %2574 = vdwg.mxu0
  %2575 = vmatprep.subr.bf16.mxu0 %v1236
  %2576 = vmatpush1.bf16.msra.mxu0 %v1235
  %2577 = vmatprep.subr.bf16.mxu0 %v1240
  %2578 = vmatpush1.bf16.msra.mxu0 %v1239
  %2579 = vmatprep.subr.bf16.mxu0 %v1244
  %2580 = vmatpush1.bf16.msra.mxu0 %v1243
  %2581 = vmatprep.subr.bf16.mxu0 %v1248
  %2582 = vmatpush1.bf16.msra.mxu0 %v1247
  %2583 = vmatprep.subr.bf16.mxu0 %v1252
  %2584 = vmatpush1.bf16.msra.mxu0 %v1251
  %2585 = vmatprep.subr.bf16.mxu0 %v1256
  %2586 = vmatpush1.bf16.msra.mxu0 %v1255
  %2587 = vmatprep.subr.bf16.mxu0 %v1260
  %2588 = vmatpush1.bf16.msra.mxu0 %v1259
  %2589 = vmatprep.subr.bf16.mxu0 %v1264
  %2590 = vmatpush1.bf16.msra.mxu0 %v1263
  %2591 = vmatprep.subr.bf16.mxu0 %v1268
  %2592 = vmatpush1.bf16.msra.mxu0 %v1267
  %2593 = vmatprep.subr.bf16.mxu0 %v1272
  %2594 = vmatpush1.bf16.msra.mxu0 %v1271
  %2595 = vmatprep.subr.bf16.mxu0 %v1276
  %2596 = vmatpush1.bf16.msra.mxu0 %v1275
  %2597 = vmatprep.subr.bf16.mxu0 %v1280
  %2598 = vmatpush1.bf16.msra.mxu0 %v1279
  %2599 = vmatprep.subr.bf16.mxu0 %v1284
  %2600 = vmatpush1.bf16.msra.mxu0 %v1283
  %2601 = vmatprep.subr.bf16.mxu0 %v1288
  %2602 = vmatpush1.bf16.msra.mxu0 %v1287
  %2603 = vmatprep.subr.bf16.mxu0 %v1292
  %2604 = vmatpush1.bf16.msra.mxu0 %v1291
  %2605 = vmatprep.subr.bf16.mxu0 %v1296
  %2606 = vmatpush1.bf16.msra.mxu0 %v1295
  %2607 = vmatprep.mubr.bf16.mxu0 %v254
  %2608 = vmatmul.mubr.bf16.gmra.mrb[0].mxu0 %v253
  %v2609 = vpop.f32.mrb[0].mxu0
  %v2610 = vadd.f32 %v2417, %v2609
  %v2611 = vpop.f32.mrb[0].mxu0
  %v2612 = vadd.f32 %v2419, %v2611
  %v2613 = vpop.f32.mrb[0].mxu0
  %v2614 = vadd.f32 %v2421, %v2613
  %v2615 = vpop.f32.mrb[0].mxu0
  %v2616 = vadd.f32 %v2423, %v2615
  %2617 = vmatprep.mubr.bf16.mxu0 %v261
  %2618 = vmatmul.mubr.bf16.gmra.mrb[0].mxu0 %v260
  %v2619 = vpop.f32.mrb[0].mxu0
  %v2620 = vadd.f32 %v2427, %v2619
  %v2621 = vpop.f32.mrb[0].mxu0
  %v2622 = vadd.f32 %v2429, %v2621
  %v2623 = vpop.f32.mrb[0].mxu0
  %v2624 = vadd.f32 %v2431, %v2623
  %v2625 = vpop.f32.mrb[0].mxu0
  %v2626 = vadd.f32 %v2433, %v2625
  %2627 = vmatprep.mubr.bf16.mxu0 %v268
  %2628 = vmatmul.mubr.bf16.gmra.mrb[0].mxu0 %v267
  %v2629 = vpop.f32.mrb[0].mxu0
  %v2630 = vadd.f32 %v2437, %v2629
  %v2631 = vpop.f32.mrb[0].mxu0
  %v2632 = vadd.f32 %v2439, %v2631
  %v2633 = vpop.f32.mrb[0].mxu0
  %v2634 = vadd.f32 %v2441, %v2633
  %v2635 = vpop.f32.mrb[0].mxu0
  %v2636 = vadd.f32 %v2443, %v2635
  %2637 = vmatprep.mubr.bf16.mxu0 %v275
  %2638 = vmatmul.mubr.bf16.gmra.mrb[0].mxu0 %v274
  %v2639 = vpop.f32.mrb[0].mxu0
  %v2640 = vadd.f32 %v2447, %v2639
  %v2641 = vpop.f32.mrb[0].mxu0
  %v2642 = vadd.f32 %v2449, %v2641
  %v2643 = vpop.f32.mrb[0].mxu0
  %v2644 = vadd.f32 %v2451, %v2643
  %v2645 = vpop.f32.mrb[0].mxu0
  %v2646 = vadd.f32 %v2453, %v2645
  %2647 = vmatprep.mubr.bf16.mxu0 %v282
  %2648 = vmatmul.mubr.bf16.gmra.mrb[0].mxu0 %v281
  %v2649 = vpop.f32.mrb[0].mxu0
  %v2650 = vadd.f32 %v2457, %v2649
  %v2651 = vpop.f32.mrb[0].mxu0
  %v2652 = vadd.f32 %v2459, %v2651
  %v2653 = vpop.f32.mrb[0].mxu0
  %v2654 = vadd.f32 %v2461, %v2653
  %v2655 = vpop.f32.mrb[0].mxu0
  %v2656 = vadd.f32 %v2463, %v2655
  %2657 = vmatprep.mubr.bf16.mxu0 %v289
  %2658 = vmatmul.mubr.bf16.gmra.mrb[0].mxu0 %v288
  %v2659 = vpop.f32.mrb[0].mxu0
  %v2660 = vadd.f32 %v2467, %v2659
  %v2661 = vpop.f32.mrb[0].mxu0
  %v2662 = vadd.f32 %v2469, %v2661
  %v2663 = vpop.f32.mrb[0].mxu0
  %v2664 = vadd.f32 %v2471, %v2663
  %v2665 = vpop.f32.mrb[0].mxu0
  %v2666 = vadd.f32 %v2473, %v2665
  %2667 = vmatprep.mubr.bf16.mxu0 %v296
  %2668 = vmatmul.mubr.bf16.gmra.mrb[0].mxu0 %v295
  %v2669 = vpop.f32.mrb[0].mxu0
  %v2670 = vadd.f32 %v2477, %v2669
  %v2671 = vpop.f32.mrb[0].mxu0
  %v2672 = vadd.f32 %v2479, %v2671
  %v2673 = vpop.f32.mrb[0].mxu0
  %v2674 = vadd.f32 %v2481, %v2673
  %v2675 = vpop.f32.mrb[0].mxu0
  %v2676 = vadd.f32 %v2483, %v2675
  %2677 = vmatprep.mubr.bf16.mxu0 %v303
  %2678 = vmatmul.mubr.bf16.gmra.mrb[0].mxu0 %v302
  %v2679 = vpop.f32.mrb[0].mxu0
  %v2680 = vadd.f32 %v2487, %v2679
  %v2681 = vpop.f32.mrb[0].mxu0
  %v2682 = vadd.f32 %v2489, %v2681
  %v2683 = vpop.f32.mrb[0].mxu0
  %v2684 = vadd.f32 %v2491, %v2683
  %v2685 = vpop.f32.mrb[0].mxu0
  %v2686 = vadd.f32 %v2493, %v2685
  %2687 = vmatprep.mubr.bf16.mxu0 %v310
  %2688 = vmatmul.mubr.bf16.gmra.mrb[0].mxu0 %v309
  %v2689 = vpop.f32.mrb[0].mxu0
  %v2690 = vadd.f32 %v2497, %v2689
  %v2691 = vpop.f32.mrb[0].mxu0
  %v2692 = vadd.f32 %v2499, %v2691
  %v2693 = vpop.f32.mrb[0].mxu0
  %v2694 = vadd.f32 %v2501, %v2693
  %v2695 = vpop.f32.mrb[0].mxu0
  %v2696 = vadd.f32 %v2503, %v2695
  %2697 = vmatprep.mubr.bf16.mxu0 %v317
  %2698 = vmatmul.mubr.bf16.gmra.mrb[0].mxu0 %v316
  %v2699 = vpop.f32.mrb[0].mxu0
  %v2700 = vadd.f32 %v2507, %v2699
  %v2701 = vpop.f32.mrb[0].mxu0
  %v2702 = vadd.f32 %v2509, %v2701
  %v2703 = vpop.f32.mrb[0].mxu0
  %v2704 = vadd.f32 %v2511, %v2703
  %v2705 = vpop.f32.mrb[0].mxu0
  %v2706 = vadd.f32 %v2513, %v2705
  %2707 = vmatprep.mubr.bf16.mxu0 %v324
  %2708 = vmatmul.mubr.bf16.gmra.mrb[0].mxu0 %v323
  %v2709 = vpop.f32.mrb[0].mxu0
  %v2710 = vadd.f32 %v2517, %v2709
  %v2711 = vpop.f32.mrb[0].mxu0
  %v2712 = vadd.f32 %v2519, %v2711
  %v2713 = vpop.f32.mrb[0].mxu0
  %v2714 = vadd.f32 %v2521, %v2713
  %v2715 = vpop.f32.mrb[0].mxu0
  %v2716 = vadd.f32 %v2523, %v2715
  %2717 = vmatprep.mubr.bf16.mxu0 %v331
  %2718 = vmatmul.mubr.bf16.gmra.mrb[0].mxu0 %v330
  %v2719 = vpop.f32.mrb[0].mxu0
  %v2720 = vadd.f32 %v2527, %v2719
  %v2721 = vpop.f32.mrb[0].mxu0
  %v2722 = vadd.f32 %v2529, %v2721
  %v2723 = vpop.f32.mrb[0].mxu0
  %v2724 = vadd.f32 %v2531, %v2723
  %v2725 = vpop.f32.mrb[0].mxu0
  %v2726 = vadd.f32 %v2533, %v2725
  %2727 = vmatprep.mubr.bf16.mxu0 %v338
  %2728 = vmatmul.mubr.bf16.gmra.mrb[0].mxu0 %v337
  %v2729 = vpop.f32.mrb[0].mxu0
  %v2730 = vadd.f32 %v2537, %v2729
  %v2731 = vpop.f32.mrb[0].mxu0
  %v2732 = vadd.f32 %v2539, %v2731
  %v2733 = vpop.f32.mrb[0].mxu0
  %v2734 = vadd.f32 %v2541, %v2733
  %v2735 = vpop.f32.mrb[0].mxu0
  %v2736 = vadd.f32 %v2543, %v2735
  %2737 = vmatprep.mubr.bf16.mxu0 %v345
  %2738 = vmatmul.mubr.bf16.gmra.mrb[0].mxu0 %v344
  %v2739 = vpop.f32.mrb[0].mxu0
  %v2740 = vadd.f32 %v2547, %v2739
  %v2741 = vpop.f32.mrb[0].mxu0
  %v2742 = vadd.f32 %v2549, %v2741
  %v2743 = vpop.f32.mrb[0].mxu0
  %v2744 = vadd.f32 %v2551, %v2743
  %v2745 = vpop.f32.mrb[0].mxu0
  %v2746 = vadd.f32 %v2553, %v2745
  %2747 = vmatprep.mubr.bf16.mxu0 %v352
  %2748 = vmatmul.mubr.bf16.gmra.mrb[0].mxu0 %v351
  %v2749 = vpop.f32.mrb[0].mxu0
  %v2750 = vadd.f32 %v2557, %v2749
  %v2751 = vpop.f32.mrb[0].mxu0
  %v2752 = vadd.f32 %v2559, %v2751
  %v2753 = vpop.f32.mrb[0].mxu0
  %v2754 = vadd.f32 %v2561, %v2753
  %v2755 = vpop.f32.mrb[0].mxu0
  %v2756 = vadd.f32 %v2563, %v2755
  %2757 = vmatprep.mubr.bf16.mxu0 %v359
  %2758 = vmatmul.mubr.bf16.gmra.mrb[0].mxu0 %v358
  %v2759 = vpop.f32.mrb[0].mxu0
  %v2760 = vadd.f32 %v2567, %v2759
  %v2761 = vpop.f32.mrb[0].mxu0
  %v2762 = vadd.f32 %v2569, %v2761
  %v2763 = vpop.f32.mrb[0].mxu0
  %v2764 = vadd.f32 %v2571, %v2763
  %v2765 = vpop.f32.mrb[0].mxu0
  %v2766 = vadd.f32 %v2573, %v2765
  %2767 = vdwg.mxu0
  %2768 = vmatprep.subr.bf16.mxu0 %v1300
  %2769 = vmatpush1.bf16.msra.mxu0 %v1299
  %2770 = vmatprep.subr.bf16.mxu0 %v1304
  %2771 = vmatpush1.bf16.msra.mxu0 %v1303
  %2772 = vmatprep.subr.bf16.mxu0 %v1308
  %2773 = vmatpush1.bf16.msra.mxu0 %v1307
  %2774 = vmatprep.subr.bf16.mxu0 %v1312
  %2775 = vmatpush1.bf16.msra.mxu0 %v1311
  %2776 = vmatprep.subr.bf16.mxu0 %v1316
  %2777 = vmatpush1.bf16.msra.mxu0 %v1315
  %2778 = vmatprep.subr.bf16.mxu0 %v1320
  %2779 = vmatpush1.bf16.msra.mxu0 %v1319
  %2780 = vmatprep.subr.bf16.mxu0 %v1324
  %2781 = vmatpush1.bf16.msra.mxu0 %v1323
  %2782 = vmatprep.subr.bf16.mxu0 %v1328
  %2783 = vmatpush1.bf16.msra.mxu0 %v1327
  %2784 = vmatprep.subr.bf16.mxu0 %v1332
  %2785 = vmatpush1.bf16.msra.mxu0 %v1331
  %2786 = vmatprep.subr.bf16.mxu0 %v1336
  %2787 = vmatpush1.bf16.msra.mxu0 %v1335
  %2788 = vmatprep.subr.bf16.mxu0 %v1340
  %2789 = vmatpush1.bf16.msra.mxu0 %v1339
  %2790 = vmatprep.subr.bf16.mxu0 %v1344
  %2791 = vmatpush1.bf16.msra.mxu0 %v1343
  %2792 = vmatprep.subr.bf16.mxu0 %v1348
  %2793 = vmatpush1.bf16.msra.mxu0 %v1347
  %2794 = vmatprep.subr.bf16.mxu0 %v1352
  %2795 = vmatpush1.bf16.msra.mxu0 %v1351
  %2796 = vmatprep.subr.bf16.mxu0 %v1356
  %2797 = vmatpush1.bf16.msra.mxu0 %v1355
  %2798 = vmatprep.subr.bf16.mxu0 %v1360
  %2799 = vmatpush1.bf16.msra.mxu0 %v1359
  %2800 = vmatprep.mubr.bf16.mxu0 %v256
  %2801 = vmatmul.mubr.bf16.gmra.mrb[0].mxu0 %v255
  %v2802 = vpop.f32.mrb[0].mxu0
  %v2803 = vadd.f32 %v2610, %v2802
  %v2804 = vpop.f32.mrb[0].mxu0
  %v2805 = vadd.f32 %v2612, %v2804
  %v2806 = vpop.f32.mrb[0].mxu0
  %v2807 = vadd.f32 %v2614, %v2806
  %v2808 = vpop.f32.mrb[0].mxu0
  %v2809 = vadd.f32 %v2616, %v2808
  %2810 = vmatprep.mubr.bf16.mxu0 %v263
  %2811 = vmatmul.mubr.bf16.gmra.mrb[0].mxu0 %v262
  %v2812 = vpop.f32.mrb[0].mxu0
  %v2813 = vadd.f32 %v2620, %v2812
  %v2814 = vpop.f32.mrb[0].mxu0
  %v2815 = vadd.f32 %v2622, %v2814
  %v2816 = vpop.f32.mrb[0].mxu0
  %v2817 = vadd.f32 %v2624, %v2816
  %v2818 = vpop.f32.mrb[0].mxu0
  %v2819 = vadd.f32 %v2626, %v2818
  %2820 = vmatprep.mubr.bf16.mxu0 %v270
  %2821 = vmatmul.mubr.bf16.gmra.mrb[0].mxu0 %v269
  %v2822 = vpop.f32.mrb[0].mxu0
  %v2823 = vadd.f32 %v2630, %v2822
  %v2824 = vpop.f32.mrb[0].mxu0
  %v2825 = vadd.f32 %v2632, %v2824
  %v2826 = vpop.f32.mrb[0].mxu0
  %v2827 = vadd.f32 %v2634, %v2826
  %v2828 = vpop.f32.mrb[0].mxu0
  %v2829 = vadd.f32 %v2636, %v2828
  %2830 = vmatprep.mubr.bf16.mxu0 %v277
  %2831 = vmatmul.mubr.bf16.gmra.mrb[0].mxu0 %v276
  %v2832 = vpop.f32.mrb[0].mxu0
  %v2833 = vadd.f32 %v2640, %v2832
  %v2834 = vpop.f32.mrb[0].mxu0
  %v2835 = vadd.f32 %v2642, %v2834
  %v2836 = vpop.f32.mrb[0].mxu0
  %v2837 = vadd.f32 %v2644, %v2836
  %v2838 = vpop.f32.mrb[0].mxu0
  %v2839 = vadd.f32 %v2646, %v2838
  %2840 = vmatprep.mubr.bf16.mxu0 %v284
  %2841 = vmatmul.mubr.bf16.gmra.mrb[0].mxu0 %v283
  %v2842 = vpop.f32.mrb[0].mxu0
  %v2843 = vadd.f32 %v2650, %v2842
  %v2844 = vpop.f32.mrb[0].mxu0
  %v2845 = vadd.f32 %v2652, %v2844
  %v2846 = vpop.f32.mrb[0].mxu0
  %v2847 = vadd.f32 %v2654, %v2846
  %v2848 = vpop.f32.mrb[0].mxu0
  %v2849 = vadd.f32 %v2656, %v2848
  %2850 = vmatprep.mubr.bf16.mxu0 %v291
  %2851 = vmatmul.mubr.bf16.gmra.mrb[0].mxu0 %v290
  %v2852 = vpop.f32.mrb[0].mxu0
  %v2853 = vadd.f32 %v2660, %v2852
  %v2854 = vpop.f32.mrb[0].mxu0
  %v2855 = vadd.f32 %v2662, %v2854
  %v2856 = vpop.f32.mrb[0].mxu0
  %v2857 = vadd.f32 %v2664, %v2856
  %v2858 = vpop.f32.mrb[0].mxu0
  %v2859 = vadd.f32 %v2666, %v2858
  %2860 = vmatprep.mubr.bf16.mxu0 %v298
  %2861 = vmatmul.mubr.bf16.gmra.mrb[0].mxu0 %v297
  %v2862 = vpop.f32.mrb[0].mxu0
  %v2863 = vadd.f32 %v2670, %v2862
  %v2864 = vpop.f32.mrb[0].mxu0
  %v2865 = vadd.f32 %v2672, %v2864
  %v2866 = vpop.f32.mrb[0].mxu0
  %v2867 = vadd.f32 %v2674, %v2866
  %v2868 = vpop.f32.mrb[0].mxu0
  %v2869 = vadd.f32 %v2676, %v2868
  %2870 = vmatprep.mubr.bf16.mxu0 %v305
  %2871 = vmatmul.mubr.bf16.gmra.mrb[0].mxu0 %v304
  %v2872 = vpop.f32.mrb[0].mxu0
  %v2873 = vadd.f32 %v2680, %v2872
  %v2874 = vpop.f32.mrb[0].mxu0
  %v2875 = vadd.f32 %v2682, %v2874
  %v2876 = vpop.f32.mrb[0].mxu0
  %v2877 = vadd.f32 %v2684, %v2876
  %v2878 = vpop.f32.mrb[0].mxu0
  %v2879 = vadd.f32 %v2686, %v2878
  %2880 = vmatprep.mubr.bf16.mxu0 %v312
  %2881 = vmatmul.mubr.bf16.gmra.mrb[0].mxu0 %v311
  %v2882 = vpop.f32.mrb[0].mxu0
  %v2883 = vadd.f32 %v2690, %v2882
  %v2884 = vpop.f32.mrb[0].mxu0
  %v2885 = vadd.f32 %v2692, %v2884
  %v2886 = vpop.f32.mrb[0].mxu0
  %v2887 = vadd.f32 %v2694, %v2886
  %v2888 = vpop.f32.mrb[0].mxu0
  %v2889 = vadd.f32 %v2696, %v2888
  %2890 = vmatprep.mubr.bf16.mxu0 %v319
  %2891 = vmatmul.mubr.bf16.gmra.mrb[0].mxu0 %v318
  %v2892 = vpop.f32.mrb[0].mxu0
  %v2893 = vadd.f32 %v2700, %v2892
  %v2894 = vpop.f32.mrb[0].mxu0
  %v2895 = vadd.f32 %v2702, %v2894
  %v2896 = vpop.f32.mrb[0].mxu0
  %v2897 = vadd.f32 %v2704, %v2896
  %v2898 = vpop.f32.mrb[0].mxu0
  %v2899 = vadd.f32 %v2706, %v2898
  %2900 = vmatprep.mubr.bf16.mxu0 %v326
  %2901 = vmatmul.mubr.bf16.gmra.mrb[0].mxu0 %v325
  %v2902 = vpop.f32.mrb[0].mxu0
  %v2903 = vadd.f32 %v2710, %v2902
  %v2904 = vpop.f32.mrb[0].mxu0
  %v2905 = vadd.f32 %v2712, %v2904
  %v2906 = vpop.f32.mrb[0].mxu0
  %v2907 = vadd.f32 %v2714, %v2906
  %v2908 = vpop.f32.mrb[0].mxu0
  %v2909 = vadd.f32 %v2716, %v2908
  %2910 = vmatprep.mubr.bf16.mxu0 %v333
  %2911 = vmatmul.mubr.bf16.gmra.mrb[0].mxu0 %v332
  %v2912 = vpop.f32.mrb[0].mxu0
  %v2913 = vadd.f32 %v2720, %v2912
  %v2914 = vpop.f32.mrb[0].mxu0
  %v2915 = vadd.f32 %v2722, %v2914
  %v2916 = vpop.f32.mrb[0].mxu0
  %v2917 = vadd.f32 %v2724, %v2916
  %v2918 = vpop.f32.mrb[0].mxu0
  %v2919 = vadd.f32 %v2726, %v2918
  %2920 = vmatprep.mubr.bf16.mxu0 %v340
  %2921 = vmatmul.mubr.bf16.gmra.mrb[0].mxu0 %v339
  %v2922 = vpop.f32.mrb[0].mxu0
  %v2923 = vadd.f32 %v2730, %v2922
  %v2924 = vpop.f32.mrb[0].mxu0
  %v2925 = vadd.f32 %v2732, %v2924
  %v2926 = vpop.f32.mrb[0].mxu0
  %v2927 = vadd.f32 %v2734, %v2926
  %v2928 = vpop.f32.mrb[0].mxu0
  %v2929 = vadd.f32 %v2736, %v2928
  %2930 = vmatprep.mubr.bf16.mxu0 %v347
  %2931 = vmatmul.mubr.bf16.gmra.mrb[0].mxu0 %v346
  %v2932 = vpop.f32.mrb[0].mxu0
  %v2933 = vadd.f32 %v2740, %v2932
  %v2934 = vpop.f32.mrb[0].mxu0
  %v2935 = vadd.f32 %v2742, %v2934
  %v2936 = vpop.f32.mrb[0].mxu0
  %v2937 = vadd.f32 %v2744, %v2936
  %v2938 = vpop.f32.mrb[0].mxu0
  %v2939 = vadd.f32 %v2746, %v2938
  %2940 = vmatprep.mubr.bf16.mxu0 %v354
  %2941 = vmatmul.mubr.bf16.gmra.mrb[0].mxu0 %v353
  %v2942 = vpop.f32.mrb[0].mxu0
  %v2943 = vadd.f32 %v2750, %v2942
  %v2944 = vpop.f32.mrb[0].mxu0
  %v2945 = vadd.f32 %v2752, %v2944
  %v2946 = vpop.f32.mrb[0].mxu0
  %v2947 = vadd.f32 %v2754, %v2946
  %v2948 = vpop.f32.mrb[0].mxu0
  %v2949 = vadd.f32 %v2756, %v2948
  %2950 = vmatprep.mubr.bf16.mxu0 %v361
  %2951 = vmatmul.mubr.bf16.gmra.mrb[0].mxu0 %v360
  %v2952 = vpop.f32.mrb[0].mxu0
  %v2953 = vadd.f32 %v2760, %v2952
  %v2954 = vpop.f32.mrb[0].mxu0
  %v2955 = vadd.f32 %v2762, %v2954
  %v2956 = vpop.f32.mrb[0].mxu0
  %v2957 = vadd.f32 %v2764, %v2956
  %v2958 = vpop.f32.mrb[0].mxu0
  %v2959 = vadd.f32 %v2766, %v2958
  %2960 = vdwg.mxu0
  %2961 = vmatprep.subr.bf16.mxu0 %v1364
  %2962 = vmatpush1.bf16.msra.mxu0 %v1363
  %2963 = vmatprep.subr.bf16.mxu0 0
  %2964 = vmatpush1.bf16.msra.mxu0 0
  %2965 = vmatprep.subr.bf16.mxu0 0
  %2966 = vmatpush1.bf16.msra.mxu0 0
  %2967 = vmatprep.subr.bf16.mxu0 0
  %2968 = vmatpush1.bf16.msra.mxu0 0
  %2969 = vmatprep.subr.bf16.mxu0 0
  %2970 = vmatpush1.bf16.msra.mxu0 0
  %2971 = vmatprep.subr.bf16.mxu0 0
  %2972 = vmatpush1.bf16.msra.mxu0 0
  %2973 = vmatprep.subr.bf16.mxu0 0
  %2974 = vmatpush1.bf16.msra.mxu0 0
  %2975 = vmatprep.subr.bf16.mxu0 0
  %2976 = vmatpush1.bf16.msra.mxu0 0
  %2977 = vmatprep.subr.bf16.mxu0 0
  %2978 = vmatpush1.bf16.msra.mxu0 0
  %2979 = vmatprep.subr.bf16.mxu0 0
  %2980 = vmatpush1.bf16.msra.mxu0 0
  %2981 = vmatprep.subr.bf16.mxu0 0
  %2982 = vmatpush1.bf16.msra.mxu0 0
  %2983 = vmatprep.subr.bf16.mxu0 0
  %2984 = vmatpush1.bf16.msra.mxu0 0
  %2985 = vmatprep.subr.bf16.mxu0 0
  %2986 = vmatpush1.bf16.msra.mxu0 0
  %2987 = vmatprep.subr.bf16.mxu0 0
  %2988 = vmatpush1.bf16.msra.mxu0 0
  %2989 = vmatprep.subr.bf16.mxu0 0
  %2990 = vmatpush1.bf16.msra.mxu0 0
  %2991 = vmatprep.subr.bf16.mxu0 0
  %2992 = vmatpush1.bf16.msra.mxu0 0
  %2993 = vmatprep.mubr.bf16.mxu0 0
  %2994 = vmatmul.mubr.bf16.gmra.mrb[0].mxu0 %v1563
  %v2995 = vpop.f32.mrb[0].mxu0
  %v2996 = vadd.f32 %v2803, %v2995
  %v2997 = vpop.f32.mrb[0].mxu0
  %v2998 = vadd.f32 %v2805, %v2997
  %v2999 = vpop.f32.mrb[0].mxu0
  %v3000 = vadd.f32 %v2807, %v2999
  %v3001 = vpop.f32.mrb[0].mxu0
  %v3002 = vadd.f32 %v2809, %v3001
  %3003 = vmatprep.mubr.bf16.mxu0 0
  %3004 = vmatmul.mubr.bf16.gmra.mrb[0].mxu0 %v1566
  %v3005 = vpop.f32.mrb[0].mxu0
  %v3006 = vadd.f32 %v2813, %v3005
  %v3007 = vpop.f32.mrb[0].mxu0
  %v3008 = vadd.f32 %v2815, %v3007
  %v3009 = vpop.f32.mrb[0].mxu0
  %v3010 = vadd.f32 %v2817, %v3009
  %v3011 = vpop.f32.mrb[0].mxu0
  %v3012 = vadd.f32 %v2819, %v3011
  %3013 = vmatprep.mubr.bf16.mxu0 0
  %3014 = vmatmul.mubr.bf16.gmra.mrb[0].mxu0 %v1569
  %v3015 = vpop.f32.mrb[0].mxu0
  %v3016 = vadd.f32 %v2823, %v3015
  %v3017 = vpop.f32.mrb[0].mxu0
  %v3018 = vadd.f32 %v2825, %v3017
  %v3019 = vpop.f32.mrb[0].mxu0
  %v3020 = vadd.f32 %v2827, %v3019
  %v3021 = vpop.f32.mrb[0].mxu0
  %v3022 = vadd.f32 %v2829, %v3021
  %3023 = vmatprep.mubr.bf16.mxu0 0
  %3024 = vmatmul.mubr.bf16.gmra.mrb[0].mxu0 %v1572
  %v3025 = vpop.f32.mrb[0].mxu0
  %v3026 = vadd.f32 %v2833, %v3025
  %v3027 = vpop.f32.mrb[0].mxu0
  %v3028 = vadd.f32 %v2835, %v3027
  %v3029 = vpop.f32.mrb[0].mxu0
  %v3030 = vadd.f32 %v2837, %v3029
  %v3031 = vpop.f32.mrb[0].mxu0
  %v3032 = vadd.f32 %v2839, %v3031
  %3033 = vmatprep.mubr.bf16.mxu0 0
  %3034 = vmatmul.mubr.bf16.gmra.mrb[0].mxu0 %v1575
  %v3035 = vpop.f32.mrb[0].mxu0
  %v3036 = vadd.f32 %v2843, %v3035
  %v3037 = vpop.f32.mrb[0].mxu0
  %v3038 = vadd.f32 %v2845, %v3037
  %v3039 = vpop.f32.mrb[0].mxu0
  %v3040 = vadd.f32 %v2847, %v3039
  %v3041 = vpop.f32.mrb[0].mxu0
  %v3042 = vadd.f32 %v2849, %v3041
  %3043 = vmatprep.mubr.bf16.mxu0 0
  %3044 = vmatmul.mubr.bf16.gmra.mrb[0].mxu0 %v1578
  %v3045 = vpop.f32.mrb[0].mxu0
  %v3046 = vadd.f32 %v2853, %v3045
  %v3047 = vpop.f32.mrb[0].mxu0
  %v3048 = vadd.f32 %v2855, %v3047
  %v3049 = vpop.f32.mrb[0].mxu0
  %v3050 = vadd.f32 %v2857, %v3049
  %v3051 = vpop.f32.mrb[0].mxu0
  %v3052 = vadd.f32 %v2859, %v3051
  %3053 = vmatprep.mubr.bf16.mxu0 0
  %3054 = vmatmul.mubr.bf16.gmra.mrb[0].mxu0 %v1581
  %v3055 = vpop.f32.mrb[0].mxu0
  %v3056 = vadd.f32 %v2863, %v3055
  %v3057 = vpop.f32.mrb[0].mxu0
  %v3058 = vadd.f32 %v2865, %v3057
  %v3059 = vpop.f32.mrb[0].mxu0
  %v3060 = vadd.f32 %v2867, %v3059
  %v3061 = vpop.f32.mrb[0].mxu0
  %v3062 = vadd.f32 %v2869, %v3061
  %3063 = vmatprep.mubr.bf16.mxu0 0
  %3064 = vmatmul.mubr.bf16.gmra.mrb[0].mxu0 %v1584
  %v3065 = vpop.f32.mrb[0].mxu0
  %v3066 = vadd.f32 %v2873, %v3065
  %v3067 = vpop.f32.mrb[0].mxu0
  %v3068 = vadd.f32 %v2875, %v3067
  %v3069 = vpop.f32.mrb[0].mxu0
  %v3070 = vadd.f32 %v2877, %v3069
  %v3071 = vpop.f32.mrb[0].mxu0
  %v3072 = vadd.f32 %v2879, %v3071
  %3073 = vmatprep.mubr.bf16.mxu0 0
  %3074 = vmatmul.mubr.bf16.gmra.mrb[0].mxu0 %v1587
  %v3075 = vpop.f32.mrb[0].mxu0
  %v3076 = vadd.f32 %v2883, %v3075
  %v3077 = vpop.f32.mrb[0].mxu0
  %v3078 = vadd.f32 %v2885, %v3077
  %v3079 = vpop.f32.mrb[0].mxu0
  %v3080 = vadd.f32 %v2887, %v3079
  %v3081 = vpop.f32.mrb[0].mxu0
  %v3082 = vadd.f32 %v2889, %v3081
  %3083 = vmatprep.mubr.bf16.mxu0 0
  %3084 = vmatmul.mubr.bf16.gmra.mrb[0].mxu0 %v1590
  %v3085 = vpop.f32.mrb[0].mxu0
  %v3086 = vadd.f32 %v2893, %v3085
  %v3087 = vpop.f32.mrb[0].mxu0
  %v3088 = vadd.f32 %v2895, %v3087
  %v3089 = vpop.f32.mrb[0].mxu0
  %v3090 = vadd.f32 %v2897, %v3089
  %v3091 = vpop.f32.mrb[0].mxu0
  %v3092 = vadd.f32 %v2899, %v3091
  %3093 = vmatprep.mubr.bf16.mxu0 0
  %3094 = vmatmul.mubr.bf16.gmra.mrb[0].mxu0 %v1593
  %v3095 = vpop.f32.mrb[0].mxu0
  %v3096 = vadd.f32 %v2903, %v3095
  %v3097 = vpop.f32.mrb[0].mxu0
  %v3098 = vadd.f32 %v2905, %v3097
  %v3099 = vpop.f32.mrb[0].mxu0
  %v3100 = vadd.f32 %v2907, %v3099
  %v3101 = vpop.f32.mrb[0].mxu0
  %v3102 = vadd.f32 %v2909, %v3101
  %3103 = vmatprep.mubr.bf16.mxu0 0
  %3104 = vmatmul.mubr.bf16.gmra.mrb[0].mxu0 %v1596
  %v3105 = vpop.f32.mrb[0].mxu0
  %v3106 = vadd.f32 %v2913, %v3105
  %v3107 = vpop.f32.mrb[0].mxu0
  %v3108 = vadd.f32 %v2915, %v3107
  %v3109 = vpop.f32.mrb[0].mxu0
  %v3110 = vadd.f32 %v2917, %v3109
  %v3111 = vpop.f32.mrb[0].mxu0
  %v3112 = vadd.f32 %v2919, %v3111
  %3113 = vmatprep.mubr.bf16.mxu0 0
  %3114 = vmatmul.mubr.bf16.gmra.mrb[0].mxu0 %v1599
  %v3115 = vpop.f32.mrb[0].mxu0
  %v3116 = vadd.f32 %v2923, %v3115
  %v3117 = vpop.f32.mrb[0].mxu0
  %v3118 = vadd.f32 %v2925, %v3117
  %v3119 = vpop.f32.mrb[0].mxu0
  %v3120 = vadd.f32 %v2927, %v3119
  %v3121 = vpop.f32.mrb[0].mxu0
  %v3122 = vadd.f32 %v2929, %v3121
  %3123 = vmatprep.mubr.bf16.mxu0 0
  %3124 = vmatmul.mubr.bf16.gmra.mrb[0].mxu0 %v1602
  %v3125 = vpop.f32.mrb[0].mxu0
  %v3126 = vadd.f32 %v2933, %v3125
  %v3127 = vpop.f32.mrb[0].mxu0
  %v3128 = vadd.f32 %v2935, %v3127
  %v3129 = vpop.f32.mrb[0].mxu0
  %v3130 = vadd.f32 %v2937, %v3129
  %v3131 = vpop.f32.mrb[0].mxu0
  %v3132 = vadd.f32 %v2939, %v3131
  %3133 = vmatprep.mubr.bf16.mxu0 0
  %3134 = vmatmul.mubr.bf16.gmra.mrb[0].mxu0 %v1605
  %v3135 = vpop.f32.mrb[0].mxu0
  %v3136 = vadd.f32 %v2943, %v3135
  %v3137 = vpop.f32.mrb[0].mxu0
  %v3138 = vadd.f32 %v2945, %v3137
  %v3139 = vpop.f32.mrb[0].mxu0
  %v3140 = vadd.f32 %v2947, %v3139
  %v3141 = vpop.f32.mrb[0].mxu0
  %v3142 = vadd.f32 %v2949, %v3141
  %3143 = vmatprep.mubr.bf16.mxu0 0
  %3144 = vmatmul.mubr.bf16.gmra.mrb[0].mxu0 %v1608
  %v3145 = vpop.f32.mrb[0].mxu0
  %v3146 = vadd.f32 %v2953, %v3145
  %v3147 = vpop.f32.mrb[0].mxu0
  %v3148 = vadd.f32 %v2955, %v3147
  %v3149 = vpop.f32.mrb[0].mxu0
  %v3150 = vadd.f32 %v2957, %v3149
  %v3151 = vpop.f32.mrb[0].mxu0
  %v3152 = vadd.f32 %v2959, %v3151
  %3153 = vdwg.mxu0
  %v3154 = vmax.f32 %v2224, 0.0
  %v3155 = vmax.f32 %v2226, 0.0
  %v3156 = vmax.f32 %v2996, 0.0
  %v3157 = vmax.f32 %v2998, 0.0
  %v3158 = vmax.f32 %v2228, 0.0
  %v3159 = vmax.f32 %v2230, 0.0
  %v3160 = vmax.f32 %v3000, 0.0
  %v3161 = vmax.f32 %v3002, 0.0
  %v3162 = vmax.f32 %v2234, 0.0
  %v3163 = vmax.f32 %v2236, 0.0
  %v3164 = vmax.f32 %v3006, 0.0
  %v3165 = vmax.f32 %v3008, 0.0
  %v3166 = vmax.f32 %v2238, 0.0
  %v3167 = vmax.f32 %v2240, 0.0
  %v3168 = vmax.f32 %v3010, 0.0
  %v3169 = vmax.f32 %v3012, 0.0
  %v3170 = vmax.f32 %v2244, 0.0
  %v3171 = vmax.f32 %v2246, 0.0
  %v3172 = vmax.f32 %v3016, 0.0
  %v3173 = vmax.f32 %v3018, 0.0
  %v3174 = vmax.f32 %v2248, 0.0
  %v3175 = vmax.f32 %v2250, 0.0
  %v3176 = vmax.f32 %v3020, 0.0
  %v3177 = vmax.f32 %v3022, 0.0
  %v3178 = vmax.f32 %v2254, 0.0
  %v3179 = vmax.f32 %v2256, 0.0
  %v3180 = vmax.f32 %v3026, 0.0
  %v3181 = vmax.f32 %v3028, 0.0
  %v3182 = vmax.f32 %v2258, 0.0
  %v3183 = vmax.f32 %v2260, 0.0
  %v3184 = vmax.f32 %v3030, 0.0
  %v3185 = vmax.f32 %v3032, 0.0
  %v3186 = vmax.f32 %v2264, 0.0
  %v3187 = vmax.f32 %v2266, 0.0
  %v3188 = vmax.f32 %v3036, 0.0
  %v3189 = vmax.f32 %v3038, 0.0
  %v3190 = vmax.f32 %v2268, 0.0
  %v3191 = vmax.f32 %v2270, 0.0
  %v3192 = vmax.f32 %v3040, 0.0
  %v3193 = vmax.f32 %v3042, 0.0
  %v3194 = vmax.f32 %v2274, 0.0
  %v3195 = vmax.f32 %v2276, 0.0
  %v3196 = vmax.f32 %v3046, 0.0
  %v3197 = vmax.f32 %v3048, 0.0
  %v3198 = vmax.f32 %v2278, 0.0
  %v3199 = vmax.f32 %v2280, 0.0
  %v3200 = vmax.f32 %v3050, 0.0
  %v3201 = vmax.f32 %v3052, 0.0
  %v3202 = vmax.f32 %v2284, 0.0
  %v3203 = vmax.f32 %v2286, 0.0
  %v3204 = vmax.f32 %v3056, 0.0
  %v3205 = vmax.f32 %v3058, 0.0
  %v3206 = vmax.f32 %v2288, 0.0
  %v3207 = vmax.f32 %v2290, 0.0
  %v3208 = vmax.f32 %v3060, 0.0
  %v3209 = vmax.f32 %v3062, 0.0
  %v3210 = vmax.f32 %v2294, 0.0
  %v3211 = vmax.f32 %v2296, 0.0
  %v3212 = vmax.f32 %v3066, 0.0
  %v3213 = vmax.f32 %v3068, 0.0
  %v3214 = vmax.f32 %v2298, 0.0
  %v3215 = vmax.f32 %v2300, 0.0
  %v3216 = vmax.f32 %v3070, 0.0
  %v3217 = vmax.f32 %v3072, 0.0
  %v3218 = vmax.f32 %v2304, 0.0
  %v3219 = vmax.f32 %v2306, 0.0
  %v3220 = vmax.f32 %v3076, 0.0
  %v3221 = vmax.f32 %v3078, 0.0
  %v3222 = vmax.f32 %v2308, 0.0
  %v3223 = vmax.f32 %v2310, 0.0
  %v3224 = vmax.f32 %v3080, 0.0
  %v3225 = vmax.f32 %v3082, 0.0
  %v3226 = vmax.f32 %v2314, 0.0
  %v3227 = vmax.f32 %v2316, 0.0
  %v3228 = vmax.f32 %v3086, 0.0
  %v3229 = vmax.f32 %v3088, 0.0
  %v3230 = vmax.f32 %v2318, 0.0
  %v3231 = vmax.f32 %v2320, 0.0
  %v3232 = vmax.f32 %v3090, 0.0
  %v3233 = vmax.f32 %v3092, 0.0
  %v3234 = vmax.f32 %v2324, 0.0
  %v3235 = vmax.f32 %v2326, 0.0
  %v3236 = vmax.f32 %v3096, 0.0
  %v3237 = vmax.f32 %v3098, 0.0
  %v3238 = vmax.f32 %v2328, 0.0
  %v3239 = vmax.f32 %v2330, 0.0
  %v3240 = vmax.f32 %v3100, 0.0
  %v3241 = vmax.f32 %v3102, 0.0
  %v3242 = vmax.f32 %v2334, 0.0
  %v3243 = vmax.f32 %v2336, 0.0
  %v3244 = vmax.f32 %v3106, 0.0
  %v3245 = vmax.f32 %v3108, 0.0
  %v3246 = vmax.f32 %v2338, 0.0
  %v3247 = vmax.f32 %v2340, 0.0
  %v3248 = vmax.f32 %v3110, 0.0
  %v3249 = vmax.f32 %v3112, 0.0
  %v3250 = vmax.f32 %v2344, 0.0
  %v3251 = vmax.f32 %v2346, 0.0
  %v3252 = vmax.f32 %v3116, 0.0
  %v3253 = vmax.f32 %v3118, 0.0
  %v3254 = vmax.f32 %v2348, 0.0
  %v3255 = vmax.f32 %v2350, 0.0
  %v3256 = vmax.f32 %v3120, 0.0
  %v3257 = vmax.f32 %v3122, 0.0
  %v3258 = vmax.f32 %v2354, 0.0
  %v3259 = vmax.f32 %v2356, 0.0
  %v3260 = vmax.f32 %v3126, 0.0
  %v3261 = vmax.f32 %v3128, 0.0
  %v3262 = vmax.f32 %v2358, 0.0
  %v3263 = vmax.f32 %v2360, 0.0
  %v3264 = vmax.f32 %v3130, 0.0
  %v3265 = vmax.f32 %v3132, 0.0
  %v3266 = vmax.f32 %v2364, 0.0
  %v3267 = vmax.f32 %v2366, 0.0
  %v3268 = vmax.f32 %v3136, 0.0
  %v3269 = vmax.f32 %v3138, 0.0
  %v3270 = vmax.f32 %v2368, 0.0
  %v3271 = vmax.f32 %v2370, 0.0
  %v3272 = vmax.f32 %v3140, 0.0
  %v3273 = vmax.f32 %v3142, 0.0
  %v3274 = vmax.f32 %v2374, 0.0
  %v3275 = vmax.f32 %v2376, 0.0
  %v3276 = vmax.f32 %v3146, 0.0
  %v3277 = vmax.f32 %v3148, 0.0
  %v3278 = vmax.f32 %v2378, 0.0
  %v3279 = vmax.f32 %v2380, 0.0
  %v3280 = vmax.f32 %v3150, 0.0
  %v3281 = vmax.f32 %v3152, 0.0
  %v3282 = vpack.c.bf16 %v3158, %v3154
  %v3283 = vpack.c.bf16 %v3159, %v3155
  %v3284 = vpack.c.bf16 %v3160, %v3156
  %v3285 = vpack.c.bf16 %v3161, %v3157
  %v3286 = vpack.c.bf16 %v3166, %v3162
  %v3287 = vpack.c.bf16 %v3167, %v3163
  %v3288 = vpack.c.bf16 %v3168, %v3164
  %v3289 = vpack.c.bf16 %v3169, %v3165
  %v3290 = vpack.c.bf16 %v3174, %v3170
  %v3291 = vpack.c.bf16 %v3175, %v3171
  %v3292 = vpack.c.bf16 %v3176, %v3172
  %v3293 = vpack.c.bf16 %v3177, %v3173
  %v3294 = vpack.c.bf16 %v3182, %v3178
  %v3295 = vpack.c.bf16 %v3183, %v3179
  %v3296 = vpack.c.bf16 %v3184, %v3180
  %v3297 = vpack.c.bf16 %v3185, %v3181
  %v3298 = vpack.c.bf16 %v3190, %v3186
  %v3299 = vpack.c.bf16 %v3191, %v3187
  %v3300 = vpack.c.bf16 %v3192, %v3188
  %v3301 = vpack.c.bf16 %v3193, %v3189
  %v3302 = vpack.c.bf16 %v3198, %v3194
  %v3303 = vpack.c.bf16 %v3199, %v3195
  %v3304 = vpack.c.bf16 %v3200, %v3196
  %v3305 = vpack.c.bf16 %v3201, %v3197
  %v3306 = vpack.c.bf16 %v3206, %v3202
  %v3307 = vpack.c.bf16 %v3207, %v3203
  %v3308 = vpack.c.bf16 %v3208, %v3204
  %v3309 = vpack.c.bf16 %v3209, %v3205
  %v3310 = vpack.c.bf16 %v3214, %v3210
  %v3311 = vpack.c.bf16 %v3215, %v3211
  %v3312 = vpack.c.bf16 %v3216, %v3212
  %v3313 = vpack.c.bf16 %v3217, %v3213
  %v3314 = vpack.c.bf16 %v3222, %v3218
  %v3315 = vpack.c.bf16 %v3223, %v3219
  %v3316 = vpack.c.bf16 %v3224, %v3220
  %v3317 = vpack.c.bf16 %v3225, %v3221
  %v3318 = vpack.c.bf16 %v3230, %v3226
  %v3319 = vpack.c.bf16 %v3231, %v3227
  %v3320 = vpack.c.bf16 %v3232, %v3228
  %v3321 = vpack.c.bf16 %v3233, %v3229
  %v3322 = vpack.c.bf16 %v3238, %v3234
  %v3323 = vpack.c.bf16 %v3239, %v3235
  %v3324 = vpack.c.bf16 %v3240, %v3236
  %v3325 = vpack.c.bf16 %v3241, %v3237
  %v3326 = vpack.c.bf16 %v3246, %v3242
  %v3327 = vpack.c.bf16 %v3247, %v3243
  %v3328 = vpack.c.bf16 %v3248, %v3244
  %v3329 = vpack.c.bf16 %v3249, %v3245
  %v3330 = vpack.c.bf16 %v3254, %v3250
  %v3331 = vpack.c.bf16 %v3255, %v3251
  %v3332 = vpack.c.bf16 %v3256, %v3252
  %v3333 = vpack.c.bf16 %v3257, %v3253
  %v3334 = vpack.c.bf16 %v3262, %v3258
  %v3335 = vpack.c.bf16 %v3263, %v3259
  %v3336 = vpack.c.bf16 %v3264, %v3260
  %v3337 = vpack.c.bf16 %v3265, %v3261
  %v3338 = vpack.c.bf16 %v3270, %v3266
  %v3339 = vpack.c.bf16 %v3271, %v3267
  %v3340 = vpack.c.bf16 %v3272, %v3268
  %v3341 = vpack.c.bf16 %v3273, %v3269
  %v3342 = vpack.c.bf16 %v3278, %v3274
  %v3343 = vpack.c.bf16 %v3279, %v3275
  %v3344 = vpack.c.bf16 %v3280, %v3276
  %v3345 = vpack.c.bf16 %v3281, %v3277
  %v3346 = vld [vmem:[%s3] sm:$0xf]
  %v3347 = vld [vmem:[%s3 + $0x4] sm:$0xf]
  %v3348 = vld [vmem:[%s3 + $0x8] sm:$0xf]
  %v3349 = vld [vmem:[%s3 + $0xc] sm:$0xf]
  %v3350 = vld [vmem:[%s3 + $0x10] sm:$0xf]
  %v3351 = vld [vmem:[%s3 + $0x14] sm:$0xf]
  %v3352 = vld [vmem:[%s3 + $0x18] sm:$0xf]
  %v3353 = vld [vmem:[%s3 + $0x1c] sm:$0xf]
  %v3354 = vld [vmem:[%s3 + $0x20] sm:$0xf]
  %v3355 = vld [vmem:[%s3 + $0x24] sm:$0xf]
  %v3356 = vld [vmem:[%s3 + $0x28] sm:$0xf]
  %v3357 = vld [vmem:[%s3 + $0x2c] sm:$0xf]
  %v3358 = vld [vmem:[%s3 + $0x30] sm:$0xf]
  %v3359 = vld [vmem:[%s3 + $0x34] sm:$0xf]
  %v3360 = vld [vmem:[%s3 + $0x38] sm:$0xf]
  %v3361 = vld [vmem:[%s3 + $0x3c] sm:$0xf]
  %v3362 = vld [vmem:[%s3 + $0x40] sm:$0xf]
  %v3363 = vld [vmem:[%s3 + $0x44] sm:$0xf]
  %v3364 = vld [vmem:[%s3 + $0x48] sm:$0xf]
  %v3365 = vld [vmem:[%s3 + $0x4c] sm:$0xf]
  %v3366 = vld [vmem:[%s3 + $0x50] sm:$0xf]
  %v3367 = vld [vmem:[%s3 + $0x54] sm:$0xf]
  %v3368 = vld [vmem:[%s3 + $0x58] sm:$0xf]
  %v3369 = vld [vmem:[%s3 + $0x5c] sm:$0xf]
  %v3370 = vld [vmem:[%s3 + $0x60] sm:$0xf]
  %v3371 = vld [vmem:[%s3 + $0x64] sm:$0xf]
  %v3372 = vld [vmem:[%s3 + $0x68] sm:$0xf]
  %v3373 = vld [vmem:[%s3 + $0x6c] sm:$0xf]
  %v3374 = vld [vmem:[%s3 + $0x70] sm:$0xf]
  %v3375 = vld [vmem:[%s3 + $0x74] sm:$0xf]
  %v3376 = vld [vmem:[%s3 + $0x78] sm:$0xf]
  %v3377 = vld [vmem:[%s3 + $0x7c] sm:$0xf]
  %v3378 = vld [vmem:[%s3 + $0x80] sm:$0xf]
  %v3379 = vld [vmem:[%s3 + $0x84] sm:$0xf]
  %v3380 = vld [vmem:[%s3 + $0x88] sm:$0xf]
  %v3381 = vld [vmem:[%s3 + $0x8c] sm:$0xf]
  %v3382 = vld [vmem:[%s3 + $0x90] sm:$0xf]
  %v3383 = vld [vmem:[%s3 + $0x94] sm:$0xf]
  %v3384 = vld [vmem:[%s3 + $0x98] sm:$0xf]
  %v3385 = vld [vmem:[%s3 + $0x9c] sm:$0xf]
  %v3386 = vld [vmem:[%s3 + $0xa0] sm:$0xf]
  %v3387 = vld [vmem:[%s3 + $0xa4] sm:$0xf]
  %v3388 = vld [vmem:[%s3 + $0xa8] sm:$0xf]
  %v3389 = vld [vmem:[%s3 + $0xac] sm:$0xf]
  %v3390 = vld [vmem:[%s3 + $0xb0] sm:$0xf]
  %v3391 = vld [vmem:[%s3 + $0xb4] sm:$0xf]
  %v3392 = vld [vmem:[%s3 + $0xb8] sm:$0xf]
  %v3393 = vld [vmem:[%s3 + $0xbc] sm:$0xf]
  %v3394 = vld [vmem:[%s3 + $0xc0] sm:$0xf]
  %v3395 = vld [vmem:[%s3 + $0xc4] sm:$0xf]
  %v3396 = vld [vmem:[%s3 + $0xc8] sm:$0xf]
  %v3397 = vld [vmem:[%s3 + $0xcc] sm:$0xf]
  %v3398 = vld [vmem:[%s3 + $0xd0] sm:$0xf]
  %v3399 = vld [vmem:[%s3 + $0xd4] sm:$0xf]
  %v3400 = vld [vmem:[%s3 + $0xd8] sm:$0xf]
  %v3401 = vld [vmem:[%s3 + $0xdc] sm:$0xf]
  %v3402 = vld [vmem:[%s3 + $0xe0] sm:$0xf]
  %v3403 = vld [vmem:[%s3 + $0xe4] sm:$0xf]
  %v3404 = vld [vmem:[%s3 + $0xe8] sm:$0xf]
  %v3405 = vld [vmem:[%s3 + $0xec] sm:$0xf]
  %v3406 = vld [vmem:[%s3 + $0xf0] sm:$0xf]
  %v3407 = vld [vmem:[%s3 + $0xf4] sm:$0xf]
  %v3408 = vld [vmem:[%s3 + $0xf8] sm:$0xf]
  %v3409 = vld [vmem:[%s3 + $0xfc] sm:$0xf]
  %v3410 = vld [vmem:[%s4] sm:$0x1]
  %v3412 = vlaneseq
  %v3413 = vshrl.u32 %v3412, 7
  %v3414 = vsub.s32 0, %v3413
  %v3415 = vrot.slane %v3410, %v3414
  %v3481 = vunpack.c.l.b16 %v3346
  %v3482 = vunpack.c.l.b16 %v3347
  %v3483 = vunpack.c.l.b16 %v3348
  %v3484 = vunpack.c.l.b16 %v3349
  %v3485 = vunpack.c.l.b16 %v3350
  %v3486 = vunpack.c.l.b16 %v3351
  %v3487 = vunpack.c.l.b16 %v3352
  %v3488 = vunpack.c.l.b16 %v3353
  %v3489 = vunpack.c.l.b16 %v3354
  %v3490 = vunpack.c.l.b16 %v3355
  %v3491 = vunpack.c.l.b16 %v3356
  %v3492 = vunpack.c.l.b16 %v3357
  %v3493 = vunpack.c.l.b16 %v3358
  %v3494 = vunpack.c.l.b16 %v3359
  %v3495 = vunpack.c.l.b16 %v3360
  %v3496 = vunpack.c.l.b16 %v3361
  %v3497 = vunpack.c.l.b16 %v3362
  %v3498 = vunpack.c.l.b16 %v3363
  %v3499 = vunpack.c.l.b16 %v3364
  %v3500 = vunpack.c.l.b16 %v3365
  %v3501 = vunpack.c.l.b16 %v3366
  %v3502 = vunpack.c.l.b16 %v3367
  %v3503 = vunpack.c.l.b16 %v3368
  %v3504 = vunpack.c.l.b16 %v3369
  %v3505 = vunpack.c.l.b16 %v3370
  %v3506 = vunpack.c.l.b16 %v3371
  %v3507 = vunpack.c.l.b16 %v3372
  %v3508 = vunpack.c.l.b16 %v3373
  %v3509 = vunpack.c.l.b16 %v3374
  %v3510 = vunpack.c.l.b16 %v3375
  %v3511 = vunpack.c.l.b16 %v3376
  %v3512 = vunpack.c.l.b16 %v3377
  %v3513 = vunpack.c.l.b16 %v3378
  %v3514 = vunpack.c.l.b16 %v3379
  %v3515 = vunpack.c.l.b16 %v3380
  %v3516 = vunpack.c.l.b16 %v3381
  %v3517 = vunpack.c.l.b16 %v3382
  %v3518 = vunpack.c.l.b16 %v3383
  %v3519 = vunpack.c.l.b16 %v3384
  %v3520 = vunpack.c.l.b16 %v3385
  %v3521 = vunpack.c.l.b16 %v3386
  %v3522 = vunpack.c.l.b16 %v3387
  %v3523 = vunpack.c.l.b16 %v3388
  %v3524 = vunpack.c.l.b16 %v3389
  %v3525 = vunpack.c.l.b16 %v3390
  %v3526 = vunpack.c.l.b16 %v3391
  %v3527 = vunpack.c.l.b16 %v3392
  %v3528 = vunpack.c.l.b16 %v3393
  %v3529 = vunpack.c.l.b16 %v3394
  %v3530 = vunpack.c.l.b16 %v3395
  %v3531 = vunpack.c.l.b16 %v3396
  %v3532 = vunpack.c.l.b16 %v3397
  %v3533 = vunpack.c.l.b16 %v3398
  %v3534 = vunpack.c.l.b16 %v3399
  %v3535 = vunpack.c.l.b16 %v3400
  %v3536 = vunpack.c.l.b16 %v3401
  %v3537 = vunpack.c.l.b16 %v3402
  %v3538 = vunpack.c.l.b16 %v3403
  %v3539 = vunpack.c.l.b16 %v3404
  %v3540 = vunpack.c.l.b16 %v3405
  %v3541 = vunpack.c.l.b16 %v3406
  %v3542 = vunpack.c.l.b16 %v3407
  %v3543 = vunpack.c.l.b16 %v3408
  %v3544 = vunpack.c.l.b16 %v3409
  %v3545 = vpack.c.b16 %v3482, %v3481
  %v3546 = vpack.c.b16 %v3484, %v3483
  %v3547 = vpack.c.b16 %v3486, %v3485
  %v3548 = vpack.c.b16 %v3488, %v3487
  %v3549 = vpack.c.b16 %v3490, %v3489
  %v3550 = vpack.c.b16 %v3492, %v3491
  %v3551 = vpack.c.b16 %v3494, %v3493
  %v3552 = vpack.c.b16 %v3496, %v3495
  %v3553 = vpack.c.b16 %v3498, %v3497
  %v3554 = vpack.c.b16 %v3500, %v3499
  %v3555 = vpack.c.b16 %v3502, %v3501
  %v3556 = vpack.c.b16 %v3504, %v3503
  %v3557 = vpack.c.b16 %v3506, %v3505
  %v3558 = vpack.c.b16 %v3508, %v3507
  %v3559 = vpack.c.b16 %v3510, %v3509
  %v3560 = vpack.c.b16 %v3512, %v3511
  %v3561 = vpack.c.b16 %v3514, %v3513
  %v3562 = vpack.c.b16 %v3516, %v3515
  %v3563 = vpack.c.b16 %v3518, %v3517
  %v3564 = vpack.c.b16 %v3520, %v3519
  %v3565 = vpack.c.b16 %v3522, %v3521
  %v3566 = vpack.c.b16 %v3524, %v3523
  %v3567 = vpack.c.b16 %v3526, %v3525
  %v3568 = vpack.c.b16 %v3528, %v3527
  %v3569 = vpack.c.b16 %v3530, %v3529
  %v3570 = vpack.c.b16 %v3532, %v3531
  %v3571 = vpack.c.b16 %v3534, %v3533
  %v3572 = vpack.c.b16 %v3536, %v3535
  %v3573 = vpack.c.b16 %v3538, %v3537
  %v3574 = vpack.c.b16 %v3540, %v3539
  %v3575 = vpack.c.b16 %v3542, %v3541
  %v3576 = vpack.c.b16 %v3544, %v3543
  %3609 = vmatprep.subr.bf16.mxu0 0
  %3610 = vmatpush1.bf16.msra.mxu0 %v3545
  %3611 = vmatprep.subr.bf16.mxu0 0
  %3612 = vmatpush1.bf16.msra.mxu0 %v3546
  %3613 = vmatprep.subr.bf16.mxu0 0
  %3614 = vmatpush1.bf16.msra.mxu0 %v3547
  %3615 = vmatprep.subr.bf16.mxu0 0
  %3616 = vmatpush1.bf16.msra.mxu0 %v3548
  %3617 = vmatprep.subr.bf16.mxu0 0
  %3618 = vmatpush1.bf16.msra.mxu0 %v3549
  %3619 = vmatprep.subr.bf16.mxu0 0
  %3620 = vmatpush1.bf16.msra.mxu0 %v3550
  %3621 = vmatprep.subr.bf16.mxu0 0
  %3622 = vmatpush1.bf16.msra.mxu0 %v3551
  %3623 = vmatprep.subr.bf16.mxu0 0
  %3624 = vmatpush1.bf16.msra.mxu0 %v3552
  %3625 = vmatprep.subr.bf16.mxu0 0
  %3626 = vmatpush1.bf16.msra.mxu0 %v3553
  %3627 = vmatprep.subr.bf16.mxu0 0
  %3628 = vmatpush1.bf16.msra.mxu0 %v3554
  %3629 = vmatprep.subr.bf16.mxu0 0
  %3630 = vmatpush1.bf16.msra.mxu0 %v3555
  %3631 = vmatprep.subr.bf16.mxu0 0
  %3632 = vmatpush1.bf16.msra.mxu0 %v3556
  %3633 = vmatprep.subr.bf16.mxu0 0
  %3634 = vmatpush1.bf16.msra.mxu0 %v3557
  %3635 = vmatprep.subr.bf16.mxu0 0
  %3636 = vmatpush1.bf16.msra.mxu0 %v3558
  %3637 = vmatprep.subr.bf16.mxu0 0
  %3638 = vmatpush1.bf16.msra.mxu0 %v3559
  %3639 = vmatprep.subr.bf16.mxu0 0
  %3640 = vmatpush1.bf16.msra.mxu0 %v3560
  %3641 = vmatprep.mubr.bf16.mxu0 %v3283
  %3642 = vmatmul.mubr.bf16.gmra.mrb[0].mxu0 %v3282
  %v3643 = vpop.f32.mrb[0].mxu0
  %v3644 = vadd.f32 %v3415, %v3643
  %v3645 = vpop.f32.mrb[0].mxu0
  %v3646 = vpop.f32.mrb[0].mxu0
  %v3647 = vadd.f32 %v3415, %v3646
  %v3648 = vpop.f32.mrb[0].mxu0
  %3649 = vmatprep.mubr.bf16.mxu0 %v3287
  %3650 = vmatmul.mubr.bf16.gmra.mrb[0].mxu0 %v3286
  %v3651 = vpop.f32.mrb[0].mxu0
  %v3652 = vadd.f32 %v3415, %v3651
  %v3653 = vpop.f32.mrb[0].mxu0
  %v3654 = vpop.f32.mrb[0].mxu0
  %v3655 = vadd.f32 %v3415, %v3654
  %v3656 = vpop.f32.mrb[0].mxu0
  %3657 = vmatprep.mubr.bf16.mxu0 %v3291
  %3658 = vmatmul.mubr.bf16.gmra.mrb[0].mxu0 %v3290
  %v3659 = vpop.f32.mrb[0].mxu0
  %v3660 = vadd.f32 %v3415, %v3659
  %v3661 = vpop.f32.mrb[0].mxu0
  %v3662 = vpop.f32.mrb[0].mxu0
  %v3663 = vadd.f32 %v3415, %v3662
  %v3664 = vpop.f32.mrb[0].mxu0
  %3665 = vmatprep.mubr.bf16.mxu0 %v3295
  %3666 = vmatmul.mubr.bf16.gmra.mrb[0].mxu0 %v3294
  %v3667 = vpop.f32.mrb[0].mxu0
  %v3668 = vadd.f32 %v3415, %v3667
  %v3669 = vpop.f32.mrb[0].mxu0
  %v3670 = vpop.f32.mrb[0].mxu0
  %v3671 = vadd.f32 %v3415, %v3670
  %v3672 = vpop.f32.mrb[0].mxu0
  %3673 = vmatprep.mubr.bf16.mxu0 %v3299
  %3674 = vmatmul.mubr.bf16.gmra.mrb[0].mxu0 %v3298
  %v3675 = vpop.f32.mrb[0].mxu0
  %v3676 = vadd.f32 %v3415, %v3675
  %v3677 = vpop.f32.mrb[0].mxu0
  %v3678 = vpop.f32.mrb[0].mxu0
  %v3679 = vadd.f32 %v3415, %v3678
  %v3680 = vpop.f32.mrb[0].mxu0
  %3681 = vmatprep.mubr.bf16.mxu0 %v3303
  %3682 = vmatmul.mubr.bf16.gmra.mrb[0].mxu0 %v3302
  %v3683 = vpop.f32.mrb[0].mxu0
  %v3684 = vadd.f32 %v3415, %v3683
  %v3685 = vpop.f32.mrb[0].mxu0
  %v3686 = vpop.f32.mrb[0].mxu0
  %v3687 = vadd.f32 %v3415, %v3686
  %v3688 = vpop.f32.mrb[0].mxu0
  %3689 = vmatprep.mubr.bf16.mxu0 %v3307
  %3690 = vmatmul.mubr.bf16.gmra.mrb[0].mxu0 %v3306
  %v3691 = vpop.f32.mrb[0].mxu0
  %v3692 = vadd.f32 %v3415, %v3691
  %v3693 = vpop.f32.mrb[0].mxu0
  %v3694 = vpop.f32.mrb[0].mxu0
  %v3695 = vadd.f32 %v3415, %v3694
  %v3696 = vpop.f32.mrb[0].mxu0
  %3697 = vmatprep.mubr.bf16.mxu0 %v3311
  %3698 = vmatmul.mubr.bf16.gmra.mrb[0].mxu0 %v3310
  %v3699 = vpop.f32.mrb[0].mxu0
  %v3700 = vadd.f32 %v3415, %v3699
  %v3701 = vpop.f32.mrb[0].mxu0
  %v3702 = vpop.f32.mrb[0].mxu0
  %v3703 = vadd.f32 %v3415, %v3702
  %v3704 = vpop.f32.mrb[0].mxu0
  %3705 = vmatprep.mubr.bf16.mxu0 %v3315
  %3706 = vmatmul.mubr.bf16.gmra.mrb[0].mxu0 %v3314
  %v3707 = vpop.f32.mrb[0].mxu0
  %v3708 = vadd.f32 %v3415, %v3707
  %v3709 = vpop.f32.mrb[0].mxu0
  %v3710 = vpop.f32.mrb[0].mxu0
  %v3711 = vadd.f32 %v3415, %v3710
  %v3712 = vpop.f32.mrb[0].mxu0
  %3713 = vmatprep.mubr.bf16.mxu0 %v3319
  %3714 = vmatmul.mubr.bf16.gmra.mrb[0].mxu0 %v3318
  %v3715 = vpop.f32.mrb[0].mxu0
  %v3716 = vadd.f32 %v3415, %v3715
  %v3717 = vpop.f32.mrb[0].mxu0
  %v3718 = vpop.f32.mrb[0].mxu0
  %v3719 = vadd.f32 %v3415, %v3718
  %v3720 = vpop.f32.mrb[0].mxu0
  %3721 = vmatprep.mubr.bf16.mxu0 %v3323
  %3722 = vmatmul.mubr.bf16.gmra.mrb[0].mxu0 %v3322
  %v3723 = vpop.f32.mrb[0].mxu0
  %v3724 = vadd.f32 %v3415, %v3723
  %v3725 = vpop.f32.mrb[0].mxu0
  %v3726 = vpop.f32.mrb[0].mxu0
  %v3727 = vadd.f32 %v3415, %v3726
  %v3728 = vpop.f32.mrb[0].mxu0
  %3729 = vmatprep.mubr.bf16.mxu0 %v3327
  %3730 = vmatmul.mubr.bf16.gmra.mrb[0].mxu0 %v3326
  %v3731 = vpop.f32.mrb[0].mxu0
  %v3732 = vadd.f32 %v3415, %v3731
  %v3733 = vpop.f32.mrb[0].mxu0
  %v3734 = vpop.f32.mrb[0].mxu0
  %v3735 = vadd.f32 %v3415, %v3734
  %v3736 = vpop.f32.mrb[0].mxu0
  %3737 = vmatprep.mubr.bf16.mxu0 %v3331
  %3738 = vmatmul.mubr.bf16.gmra.mrb[0].mxu0 %v3330
  %v3739 = vpop.f32.mrb[0].mxu0
  %v3740 = vadd.f32 %v3415, %v3739
  %v3741 = vpop.f32.mrb[0].mxu0
  %v3742 = vpop.f32.mrb[0].mxu0
  %v3743 = vadd.f32 %v3415, %v3742
  %v3744 = vpop.f32.mrb[0].mxu0
  %3745 = vmatprep.mubr.bf16.mxu0 %v3335
  %3746 = vmatmul.mubr.bf16.gmra.mrb[0].mxu0 %v3334
  %v3747 = vpop.f32.mrb[0].mxu0
  %v3748 = vadd.f32 %v3415, %v3747
  %v3749 = vpop.f32.mrb[0].mxu0
  %v3750 = vpop.f32.mrb[0].mxu0
  %v3751 = vadd.f32 %v3415, %v3750
  %v3752 = vpop.f32.mrb[0].mxu0
  %3753 = vmatprep.mubr.bf16.mxu0 %v3339
  %3754 = vmatmul.mubr.bf16.gmra.mrb[0].mxu0 %v3338
  %v3755 = vpop.f32.mrb[0].mxu0
  %v3756 = vadd.f32 %v3415, %v3755
  %v3757 = vpop.f32.mrb[0].mxu0
  %v3758 = vpop.f32.mrb[0].mxu0
  %v3759 = vadd.f32 %v3415, %v3758
  %v3760 = vpop.f32.mrb[0].mxu0
  %3761 = vmatprep.mubr.bf16.mxu0 %v3343
  %3762 = vmatmul.mubr.bf16.gmra.mrb[0].mxu0 %v3342
  %v3763 = vpop.f32.mrb[0].mxu0
  %v3764 = vadd.f32 %v3415, %v3763
  %v3765 = vpop.f32.mrb[0].mxu0
  %v3766 = vpop.f32.mrb[0].mxu0
  %v3767 = vadd.f32 %v3415, %v3766
  %v3768 = vpop.f32.mrb[0].mxu0
  %3769 = vdwg.mxu0
  %3770 = vmatprep.subr.bf16.mxu0 0
  %3771 = vmatpush1.bf16.msra.mxu0 %v3561
  %3772 = vmatprep.subr.bf16.mxu0 0
  %3773 = vmatpush1.bf16.msra.mxu0 %v3562
  %3774 = vmatprep.subr.bf16.mxu0 0
  %3775 = vmatpush1.bf16.msra.mxu0 %v3563
  %3776 = vmatprep.subr.bf16.mxu0 0
  %3777 = vmatpush1.bf16.msra.mxu0 %v3564
  %3778 = vmatprep.subr.bf16.mxu0 0
  %3779 = vmatpush1.bf16.msra.mxu0 %v3565
  %3780 = vmatprep.subr.bf16.mxu0 0
  %3781 = vmatpush1.bf16.msra.mxu0 %v3566
  %3782 = vmatprep.subr.bf16.mxu0 0
  %3783 = vmatpush1.bf16.msra.mxu0 %v3567
  %3784 = vmatprep.subr.bf16.mxu0 0
  %3785 = vmatpush1.bf16.msra.mxu0 %v3568
  %3786 = vmatprep.subr.bf16.mxu0 0
  %3787 = vmatpush1.bf16.msra.mxu0 %v3569
  %3788 = vmatprep.subr.bf16.mxu0 0
  %3789 = vmatpush1.bf16.msra.mxu0 %v3570
  %3790 = vmatprep.subr.bf16.mxu0 0
  %3791 = vmatpush1.bf16.msra.mxu0 %v3571
  %3792 = vmatprep.subr.bf16.mxu0 0
  %3793 = vmatpush1.bf16.msra.mxu0 %v3572
  %3794 = vmatprep.subr.bf16.mxu0 0
  %3795 = vmatpush1.bf16.msra.mxu0 %v3573
  %3796 = vmatprep.subr.bf16.mxu0 0
  %3797 = vmatpush1.bf16.msra.mxu0 %v3574
  %3798 = vmatprep.subr.bf16.mxu0 0
  %3799 = vmatpush1.bf16.msra.mxu0 %v3575
  %3800 = vmatprep.subr.bf16.mxu0 0
  %3801 = vmatpush1.bf16.msra.mxu0 %v3576
  %3802 = vmatprep.mubr.bf16.mxu0 %v3285
  %3803 = vmatmul.mubr.bf16.gmra.mrb[0].mxu0 %v3284
  %v3804 = vpop.f32.mrb[0].mxu0
  %v3805 = vadd.f32 %v3644, %v3804
  %v3806 = vpop.f32.mrb[0].mxu0
  %v3807 = vpop.f32.mrb[0].mxu0
  %v3808 = vadd.f32 %v3647, %v3807
  %v3809 = vpop.f32.mrb[0].mxu0
  %3810 = vmatprep.mubr.bf16.mxu0 %v3289
  %3811 = vmatmul.mubr.bf16.gmra.mrb[0].mxu0 %v3288
  %v3812 = vpop.f32.mrb[0].mxu0
  %v3813 = vadd.f32 %v3652, %v3812
  %v3814 = vpop.f32.mrb[0].mxu0
  %v3815 = vpop.f32.mrb[0].mxu0
  %v3816 = vadd.f32 %v3655, %v3815
  %v3817 = vpop.f32.mrb[0].mxu0
  %3818 = vmatprep.mubr.bf16.mxu0 %v3293
  %3819 = vmatmul.mubr.bf16.gmra.mrb[0].mxu0 %v3292
  %v3820 = vpop.f32.mrb[0].mxu0
  %v3821 = vadd.f32 %v3660, %v3820
  %v3822 = vpop.f32.mrb[0].mxu0
  %v3823 = vpop.f32.mrb[0].mxu0
  %v3824 = vadd.f32 %v3663, %v3823
  %v3825 = vpop.f32.mrb[0].mxu0
  %3826 = vmatprep.mubr.bf16.mxu0 %v3297
  %3827 = vmatmul.mubr.bf16.gmra.mrb[0].mxu0 %v3296
  %v3828 = vpop.f32.mrb[0].mxu0
  %v3829 = vadd.f32 %v3668, %v3828
  %v3830 = vpop.f32.mrb[0].mxu0
  %v3831 = vpop.f32.mrb[0].mxu0
  %v3832 = vadd.f32 %v3671, %v3831
  %v3833 = vpop.f32.mrb[0].mxu0
  %3834 = vmatprep.mubr.bf16.mxu0 %v3301
  %3835 = vmatmul.mubr.bf16.gmra.mrb[0].mxu0 %v3300
  %v3836 = vpop.f32.mrb[0].mxu0
  %v3837 = vadd.f32 %v3676, %v3836
  %v3838 = vpop.f32.mrb[0].mxu0
  %v3839 = vpop.f32.mrb[0].mxu0
  %v3840 = vadd.f32 %v3679, %v3839
  %v3841 = vpop.f32.mrb[0].mxu0
  %3842 = vmatprep.mubr.bf16.mxu0 %v3305
  %3843 = vmatmul.mubr.bf16.gmra.mrb[0].mxu0 %v3304
  %v3844 = vpop.f32.mrb[0].mxu0
  %v3845 = vadd.f32 %v3684, %v3844
  %v3846 = vpop.f32.mrb[0].mxu0
  %v3847 = vpop.f32.mrb[0].mxu0
  %v3848 = vadd.f32 %v3687, %v3847
  %v3849 = vpop.f32.mrb[0].mxu0
  %3850 = vmatprep.mubr.bf16.mxu0 %v3309
  %3851 = vmatmul.mubr.bf16.gmra.mrb[0].mxu0 %v3308
  %v3852 = vpop.f32.mrb[0].mxu0
  %v3853 = vadd.f32 %v3692, %v3852
  %v3854 = vpop.f32.mrb[0].mxu0
  %v3855 = vpop.f32.mrb[0].mxu0
  %v3856 = vadd.f32 %v3695, %v3855
  %v3857 = vpop.f32.mrb[0].mxu0
  %3858 = vmatprep.mubr.bf16.mxu0 %v3313
  %3859 = vmatmul.mubr.bf16.gmra.mrb[0].mxu0 %v3312
  %v3860 = vpop.f32.mrb[0].mxu0
  %v3861 = vadd.f32 %v3700, %v3860
  %v3862 = vpop.f32.mrb[0].mxu0
  %v3863 = vpop.f32.mrb[0].mxu0
  %v3864 = vadd.f32 %v3703, %v3863
  %v3865 = vpop.f32.mrb[0].mxu0
  %3866 = vmatprep.mubr.bf16.mxu0 %v3317
  %3867 = vmatmul.mubr.bf16.gmra.mrb[0].mxu0 %v3316
  %v3868 = vpop.f32.mrb[0].mxu0
  %v3869 = vadd.f32 %v3708, %v3868
  %v3870 = vpop.f32.mrb[0].mxu0
  %v3871 = vpop.f32.mrb[0].mxu0
  %v3872 = vadd.f32 %v3711, %v3871
  %v3873 = vpop.f32.mrb[0].mxu0
  %3874 = vmatprep.mubr.bf16.mxu0 %v3321
  %3875 = vmatmul.mubr.bf16.gmra.mrb[0].mxu0 %v3320
  %v3876 = vpop.f32.mrb[0].mxu0
  %v3877 = vadd.f32 %v3716, %v3876
  %v3878 = vpop.f32.mrb[0].mxu0
  %v3879 = vpop.f32.mrb[0].mxu0
  %v3880 = vadd.f32 %v3719, %v3879
  %v3881 = vpop.f32.mrb[0].mxu0
  %3882 = vmatprep.mubr.bf16.mxu0 %v3325
  %3883 = vmatmul.mubr.bf16.gmra.mrb[0].mxu0 %v3324
  %v3884 = vpop.f32.mrb[0].mxu0
  %v3885 = vadd.f32 %v3724, %v3884
  %v3886 = vpop.f32.mrb[0].mxu0
  %v3887 = vpop.f32.mrb[0].mxu0
  %v3888 = vadd.f32 %v3727, %v3887
  %v3889 = vpop.f32.mrb[0].mxu0
  %3890 = vmatprep.mubr.bf16.mxu0 %v3329
  %3891 = vmatmul.mubr.bf16.gmra.mrb[0].mxu0 %v3328
  %v3892 = vpop.f32.mrb[0].mxu0
  %v3893 = vadd.f32 %v3732, %v3892
  %v3894 = vpop.f32.mrb[0].mxu0
  %v3895 = vpop.f32.mrb[0].mxu0
  %v3896 = vadd.f32 %v3735, %v3895
  %v3897 = vpop.f32.mrb[0].mxu0
  %3898 = vmatprep.mubr.bf16.mxu0 %v3333
  %3899 = vmatmul.mubr.bf16.gmra.mrb[0].mxu0 %v3332
  %v3900 = vpop.f32.mrb[0].mxu0
  %v3901 = vadd.f32 %v3740, %v3900
  %v3902 = vpop.f32.mrb[0].mxu0
  %v3903 = vpop.f32.mrb[0].mxu0
  %v3904 = vadd.f32 %v3743, %v3903
  %v3905 = vpop.f32.mrb[0].mxu0
  %3906 = vmatprep.mubr.bf16.mxu0 %v3337
  %3907 = vmatmul.mubr.bf16.gmra.mrb[0].mxu0 %v3336
  %v3908 = vpop.f32.mrb[0].mxu0
  %v3909 = vadd.f32 %v3748, %v3908
  %v3910 = vpop.f32.mrb[0].mxu0
  %v3911 = vpop.f32.mrb[0].mxu0
  %v3912 = vadd.f32 %v3751, %v3911
  %v3913 = vpop.f32.mrb[0].mxu0
  %3914 = vmatprep.mubr.bf16.mxu0 %v3341
  %3915 = vmatmul.mubr.bf16.gmra.mrb[0].mxu0 %v3340
  %v3916 = vpop.f32.mrb[0].mxu0
  %v3917 = vadd.f32 %v3756, %v3916
  %v3918 = vpop.f32.mrb[0].mxu0
  %v3919 = vpop.f32.mrb[0].mxu0
  %v3920 = vadd.f32 %v3759, %v3919
  %v3921 = vpop.f32.mrb[0].mxu0
  %3922 = vmatprep.mubr.bf16.mxu0 %v3345
  %3923 = vmatmul.mubr.bf16.gmra.mrb[0].mxu0 %v3344
  %v3924 = vpop.f32.mrb[0].mxu0
  %v3925 = vadd.f32 %v3764, %v3924
  %v3926 = vpop.f32.mrb[0].mxu0
  %v3927 = vpop.f32.mrb[0].mxu0
  %v3928 = vadd.f32 %v3767, %v3927
  %v3929 = vpop.f32.mrb[0].mxu0
  %3930 = vdwg.mxu0
  %v3931 = vmax.f32 %v3805, 0.0
  %v3932 = vmax.f32 %v3808, 0.0
  %v3933 = vmax.f32 %v3813, 0.0
  %v3934 = vmax.f32 %v3816, 0.0
  %v3935 = vmax.f32 %v3821, 0.0
  %v3936 = vmax.f32 %v3824, 0.0
  %v3937 = vmax.f32 %v3829, 0.0
  %v3938 = vmax.f32 %v3832, 0.0
  %v3939 = vmax.f32 %v3837, 0.0
  %v3940 = vmax.f32 %v3840, 0.0
  %v3941 = vmax.f32 %v3845, 0.0
  %v3942 = vmax.f32 %v3848, 0.0
  %v3943 = vmax.f32 %v3853, 0.0
  %v3944 = vmax.f32 %v3856, 0.0
  %v3945 = vmax.f32 %v3861, 0.0
  %v3946 = vmax.f32 %v3864, 0.0
  %v3947 = vmax.f32 %v3869, 0.0
  %v3948 = vmax.f32 %v3872, 0.0
  %v3949 = vmax.f32 %v3877, 0.0
  %v3950 = vmax.f32 %v3880, 0.0
  %v3951 = vmax.f32 %v3885, 0.0
  %v3952 = vmax.f32 %v3888, 0.0
  %v3953 = vmax.f32 %v3893, 0.0
  %v3954 = vmax.f32 %v3896, 0.0
  %v3955 = vmax.f32 %v3901, 0.0
  %v3956 = vmax.f32 %v3904, 0.0
  %v3957 = vmax.f32 %v3909, 0.0
  %v3958 = vmax.f32 %v3912, 0.0
  %v3959 = vmax.f32 %v3917, 0.0
  %v3960 = vmax.f32 %v3920, 0.0
  %v3961 = vmax.f32 %v3925, 0.0
  %v3962 = vmax.f32 %v3928, 0.0
  %v3963 = vpack.c.bf16 %v3932, %v3931
  %v3964 = vpack.c.bf16 %v3934, %v3933
  %v3965 = vpack.c.bf16 %v3936, %v3935
  %v3966 = vpack.c.bf16 %v3938, %v3937
  %v3967 = vpack.c.bf16 %v3940, %v3939
  %v3968 = vpack.c.bf16 %v3942, %v3941
  %v3969 = vpack.c.bf16 %v3944, %v3943
  %v3970 = vpack.c.bf16 %v3946, %v3945
  %v3971 = vpack.c.bf16 %v3948, %v3947
  %v3972 = vpack.c.bf16 %v3950, %v3949
  %v3973 = vpack.c.bf16 %v3952, %v3951
  %v3974 = vpack.c.bf16 %v3954, %v3953
  %v3975 = vpack.c.bf16 %v3956, %v3955
  %v3976 = vpack.c.bf16 %v3958, %v3957
  %v3977 = vpack.c.bf16 %v3960, %v3959
  %v3978 = vpack.c.bf16 %v3962, %v3961
  %v3979 = vld [vmem:[%s5] sm:$0xf]
  %v3980 = vld [vmem:[%s5 + $0x4] sm:$0xf]
  %v3981 = vld [vmem:[%s5 + $0x8] sm:$0xf]
  %v3982 = vld [vmem:[%s5 + $0xc] sm:$0xf]
  %v3983 = vld [vmem:[%s5 + $0x10] sm:$0xf]
  %v3984 = vld [vmem:[%s5 + $0x14] sm:$0xf]
  %v3985 = vld [vmem:[%s5 + $0x18] sm:$0xf]
  %v3986 = vld [vmem:[%s5 + $0x1c] sm:$0xf]
  %v3987 = vld [vmem:[%s5 + $0x20] sm:$0xf]
  %v3988 = vld [vmem:[%s5 + $0x24] sm:$0xf]
  %v3989 = vld [vmem:[%s5 + $0x28] sm:$0xf]
  %v3990 = vld [vmem:[%s5 + $0x2c] sm:$0xf]
  %v3991 = vld [vmem:[%s5 + $0x30] sm:$0xf]
  %v3992 = vld [vmem:[%s5 + $0x34] sm:$0xf]
  %v3993 = vld [vmem:[%s5 + $0x38] sm:$0xf]
  %v3994 = vld [vmem:[%s5 + $0x3c] sm:$0xf]
  %v3995 = vld [vmem:[%s6] sm:$0x1]
  %v3997 = vlaneseq
  %v3998 = vshrl.u32 %v3997, 7
  %v3999 = vsub.s32 0, %v3998
  %v4000 = vrot.slane %v3995, %v3999
  %v4018 = vunpack.c.l.b16 %v3979
  %v4019 = vunpack.c.l.b16 %v3980
  %v4020 = vunpack.c.l.b16 %v3981
  %v4021 = vunpack.c.l.b16 %v3982
  %v4022 = vunpack.c.l.b16 %v3983
  %v4023 = vunpack.c.l.b16 %v3984
  %v4024 = vunpack.c.l.b16 %v3985
  %v4025 = vunpack.c.l.b16 %v3986
  %v4026 = vunpack.c.l.b16 %v3987
  %v4027 = vunpack.c.l.b16 %v3988
  %v4028 = vunpack.c.l.b16 %v3989
  %v4029 = vunpack.c.l.b16 %v3990
  %v4030 = vunpack.c.l.b16 %v3991
  %v4031 = vunpack.c.l.b16 %v3992
  %v4032 = vunpack.c.l.b16 %v3993
  %v4033 = vunpack.c.l.b16 %v3994
  %v4034 = vpack.c.b16 %v4019, %v4018
  %v4035 = vpack.c.b16 %v4021, %v4020
  %v4036 = vpack.c.b16 %v4023, %v4022
  %v4037 = vpack.c.b16 %v4025, %v4024
  %v4038 = vpack.c.b16 %v4027, %v4026
  %v4039 = vpack.c.b16 %v4029, %v4028
  %v4040 = vpack.c.b16 %v4031, %v4030
  %v4041 = vpack.c.b16 %v4033, %v4032
  %4050 = vmatprep.subr.bf16.mxu0 0
  %4051 = vmatpush1.bf16.msra.mxu0 %v4034
  %4052 = vmatprep.subr.bf16.mxu0 0
  %4053 = vmatpush1.bf16.msra.mxu0 %v4035
  %4054 = vmatprep.subr.bf16.mxu0 0
  %4055 = vmatpush1.bf16.msra.mxu0 %v4036
  %4056 = vmatprep.subr.bf16.mxu0 0
  %4057 = vmatpush1.bf16.msra.mxu0 %v4037
  %4058 = vmatprep.subr.bf16.mxu0 0
  %4059 = vmatpush1.bf16.msra.mxu0 %v4038
  %4060 = vmatprep.subr.bf16.mxu0 0
  %4061 = vmatpush1.bf16.msra.mxu0 %v4039
  %4062 = vmatprep.subr.bf16.mxu0 0
  %4063 = vmatpush1.bf16.msra.mxu0 %v4040
  %4064 = vmatprep.subr.bf16.mxu0 0
  %4065 = vmatpush1.bf16.msra.mxu0 %v4041
  %4066 = vmatprep.subr.bf16.mxu0 0
  %4067 = vmatpush1.bf16.msra.mxu0 0
  %4068 = vmatprep.subr.bf16.mxu0 0
  %4069 = vmatpush1.bf16.msra.mxu0 0
  %4070 = vmatprep.subr.bf16.mxu0 0
  %4071 = vmatpush1.bf16.msra.mxu0 0
  %4072 = vmatprep.subr.bf16.mxu0 0
  %4073 = vmatpush1.bf16.msra.mxu0 0
  %4074 = vmatprep.subr.bf16.mxu0 0
  %4075 = vmatpush1.bf16.msra.mxu0 0
  %4076 = vmatprep.subr.bf16.mxu0 0
  %4077 = vmatpush1.bf16.msra.mxu0 0
  %4078 = vmatprep.subr.bf16.mxu0 0
  %4079 = vmatpush1.bf16.msra.mxu0 0
  %4080 = vmatprep.subr.bf16.mxu0 0
  %4081 = vmatpush1.bf16.msra.mxu0 0
  %4082 = vmatprep.mubr.bf16.mxu0 0
  %4083 = vmatmul.mubr.bf16.gmra.mrb[0].mxu0 %v3963
  %v4084 = vpop.f32.mrb[0].mxu0
  %v4085 = vadd.f32 %v4000, %v4084
  %v4086 = vpop.f32.mrb[0].mxu0
  %v4087 = vpop.f32.mrb[0].mxu0
  %v4088 = vadd.f32 %v4000, %v4087
  %v4089 = vpop.f32.mrb[0].mxu0
  %4090 = vmatprep.mubr.bf16.mxu0 0
  %4091 = vmatmul.mubr.bf16.gmra.mrb[0].mxu0 %v3964
  %v4092 = vpop.f32.mrb[0].mxu0
  %v4093 = vadd.f32 %v4000, %v4092
  %v4094 = vpop.f32.mrb[0].mxu0
  %v4095 = vpop.f32.mrb[0].mxu0
  %v4096 = vadd.f32 %v4000, %v4095
  %v4097 = vpop.f32.mrb[0].mxu0
  %4098 = vmatprep.mubr.bf16.mxu0 0
  %4099 = vmatmul.mubr.bf16.gmra.mrb[0].mxu0 %v3965
  %v4100 = vpop.f32.mrb[0].mxu0
  %v4101 = vadd.f32 %v4000, %v4100
  %v4102 = vpop.f32.mrb[0].mxu0
  %v4103 = vpop.f32.mrb[0].mxu0
  %v4104 = vadd.f32 %v4000, %v4103
  %v4105 = vpop.f32.mrb[0].mxu0
  %4106 = vmatprep.mubr.bf16.mxu0 0
  %4107 = vmatmul.mubr.bf16.gmra.mrb[0].mxu0 %v3966
  %v4108 = vpop.f32.mrb[0].mxu0
  %v4109 = vadd.f32 %v4000, %v4108
  %v4110 = vpop.f32.mrb[0].mxu0
  %v4111 = vpop.f32.mrb[0].mxu0
  %v4112 = vadd.f32 %v4000, %v4111
  %v4113 = vpop.f32.mrb[0].mxu0
  %4114 = vmatprep.mubr.bf16.mxu0 0
  %4115 = vmatmul.mubr.bf16.gmra.mrb[0].mxu0 %v3967
  %v4116 = vpop.f32.mrb[0].mxu0
  %v4117 = vadd.f32 %v4000, %v4116
  %v4118 = vpop.f32.mrb[0].mxu0
  %v4119 = vpop.f32.mrb[0].mxu0
  %v4120 = vadd.f32 %v4000, %v4119
  %v4121 = vpop.f32.mrb[0].mxu0
  %4122 = vmatprep.mubr.bf16.mxu0 0
  %4123 = vmatmul.mubr.bf16.gmra.mrb[0].mxu0 %v3968
  %v4124 = vpop.f32.mrb[0].mxu0
  %v4125 = vadd.f32 %v4000, %v4124
  %v4126 = vpop.f32.mrb[0].mxu0
  %v4127 = vpop.f32.mrb[0].mxu0
  %v4128 = vadd.f32 %v4000, %v4127
  %v4129 = vpop.f32.mrb[0].mxu0
  %4130 = vmatprep.mubr.bf16.mxu0 0
  %4131 = vmatmul.mubr.bf16.gmra.mrb[0].mxu0 %v3969
  %v4132 = vpop.f32.mrb[0].mxu0
  %v4133 = vadd.f32 %v4000, %v4132
  %v4134 = vpop.f32.mrb[0].mxu0
  %v4135 = vpop.f32.mrb[0].mxu0
  %v4136 = vadd.f32 %v4000, %v4135
  %v4137 = vpop.f32.mrb[0].mxu0
  %4138 = vmatprep.mubr.bf16.mxu0 0
  %4139 = vmatmul.mubr.bf16.gmra.mrb[0].mxu0 %v3970
  %v4140 = vpop.f32.mrb[0].mxu0
  %v4141 = vadd.f32 %v4000, %v4140
  %v4142 = vpop.f32.mrb[0].mxu0
  %v4143 = vpop.f32.mrb[0].mxu0
  %v4144 = vadd.f32 %v4000, %v4143
  %v4145 = vpop.f32.mrb[0].mxu0
  %4146 = vmatprep.mubr.bf16.mxu0 0
  %4147 = vmatmul.mubr.bf16.gmra.mrb[0].mxu0 %v3971
  %v4148 = vpop.f32.mrb[0].mxu0
  %v4149 = vadd.f32 %v4000, %v4148
  %v4150 = vpop.f32.mrb[0].mxu0
  %v4151 = vpop.f32.mrb[0].mxu0
  %v4152 = vadd.f32 %v4000, %v4151
  %v4153 = vpop.f32.mrb[0].mxu0
  %4154 = vmatprep.mubr.bf16.mxu0 0
  %4155 = vmatmul.mubr.bf16.gmra.mrb[0].mxu0 %v3972
  %v4156 = vpop.f32.mrb[0].mxu0
  %v4157 = vadd.f32 %v4000, %v4156
  %v4158 = vpop.f32.mrb[0].mxu0
  %v4159 = vpop.f32.mrb[0].mxu0
  %v4160 = vadd.f32 %v4000, %v4159
  %v4161 = vpop.f32.mrb[0].mxu0
  %4162 = vmatprep.mubr.bf16.mxu0 0
  %4163 = vmatmul.mubr.bf16.gmra.mrb[0].mxu0 %v3973
  %v4164 = vpop.f32.mrb[0].mxu0
  %v4165 = vadd.f32 %v4000, %v4164
  %v4166 = vpop.f32.mrb[0].mxu0
  %v4167 = vpop.f32.mrb[0].mxu0
  %v4168 = vadd.f32 %v4000, %v4167
  %v4169 = vpop.f32.mrb[0].mxu0
  %4170 = vmatprep.mubr.bf16.mxu0 0
  %4171 = vmatmul.mubr.bf16.gmra.mrb[0].mxu0 %v3974
  %v4172 = vpop.f32.mrb[0].mxu0
  %v4173 = vadd.f32 %v4000, %v4172
  %v4174 = vpop.f32.mrb[0].mxu0
  %v4175 = vpop.f32.mrb[0].mxu0
  %v4176 = vadd.f32 %v4000, %v4175
  %v4177 = vpop.f32.mrb[0].mxu0
  %4178 = vmatprep.mubr.bf16.mxu0 0
  %4179 = vmatmul.mubr.bf16.gmra.mrb[0].mxu0 %v3975
  %v4180 = vpop.f32.mrb[0].mxu0
  %v4181 = vadd.f32 %v4000, %v4180
  %v4182 = vpop.f32.mrb[0].mxu0
  %v4183 = vpop.f32.mrb[0].mxu0
  %v4184 = vadd.f32 %v4000, %v4183
  %v4185 = vpop.f32.mrb[0].mxu0
  %4186 = vmatprep.mubr.bf16.mxu0 0
  %4187 = vmatmul.mubr.bf16.gmra.mrb[0].mxu0 %v3976
  %v4188 = vpop.f32.mrb[0].mxu0
  %v4189 = vadd.f32 %v4000, %v4188
  %v4190 = vpop.f32.mrb[0].mxu0
  %v4191 = vpop.f32.mrb[0].mxu0
  %v4192 = vadd.f32 %v4000, %v4191
  %v4193 = vpop.f32.mrb[0].mxu0
  %4194 = vmatprep.mubr.bf16.mxu0 0
  %4195 = vmatmul.mubr.bf16.gmra.mrb[0].mxu0 %v3977
  %v4196 = vpop.f32.mrb[0].mxu0
  %v4197 = vadd.f32 %v4000, %v4196
  %v4198 = vpop.f32.mrb[0].mxu0
  %v4199 = vpop.f32.mrb[0].mxu0
  %v4200 = vadd.f32 %v4000, %v4199
  %v4201 = vpop.f32.mrb[0].mxu0
  %4202 = vmatprep.mubr.bf16.mxu0 0
  %4203 = vmatmul.mubr.bf16.gmra.mrb[0].mxu0 %v3978
  %v4204 = vpop.f32.mrb[0].mxu0
  %v4205 = vadd.f32 %v4000, %v4204
  %v4206 = vpop.f32.mrb[0].mxu0
  %v4207 = vpop.f32.mrb[0].mxu0
  %v4208 = vadd.f32 %v4000, %v4207
  %v4209 = vpop.f32.mrb[0].mxu0
  %4210 = vdwg.mxu0
  %4211 = vmax.xlane.f32.xlu0 %v4085
  %v4212 = vpop.xlane.xlu0 %4211
  %4213 = vmax.xlane.f32.xlu0 %v4088
  %v4214 = vpop.xlane.xlu0 %4213
  %4215 = vmax.xlane.f32.xlu0 %v4093
  %v4216 = vpop.xlane.xlu0 %4215
  %4217 = vmax.xlane.f32.xlu0 %v4096
  %v4218 = vpop.xlane.xlu0 %4217
  %4219 = vmax.xlane.f32.xlu0 %v4101
  %v4220 = vpop.xlane.xlu0 %4219
  %4221 = vmax.xlane.f32.xlu0 %v4104
  %v4222 = vpop.xlane.xlu0 %4221
  %4223 = vmax.xlane.f32.xlu0 %v4109
  %v4224 = vpop.xlane.xlu0 %4223
  %4225 = vmax.xlane.f32.xlu0 %v4112
  %v4226 = vpop.xlane.xlu0 %4225
  %4227 = vmax.xlane.f32.xlu0 %v4117
  %v4228 = vpop.xlane.xlu0 %4227
  %4229 = vmax.xlane.f32.xlu0 %v4120
  %v4230 = vpop.xlane.xlu0 %4229
  %4231 = vmax.xlane.f32.xlu0 %v4125
  %v4232 = vpop.xlane.xlu0 %4231
  %4233 = vmax.xlane.f32.xlu0 %v4128
  %v4234 = vpop.xlane.xlu0 %4233
  %4235 = vmax.xlane.f32.xlu0 %v4133
  %v4236 = vpop.xlane.xlu0 %4235
  %4237 = vmax.xlane.f32.xlu0 %v4136
  %v4238 = vpop.xlane.xlu0 %4237
  %4239 = vmax.xlane.f32.xlu0 %v4141
  %v4240 = vpop.xlane.xlu0 %4239
  %4241 = vmax.xlane.f32.xlu0 %v4144
  %v4242 = vpop.xlane.xlu0 %4241
  %4243 = vmax.xlane.f32.xlu0 %v4149
  %v4244 = vpop.xlane.xlu0 %4243
  %4245 = vmax.xlane.f32.xlu0 %v4152
  %v4246 = vpop.xlane.xlu0 %4245
  %4247 = vmax.xlane.f32.xlu0 %v4157
  %v4248 = vpop.xlane.xlu0 %4247
  %4249 = vmax.xlane.f32.xlu0 %v4160
  %v4250 = vpop.xlane.xlu0 %4249
  %4251 = vmax.xlane.f32.xlu0 %v4165
  %v4252 = vpop.xlane.xlu0 %4251
  %4253 = vmax.xlane.f32.xlu0 %v4168
  %v4254 = vpop.xlane.xlu0 %4253
  %4255 = vmax.xlane.f32.xlu0 %v4173
  %v4256 = vpop.xlane.xlu0 %4255
  %4257 = vmax.xlane.f32.xlu0 %v4176
  %v4258 = vpop.xlane.xlu0 %4257
  %4259 = vmax.xlane.f32.xlu0 %v4181
  %v4260 = vpop.xlane.xlu0 %4259
  %4261 = vmax.xlane.f32.xlu0 %v4184
  %v4262 = vpop.xlane.xlu0 %4261
  %4263 = vmax.xlane.f32.xlu0 %v4189
  %v4264 = vpop.xlane.xlu0 %4263
  %4265 = vmax.xlane.f32.xlu0 %v4192
  %v4266 = vpop.xlane.xlu0 %4265
  %4267 = vmax.xlane.f32.xlu0 %v4197
  %v4268 = vpop.xlane.xlu0 %4267
  %4269 = vmax.xlane.f32.xlu0 %v4200
  %v4270 = vpop.xlane.xlu0 %4269
  %4271 = vmax.xlane.f32.xlu0 %v4205
  %v4272 = vpop.xlane.xlu0 %4271
  %4273 = vmax.xlane.f32.xlu0 %v4208
  %v4274 = vpop.xlane.xlu0 %4273
  %v4275 = vsub.f32 %v4085, %v4212
  %v4276 = vsub.f32 %v4088, %v4214
  %v4277 = vsub.f32 %v4093, %v4216
  %v4278 = vsub.f32 %v4096, %v4218
  %v4279 = vsub.f32 %v4101, %v4220
  %v4280 = vsub.f32 %v4104, %v4222
  %v4281 = vsub.f32 %v4109, %v4224
  %v4282 = vsub.f32 %v4112, %v4226
  %v4283 = vsub.f32 %v4117, %v4228
  %v4284 = vsub.f32 %v4120, %v4230
  %v4285 = vsub.f32 %v4125, %v4232
  %v4286 = vsub.f32 %v4128, %v4234
  %v4287 = vsub.f32 %v4133, %v4236
  %v4288 = vsub.f32 %v4136, %v4238
  %v4289 = vsub.f32 %v4141, %v4240
  %v4290 = vsub.f32 %v4144, %v4242
  %v4291 = vsub.f32 %v4149, %v4244
  %v4292 = vsub.f32 %v4152, %v4246
  %v4293 = vsub.f32 %v4157, %v4248
  %v4294 = vsub.f32 %v4160, %v4250
  %v4295 = vsub.f32 %v4165, %v4252
  %v4296 = vsub.f32 %v4168, %v4254
  %v4297 = vsub.f32 %v4173, %v4256
  %v4298 = vsub.f32 %v4176, %v4258
  %v4299 = vsub.f32 %v4181, %v4260
  %v4300 = vsub.f32 %v4184, %v4262
  %v4301 = vsub.f32 %v4189, %v4264
  %v4302 = vsub.f32 %v4192, %v4266
  %v4303 = vsub.f32 %v4197, %v4268
  %v4304 = vsub.f32 %v4200, %v4270
  %v4305 = vsub.f32 %v4205, %v4272
  %v4306 = vsub.f32 %v4208, %v4274
  %v4307 = vmul.f32 %v4275, 1.442695
  %v4308 = vpow.pop %v4307
  %v4309 = vmul.f32 %v4276, 1.442695
  %v4310 = vpow.pop %v4309
  %v4311 = vmul.f32 %v4277, 1.442695
  %v4312 = vpow.pop %v4311
  %v4313 = vmul.f32 %v4278, 1.442695
  %v4314 = vpow.pop %v4313
  %v4315 = vmul.f32 %v4279, 1.442695
  %v4316 = vpow.pop %v4315
  %v4317 = vmul.f32 %v4280, 1.442695
  %v4318 = vpow.pop %v4317
  %v4319 = vmul.f32 %v4281, 1.442695
  %v4320 = vpow.pop %v4319
  %v4321 = vmul.f32 %v4282, 1.442695
  %v4322 = vpow.pop %v4321
  %v4323 = vmul.f32 %v4283, 1.442695
  %v4324 = vpow.pop %v4323
  %v4325 = vmul.f32 %v4284, 1.442695
  %v4326 = vpow.pop %v4325
  %v4327 = vmul.f32 %v4285, 1.442695
  %v4328 = vpow.pop %v4327
  %v4329 = vmul.f32 %v4286, 1.442695
  %v4330 = vpow.pop %v4329
  %v4331 = vmul.f32 %v4287, 1.442695
  %v4332 = vpow.pop %v4331
  %v4333 = vmul.f32 %v4288, 1.442695
  %v4334 = vpow.pop %v4333
  %v4335 = vmul.f32 %v4289, 1.442695
  %v4336 = vpow.pop %v4335
  %v4337 = vmul.f32 %v4290, 1.442695
  %v4338 = vpow.pop %v4337
  %v4339 = vmul.f32 %v4291, 1.442695
  %v4340 = vpow.pop %v4339
  %v4341 = vmul.f32 %v4292, 1.442695
  %v4342 = vpow.pop %v4341
  %v4343 = vmul.f32 %v4293, 1.442695
  %v4344 = vpow.pop %v4343
  %v4345 = vmul.f32 %v4294, 1.442695
  %v4346 = vpow.pop %v4345
  %v4347 = vmul.f32 %v4295, 1.442695
  %v4348 = vpow.pop %v4347
  %v4349 = vmul.f32 %v4296, 1.442695
  %v4350 = vpow.pop %v4349
  %v4351 = vmul.f32 %v4297, 1.442695
  %v4352 = vpow.pop %v4351
  %v4353 = vmul.f32 %v4298, 1.442695
  %v4354 = vpow.pop %v4353
  %v4355 = vmul.f32 %v4299, 1.442695
  %v4356 = vpow.pop %v4355
  %v4357 = vmul.f32 %v4300, 1.442695
  %v4358 = vpow.pop %v4357
  %v4359 = vmul.f32 %v4301, 1.442695
  %v4360 = vpow.pop %v4359
  %v4361 = vmul.f32 %v4302, 1.442695
  %v4362 = vpow.pop %v4361
  %v4363 = vmul.f32 %v4303, 1.442695
  %v4364 = vpow.pop %v4363
  %v4365 = vmul.f32 %v4304, 1.442695
  %v4366 = vpow.pop %v4365
  %v4367 = vmul.f32 %v4305, 1.442695
  %v4368 = vpow.pop %v4367
  %v4369 = vmul.f32 %v4306, 1.442695
  %v4370 = vpow.pop %v4369
  %4371 = vadd.xlane.f32.xlu0 %v4308
  %v4372 = vpop.xlane.xlu0 %4371
  %4373 = vadd.xlane.f32.xlu0 %v4310
  %v4374 = vpop.xlane.xlu0 %4373
  %4375 = vadd.xlane.f32.xlu0 %v4312
  %v4376 = vpop.xlane.xlu0 %4375
  %4377 = vadd.xlane.f32.xlu0 %v4314
  %v4378 = vpop.xlane.xlu0 %4377
  %4379 = vadd.xlane.f32.xlu0 %v4316
  %v4380 = vpop.xlane.xlu0 %4379
  %4381 = vadd.xlane.f32.xlu0 %v4318
  %v4382 = vpop.xlane.xlu0 %4381
  %4383 = vadd.xlane.f32.xlu0 %v4320
  %v4384 = vpop.xlane.xlu0 %4383
  %4385 = vadd.xlane.f32.xlu0 %v4322
  %v4386 = vpop.xlane.xlu0 %4385
  %4387 = vadd.xlane.f32.xlu0 %v4324
  %v4388 = vpop.xlane.xlu0 %4387
  %4389 = vadd.xlane.f32.xlu0 %v4326
  %v4390 = vpop.xlane.xlu0 %4389
  %4391 = vadd.xlane.f32.xlu0 %v4328
  %v4392 = vpop.xlane.xlu0 %4391
  %4393 = vadd.xlane.f32.xlu0 %v4330
  %v4394 = vpop.xlane.xlu0 %4393
  %4395 = vadd.xlane.f32.xlu0 %v4332
  %v4396 = vpop.xlane.xlu0 %4395
  %4397 = vadd.xlane.f32.xlu0 %v4334
  %v4398 = vpop.xlane.xlu0 %4397
  %4399 = vadd.xlane.f32.xlu0 %v4336
  %v4400 = vpop.xlane.xlu0 %4399
  %4401 = vadd.xlane.f32.xlu0 %v4338
  %v4402 = vpop.xlane.xlu0 %4401
  %4403 = vadd.xlane.f32.xlu0 %v4340
  %v4404 = vpop.xlane.xlu0 %4403
  %4405 = vadd.xlane.f32.xlu0 %v4342
  %v4406 = vpop.xlane.xlu0 %4405
  %4407 = vadd.xlane.f32.xlu0 %v4344
  %v4408 = vpop.xlane.xlu0 %4407
  %4409 = vadd.xlane.f32.xlu0 %v4346
  %v4410 = vpop.xlane.xlu0 %4409
  %4411 = vadd.xlane.f32.xlu0 %v4348
  %v4412 = vpop.xlane.xlu0 %4411
  %4413 = vadd.xlane.f32.xlu0 %v4350
  %v4414 = vpop.xlane.xlu0 %4413
  %4415 = vadd.xlane.f32.xlu0 %v4352
  %v4416 = vpop.xlane.xlu0 %4415
  %4417 = vadd.xlane.f32.xlu0 %v4354
  %v4418 = vpop.xlane.xlu0 %4417
  %4419 = vadd.xlane.f32.xlu0 %v4356
  %v4420 = vpop.xlane.xlu0 %4419
  %4421 = vadd.xlane.f32.xlu0 %v4358
  %v4422 = vpop.xlane.xlu0 %4421
  %4423 = vadd.xlane.f32.xlu0 %v4360
  %v4424 = vpop.xlane.xlu0 %4423
  %4425 = vadd.xlane.f32.xlu0 %v4362
  %v4426 = vpop.xlane.xlu0 %4425
  %4427 = vadd.xlane.f32.xlu0 %v4364
  %v4428 = vpop.xlane.xlu0 %4427
  %4429 = vadd.xlane.f32.xlu0 %v4366
  %v4430 = vpop.xlane.xlu0 %4429
  %4431 = vadd.xlane.f32.xlu0 %v4368
  %v4432 = vpop.xlane.xlu0 %4431
  %4433 = vadd.xlane.f32.xlu0 %v4370
  %v4434 = vpop.xlane.xlu0 %4433
  %v4435 = vlog2.pop %v4372
  %v4436 = vmul.f32 %v4435, 0.6931472
  %v4437 = vlog2.pop %v4374
  %v4438 = vmul.f32 %v4437, 0.6931472
  %v4439 = vlog2.pop %v4376
  %v4440 = vmul.f32 %v4439, 0.6931472
  %v4441 = vlog2.pop %v4378
  %v4442 = vmul.f32 %v4441, 0.6931472
  %v4443 = vlog2.pop %v4380
  %v4444 = vmul.f32 %v4443, 0.6931472
  %v4445 = vlog2.pop %v4382
  %v4446 = vmul.f32 %v4445, 0.6931472
  %v4447 = vlog2.pop %v4384
  %v4448 = vmul.f32 %v4447, 0.6931472
  %v4449 = vlog2.pop %v4386
  %v4450 = vmul.f32 %v4449, 0.6931472
  %v4451 = vlog2.pop %v4388
  %v4452 = vmul.f32 %v4451, 0.6931472
  %v4453 = vlog2.pop %v4390
  %v4454 = vmul.f32 %v4453, 0.6931472
  %v4455 = vlog2.pop %v4392
  %v4456 = vmul.f32 %v4455, 0.6931472
  %v4457 = vlog2.pop %v4394
  %v4458 = vmul.f32 %v4457, 0.6931472
  %v4459 = vlog2.pop %v4396
  %v4460 = vmul.f32 %v4459, 0.6931472
  %v4461 = vlog2.pop %v4398
  %v4462 = vmul.f32 %v4461, 0.6931472
  %v4463 = vlog2.pop %v4400
  %v4464 = vmul.f32 %v4463, 0.6931472
  %v4465 = vlog2.pop %v4402
  %v4466 = vmul.f32 %v4465, 0.6931472
  %v4467 = vlog2.pop %v4404
  %v4468 = vmul.f32 %v4467, 0.6931472
  %v4469 = vlog2.pop %v4406
  %v4470 = vmul.f32 %v4469, 0.6931472
  %v4471 = vlog2.pop %v4408
  %v4472 = vmul.f32 %v4471, 0.6931472
  %v4473 = vlog2.pop %v4410
  %v4474 = vmul.f32 %v4473, 0.6931472
  %v4475 = vlog2.pop %v4412
  %v4476 = vmul.f32 %v4475, 0.6931472
  %v4477 = vlog2.pop %v4414
  %v4478 = vmul.f32 %v4477, 0.6931472
  %v4479 = vlog2.pop %v4416
  %v4480 = vmul.f32 %v4479, 0.6931472
  %v4481 = vlog2.pop %v4418
  %v4482 = vmul.f32 %v4481, 0.6931472
  %v4483 = vlog2.pop %v4420
  %v4484 = vmul.f32 %v4483, 0.6931472
  %v4485 = vlog2.pop %v4422
  %v4486 = vmul.f32 %v4485, 0.6931472
  %v4487 = vlog2.pop %v4424
  %v4488 = vmul.f32 %v4487, 0.6931472
  %v4489 = vlog2.pop %v4426
  %v4490 = vmul.f32 %v4489, 0.6931472
  %v4491 = vlog2.pop %v4428
  %v4492 = vmul.f32 %v4491, 0.6931472
  %v4493 = vlog2.pop %v4430
  %v4494 = vmul.f32 %v4493, 0.6931472
  %v4495 = vlog2.pop %v4432
  %v4496 = vmul.f32 %v4495, 0.6931472
  %v4497 = vlog2.pop %v4434
  %v4498 = vmul.f32 %v4497, 0.6931472
  %v4499 = vsub.f32 %v4275, %v4436
  %v4500 = vsub.f32 %v4276, %v4438
  %v4501 = vsub.f32 %v4277, %v4440
  %v4502 = vsub.f32 %v4278, %v4442
  %v4503 = vsub.f32 %v4279, %v4444
  %v4504 = vsub.f32 %v4280, %v4446
  %v4505 = vsub.f32 %v4281, %v4448
  %v4506 = vsub.f32 %v4282, %v4450
  %v4507 = vsub.f32 %v4283, %v4452
  %v4508 = vsub.f32 %v4284, %v4454
  %v4509 = vsub.f32 %v4285, %v4456
  %v4510 = vsub.f32 %v4286, %v4458
  %v4511 = vsub.f32 %v4287, %v4460
  %v4512 = vsub.f32 %v4288, %v4462
  %v4513 = vsub.f32 %v4289, %v4464
  %v4514 = vsub.f32 %v4290, %v4466
  %v4515 = vsub.f32 %v4291, %v4468
  %v4516 = vsub.f32 %v4292, %v4470
  %v4517 = vsub.f32 %v4293, %v4472
  %v4518 = vsub.f32 %v4294, %v4474
  %v4519 = vsub.f32 %v4295, %v4476
  %v4520 = vsub.f32 %v4296, %v4478
  %v4521 = vsub.f32 %v4297, %v4480
  %v4522 = vsub.f32 %v4298, %v4482
  %v4523 = vsub.f32 %v4299, %v4484
  %v4524 = vsub.f32 %v4300, %v4486
  %v4525 = vsub.f32 %v4301, %v4488
  %v4526 = vsub.f32 %v4302, %v4490
  %v4527 = vsub.f32 %v4303, %v4492
  %v4528 = vsub.f32 %v4304, %v4494
  %v4529 = vsub.f32 %v4305, %v4496
  %v4530 = vsub.f32 %v4306, %v4498
  %4531 = vst [vmem:[%s7] sm:$0xff] %v4499
  %4532 = vst [vmem:[%s7 + $0x8] sm:$0xff] %v4500
  %4533 = vst [vmem:[%s7 + $0x10] sm:$0xff] %v4501
  %4534 = vst [vmem:[%s7 + $0x18] sm:$0xff] %v4502
  %4535 = vst [vmem:[%s7 + $0x20] sm:$0xff] %v4503
  %4536 = vst [vmem:[%s7 + $0x28] sm:$0xff] %v4504
  %4537 = vst [vmem:[%s7 + $0x30] sm:$0xff] %v4505
  %4538 = vst [vmem:[%s7 + $0x38] sm:$0xff] %v4506
  %4539 = vst [vmem:[%s7 + $0x40] sm:$0xff] %v4507
  %4540 = vst [vmem:[%s7 + $0x48] sm:$0xff] %v4508
  %4541 = vst [vmem:[%s7 + $0x50] sm:$0xff] %v4509
  %4542 = vst [vmem:[%s7 + $0x58] sm:$0xff] %v4510
  %4543 = vst [vmem:[%s7 + $0x60] sm:$0xff] %v4511
  %4544 = vst [vmem:[%s7 + $0x68] sm:$0xff] %v4512
  %4545 = vst [vmem:[%s7 + $0x70] sm:$0xff] %v4513
  %4546 = vst [vmem:[%s7 + $0x78] sm:$0xff] %v4514
  %4547 = vst [vmem:[%s7 + $0x80] sm:$0xff] %v4515
  %4548 = vst [vmem:[%s7 + $0x88] sm:$0xff] %v4516
  %4549 = vst [vmem:[%s7 + $0x90] sm:$0xff] %v4517
  %4550 = vst [vmem:[%s7 + $0x98] sm:$0xff] %v4518
  %4551 = vst [vmem:[%s7 + $0xa0] sm:$0xff] %v4519
  %4552 = vst [vmem:[%s7 + $0xa8] sm:$0xff] %v4520
  %4553 = vst [vmem:[%s7 + $0xb0] sm:$0xff] %v4521
  %4554 = vst [vmem:[%s7 + $0xb8] sm:$0xff] %v4522
  %4555 = vst [vmem:[%s7 + $0xc0] sm:$0xff] %v4523
  %4556 = vst [vmem:[%s7 + $0xc8] sm:$0xff] %v4524
  %4557 = vst [vmem:[%s7 + $0xd0] sm:$0xff] %v4525
  %4558 = vst [vmem:[%s7 + $0xd8] sm:$0xff] %v4526
  %4559 = vst [vmem:[%s7 + $0xe0] sm:$0xff] %v4527
  %4560 = vst [vmem:[%s7 + $0xe8] sm:$0xff] %v4528
  %4561 = vst [vmem:[%s7 + $0xf0] sm:$0xff] %v4529
  %4562 = vst [vmem:[%s7 + $0xf8] sm:$0xff] %v4530
  // Predicated region
  $region30: #{mlp_forward.1} parent=0 // pred_check
    _
  $region31: #{mlp_forward.1} parent=0 // pred_check_branch
    %4564 = sbr.rel (0) target = $region33
  $region32: #{mlp_forward.1} parent=0 // pred_region
    _
  $region33: #{mlp_forward.1} parent=0 // pred_fallthru
    _
  // Predicated region
  $region34: #{mlp_forward.1} parent=0 // pred_check
    _
  $region35: #{mlp_forward.1} parent=0 // pred_check_branch
    %4566 = sbr.rel (0) target = $region37
  $region36: #{mlp_forward.1} parent=0 // pred_region
    _
  $region37: #{mlp_forward.1} parent=0 // pred_fallthru
    _

</llo_original>
